<compile_context>
chip_gen: v5e
topology: v5e:2x2
jax: 0.10.0
libtpu: 0.0.40
codegen_flags: <defaults>
</compile_context>

<pallas_src>
import math
from functools import partial

import numpy as np
import jax
import jax.numpy as jnp
from jax.experimental import pallas as pl
from jax.experimental.pallas import tpu as pltpu


# --------------------------------------------------------------------------------------
# Fused decoder kernel
# --------------------------------------------------------------------------------------

def decoder_kernel(x_ref, enc_ref, sbias_ref, ebias_ref,
                   sa_wq_ref, sa_wk_ref, sa_wv_ref, sa_wo_ref, sa_g_ref, sa_b_ref,
                   ca_wq_ref, ca_wk_ref, ca_wv_ref, ca_wo_ref, ca_g_ref, ca_b_ref,
                   ff_w1_ref, ff_w2_ref, ff_g_ref, ff_b_ref,
                   out_ref, *, n_heads):
    D = x_ref.shape[-1]
    n_layers = sa_wq_ref.shape[0]
    dk = D // n_heads
    scale = 1.0 / math.sqrt(dk)
    bf16 = jnp.bfloat16

    def layer_norm(y, g, b):
        mu = jnp.mean(y, axis=-1, keepdims=True)
        var = jnp.mean((y - mu) ** 2, axis=-1, keepdims=True)
        return (y - mu) * jax.lax.rsqrt(var + 1e-5) * g + b

    def mha(xq2, xkv2, bias, wq, wk, wv, wo_heads, g, b):
        # xq2: (B*Lq, D) f32 (also residual); xkv2: (B*Lk, D) f32
        # bias: (B, Lq, Lk) f32 additive mask (-1e9 where masked)
        B, Lq, Lk = bias.shape
        q = jnp.dot(xq2.astype(bf16), wq, preferred_element_type=jnp.float32)
        k = jnp.dot(xkv2.astype(bf16), wk, preferred_element_type=jnp.float32)
        v = jnp.dot(xkv2.astype(bf16), wv, preferred_element_type=jnp.float32)
        q = q.reshape(B, Lq, D)
        k = k.reshape(B, Lk, D)
        v = v.reshape(B, Lk, D)

        o = jnp.zeros((B * Lq, D), jnp.float32)
        for h in range(n_heads):                     # static unroll over heads
            sl = slice(h * dk, (h + 1) * dk)
            qh = q[:, :, sl].astype(bf16)            # (B, Lq, dk)
            kh = k[:, :, sl].astype(bf16)            # (B, Lk, dk)
            vh = v[:, :, sl].astype(bf16)            # (B, Lk, dk)
            s = jnp.einsum('bqd,bkd->bqk', qh, kh,
                           preferred_element_type=jnp.float32) * scale + bias
            m = jnp.max(s, axis=-1, keepdims=True)
            e = jnp.exp(s - m)
            p = e * pl.reciprocal(jnp.sum(e, axis=-1, keepdims=True), approx=True)
            ctx = jnp.einsum('bqk,bkd->bqd', p.astype(bf16), vh,
                             preferred_element_type=jnp.float32)       # (B, Lq, dk)
            # Project this head with its (dk, D) slice of W_O and accumulate:
            # equivalent to concat(heads) @ W_O but with no lane-axis concatenation.
            o = o + jnp.dot(ctx.reshape(B * Lq, dk).astype(bf16), wo_heads[h],
                            preferred_element_type=jnp.float32)
        return layer_norm(o + xq2, g, b)

    cur = x_ref[...]                 # (B*Lt, D) f32 — carried through the whole stack
    enc2 = enc_ref[...]              # (B*Ls, D) f32
    sbias = sbias_ref[...]           # (B, Lt, Lt) f32
    ebias = ebias_ref[...]           # (B, Lt, Ls) f32

    for li in range(n_layers):       # static unroll: whole decoder fused in one kernel
        cur = mha(cur, cur, sbias,
                  sa_wq_ref[li], sa_wk_ref[li], sa_wv_ref[li], sa_wo_ref[li],
                  sa_g_ref[li], sa_b_ref[li])
        cur = mha(cur, enc2, ebias,
                  ca_wq_ref[li], ca_wk_ref[li], ca_wv_ref[li], ca_wo_ref[li],
                  ca_g_ref[li], ca_b_ref[li])
        h1 = jnp.maximum(jnp.dot(cur.astype(bf16), ff_w1_ref[li],
                                 preferred_element_type=jnp.float32), 0.0)
        o1 = jnp.dot(h1.astype(bf16), ff_w2_ref[li],
                     preferred_element_type=jnp.float32)
        cur = layer_norm(o1 + cur, ff_g_ref[li], ff_b_ref[li])

    out_ref[...] = cur


# --------------------------------------------------------------------------------------
# Glue: positional encoding, parameter init, wrapper
# --------------------------------------------------------------------------------------

def make_positional_encoding(max_len, d_model):
    position = np.arange(max_len, dtype=np.float32)[:, None]
    div_term = np.exp(np.arange(0, d_model, 2, dtype=np.float32) / d_model
                      * -math.log(10000.0))
    pe = np.zeros((max_len, d_model), np.float32)
    pe[:, 0::2] = np.sin(position * div_term)
    pe[:, 1::2] = np.cos(position * div_term)
    return jnp.asarray(pe)


def init_params(key, tgt_vocab, d_model, d_ff, n_heads, n_layers, max_len=64):
    dk = d_model // n_heads
    bf = jnp.bfloat16

    def nrm(k, shape, scale=0.05):
        return (scale * jax.random.normal(k, shape)).astype(jnp.float32)

    ks = jax.random.split(key, 11)
    params = {
        "emb": nrm(ks[0], (tgt_vocab, d_model), 1.0),
        "pe": make_positional_encoding(max_len, d_model),
        # Weights stacked over layers, stored bf16 for the MXU.
        "sa_wq": nrm(ks[1], (n_layers, d_model, d_model)).astype(bf),
        "sa_wk": nrm(ks[2], (n_layers, d_model, d_model)).astype(bf),
        "sa_wv": nrm(ks[3], (n_layers, d_model, d_model)).astype(bf),
        # W_O pre-split per head: (n_layers, H, dk, d_model) so the kernel never
        # slices/concats along the lane axis for the output projection.
        "sa_wo": nrm(ks[4], (n_layers, d_model, d_model))
                 .reshape(n_layers, n_heads, dk, d_model).astype(bf),
        "sa_g": jnp.ones((n_layers, 1, d_model), jnp.float32),
        "sa_b": jnp.zeros((n_layers, 1, d_model), jnp.float32),
        "ca_wq": nrm(ks[5], (n_layers, d_model, d_model)).astype(bf),
        "ca_wk": nrm(ks[6], (n_layers, d_model, d_model)).astype(bf),
        "ca_wv": nrm(ks[7], (n_layers, d_model, d_model)).astype(bf),
        "ca_wo": nrm(ks[8], (n_layers, d_model, d_model))
                 .reshape(n_layers, n_heads, dk, d_model).astype(bf),
        "ca_g": jnp.ones((n_layers, 1, d_model), jnp.float32),
        "ca_b": jnp.zeros((n_layers, 1, d_model), jnp.float32),
        "ff_w1": nrm(ks[9], (n_layers, d_model, d_ff)).astype(bf),
        "ff_w2": nrm(ks[10], (n_layers, d_ff, d_model)).astype(bf),
        "ff_g": jnp.ones((n_layers, 1, d_model), jnp.float32),
        "ff_b": jnp.zeros((n_layers, 1, d_model), jnp.float32),
    }
    return params


def decoder_forward(params, dec_inputs, enc_inputs, enc_outputs, *, n_heads):
    B, Lt = dec_inputs.shape
    Ls = enc_inputs.shape[1]
    D = params["emb"].shape[1]

    # Embedding + positional encoding (dropout is identity at p=0.0 / eval mode).
    x = jnp.take(params["emb"], dec_inputs, axis=0) + params["pe"][:Lt][None, :, :]

    # Additive attention biases (-1e9 where masked), computed once in the wrapper.
    pad = (dec_inputs == 0)[:, None, :]                                 # (B, 1, Lt)
    causal = jnp.triu(jnp.ones((Lt, Lt), jnp.bool_), k=1)[None, :, :]   # (1, Lt, Lt)
    self_bias = jnp.where(jnp.logical_or(pad, causal), -1e9, 0.0).astype(jnp.float32)
    enc_bias = jnp.where(jnp.broadcast_to((enc_inputs == 0)[:, None, :], (B, Lt, Ls)),
                         -1e9, 0.0).astype(jnp.float32)

    inputs = [
        x.reshape(B * Lt, D).astype(jnp.float32),           # batch folded into M-dim
        enc_outputs.reshape(B * Ls, D).astype(jnp.float32),
        self_bias, enc_bias,
        params["sa_wq"], params["sa_wk"], params["sa_wv"], params["sa_wo"],
        params["sa_g"], params["sa_b"],
        params["ca_wq"], params["ca_wk"], params["ca_wv"], params["ca_wo"],
        params["ca_g"], params["ca_b"],
        params["ff_w1"], params["ff_w2"], params["ff_g"], params["ff_b"],
    ]
    # Whole arrays in VMEM (block == full array), single grid step.
    in_specs = [pl.BlockSpec(a.shape, lambda i, nd=a.ndim: (0,) * nd) for a in inputs]

    out = pl.pallas_call(
        partial(decoder_kernel, n_heads=n_heads),
        out_shape=jax.ShapeDtypeStruct((B * Lt, D), jnp.float32),
        grid=(1,),
        in_specs=in_specs,
        out_specs=pl.BlockSpec((B * Lt, D), lambda i: (0, 0)),
        compiler_params=pltpu.CompilerParams(dimension_semantics=("arbitrary",)),
    )(*inputs)
    return out.reshape(B, Lt, D)
    # TODO(synk): at realistic L/D/F, re-tile with grid axes over L (and K/F reduction
    # axes last) instead of the whole-slab-in-VMEM design (v7x VMEM is 64 MiB).


# --------------------------------------------------------------------------------------
# Main
# --------------------------------------------------------------------------------------

if __name__ == "__main__":
    B, Lt, Ls = 2, 8, 8
    D_MODEL, N_HEADS, D_FF, N_LAYERS = 32, 4, 64, 2
    TGT_VOCAB = 50

    key = jax.random.PRNGKey(0)
    k_param, k_dec, k_enc, k_encout = jax.random.split(key, 4)

    params = init_params(k_param, TGT_VOCAB, D_MODEL, D_FF, N_HEADS, N_LAYERS)

    dec_inputs = jax.random.randint(k_dec, (B, Lt), 1, TGT_VOCAB, dtype=jnp.int32)
    dec_inputs = dec_inputs.at[:, -2:].set(0)                   # trailing padding tokens
    enc_inputs = jax.random.randint(k_enc, (B, Ls), 1, TGT_VOCAB, dtype=jnp.int32)
    enc_inputs = enc_inputs.at[:, -1:].set(0)                   # trailing padding token
    enc_outputs = (0.1 * jax.random.normal(k_encout, (B, Ls, D_MODEL))).astype(jnp.float32)

    out = decoder_forward(params, dec_inputs, enc_inputs, enc_outputs, n_heads=N_HEADS)
    out = jax.block_until_ready(out)
    assert out.shape == (B, Lt, D_MODEL) and out.dtype == jnp.float32
    assert bool(jnp.all(jnp.isfinite(out)))
    print("KERNEL_OK")
</pallas_src>

<mosaic_0001>
module attributes {stable_mosaic.version = 11 : i64} {
  func.func @decoder_kernel(%arg0: i32, %arg1: memref<16x32xf32, #tpu.memory_space<vmem>>, %arg2: memref<16x32xf32, #tpu.memory_space<vmem>>, %arg3: memref<2x8x8xf32, #tpu.memory_space<vmem>>, %arg4: memref<2x8x8xf32, #tpu.memory_space<vmem>>, %arg5: memref<2x32x32xbf16, #tpu.memory_space<vmem>>, %arg6: memref<2x32x32xbf16, #tpu.memory_space<vmem>>, %arg7: memref<2x32x32xbf16, #tpu.memory_space<vmem>>, %arg8: memref<2x4x8x32xbf16, #tpu.memory_space<vmem>>, %arg9: memref<2x1x32xf32, #tpu.memory_space<vmem>>, %arg10: memref<2x1x32xf32, #tpu.memory_space<vmem>>, %arg11: memref<2x32x32xbf16, #tpu.memory_space<vmem>>, %arg12: memref<2x32x32xbf16, #tpu.memory_space<vmem>>, %arg13: memref<2x32x32xbf16, #tpu.memory_space<vmem>>, %arg14: memref<2x4x8x32xbf16, #tpu.memory_space<vmem>>, %arg15: memref<2x1x32xf32, #tpu.memory_space<vmem>>, %arg16: memref<2x1x32xf32, #tpu.memory_space<vmem>>, %arg17: memref<2x32x64xbf16, #tpu.memory_space<vmem>>, %arg18: memref<2x64x32xbf16, #tpu.memory_space<vmem>>, %arg19: memref<2x1x32xf32, #tpu.memory_space<vmem>>, %arg20: memref<2x1x32xf32, #tpu.memory_space<vmem>>, %arg21: memref<16x32xf32, #tpu.memory_space<vmem>>) attributes {dimension_semantics = [#tpu.dimension_semantics<arbitrary>], iteration_bounds = array<i64: 1>, scalar_prefetch = 0 : i64, scratch_operands = 0 : i64, tpu.core_type = #tpu.core_type<tc>, window_params = [{pipeline_mode = #tpu.pipeline_mode<synchronous>, transform_indices = @transform_0, window_bounds = array<i64: 16, 32>}, {pipeline_mode = #tpu.pipeline_mode<synchronous>, transform_indices = @transform_1, window_bounds = array<i64: 16, 32>}, {pipeline_mode = #tpu.pipeline_mode<synchronous>, transform_indices = @transform_2, window_bounds = array<i64: 2, 8, 8>}, {pipeline_mode = #tpu.pipeline_mode<synchronous>, transform_indices = @transform_3, window_bounds = array<i64: 2, 8, 8>}, {pipeline_mode = #tpu.pipeline_mode<synchronous>, transform_indices = @transform_4, window_bounds = array<i64: 2, 32, 32>}, {pipeline_mode = #tpu.pipeline_mode<synchronous>, transform_indices = @transform_5, window_bounds = array<i64: 2, 32, 32>}, {pipeline_mode = #tpu.pipeline_mode<synchronous>, transform_indices = @transform_6, window_bounds = array<i64: 2, 32, 32>}, {pipeline_mode = #tpu.pipeline_mode<synchronous>, transform_indices = @transform_7, window_bounds = array<i64: 2, 4, 8, 32>}, {pipeline_mode = #tpu.pipeline_mode<synchronous>, transform_indices = @transform_8, window_bounds = array<i64: 2, 1, 32>}, {pipeline_mode = #tpu.pipeline_mode<synchronous>, transform_indices = @transform_9, window_bounds = array<i64: 2, 1, 32>}, {pipeline_mode = #tpu.pipeline_mode<synchronous>, transform_indices = @transform_10, window_bounds = array<i64: 2, 32, 32>}, {pipeline_mode = #tpu.pipeline_mode<synchronous>, transform_indices = @transform_11, window_bounds = array<i64: 2, 32, 32>}, {pipeline_mode = #tpu.pipeline_mode<synchronous>, transform_indices = @transform_12, window_bounds = array<i64: 2, 32, 32>}, {pipeline_mode = #tpu.pipeline_mode<synchronous>, transform_indices = @transform_13, window_bounds = array<i64: 2, 4, 8, 32>}, {pipeline_mode = #tpu.pipeline_mode<synchronous>, transform_indices = @transform_14, window_bounds = array<i64: 2, 1, 32>}, {pipeline_mode = #tpu.pipeline_mode<synchronous>, transform_indices = @transform_15, window_bounds = array<i64: 2, 1, 32>}, {pipeline_mode = #tpu.pipeline_mode<synchronous>, transform_indices = @transform_16, window_bounds = array<i64: 2, 32, 64>}, {pipeline_mode = #tpu.pipeline_mode<synchronous>, transform_indices = @transform_17, window_bounds = array<i64: 2, 64, 32>}, {pipeline_mode = #tpu.pipeline_mode<synchronous>, transform_indices = @transform_18, window_bounds = array<i64: 2, 1, 32>}, {pipeline_mode = #tpu.pipeline_mode<synchronous>, transform_indices = @transform_19, window_bounds = array<i64: 2, 1, 32>}, {pipeline_mode = #tpu.pipeline_mode<synchronous>, transform_indices = @transform_20, window_bounds = array<i64: 16, 32>}]} {
    %c0 = arith.constant 0 : index
    %c0_0 = arith.constant 0 : index
    %0 = vector.load %arg1[%c0, %c0_0] : memref<16x32xf32, #tpu.memory_space<vmem>>, vector<16x32xf32>
    %c0_1 = arith.constant 0 : index
    %c0_2 = arith.constant 0 : index
    %1 = vector.load %arg2[%c0_1, %c0_2] : memref<16x32xf32, #tpu.memory_space<vmem>>, vector<16x32xf32>
    %c0_3 = arith.constant 0 : index
    %c0_4 = arith.constant 0 : index
    %c0_5 = arith.constant 0 : index
    %2 = vector.load %arg3[%c0_3, %c0_4, %c0_5] : memref<2x8x8xf32, #tpu.memory_space<vmem>>, vector<2x8x8xf32>
    %c0_6 = arith.constant 0 : index
    %c0_7 = arith.constant 0 : index
    %c0_8 = arith.constant 0 : index
    %3 = vector.load %arg4[%c0_6, %c0_7, %c0_8] : memref<2x8x8xf32, #tpu.memory_space<vmem>>, vector<2x8x8xf32>
    %c0_9 = arith.constant 0 : index
    %c0_10 = arith.constant 0 : index
    %c0_11 = arith.constant 0 : index
    %4 = vector.load %arg5[%c0_9, %c0_10, %c0_11] : memref<2x32x32xbf16, #tpu.memory_space<vmem>>, vector<1x32x32xbf16>
    %5 = vector.shape_cast %4 : vector<1x32x32xbf16> to vector<32x32xbf16>
    %c0_12 = arith.constant 0 : index
    %c0_13 = arith.constant 0 : index
    %c0_14 = arith.constant 0 : index
    %6 = vector.load %arg6[%c0_12, %c0_13, %c0_14] : memref<2x32x32xbf16, #tpu.memory_space<vmem>>, vector<1x32x32xbf16>
    %7 = vector.shape_cast %6 : vector<1x32x32xbf16> to vector<32x32xbf16>
    %c0_15 = arith.constant 0 : index
    %c0_16 = arith.constant 0 : index
    %c0_17 = arith.constant 0 : index
    %8 = vector.load %arg7[%c0_15, %c0_16, %c0_17] : memref<2x32x32xbf16, #tpu.memory_space<vmem>>, vector<1x32x32xbf16>
    %9 = vector.shape_cast %8 : vector<1x32x32xbf16> to vector<32x32xbf16>
    %c0_18 = arith.constant 0 : index
    %c0_19 = arith.constant 0 : index
    %c0_20 = arith.constant 0 : index
    %c0_21 = arith.constant 0 : index
    %10 = vector.load %arg8[%c0_18, %c0_19, %c0_20, %c0_21] : memref<2x4x8x32xbf16, #tpu.memory_space<vmem>>, vector<1x4x8x32xbf16>
    %11 = vector.shape_cast %10 : vector<1x4x8x32xbf16> to vector<4x8x32xbf16>
    %c0_22 = arith.constant 0 : index
    %c0_23 = arith.constant 0 : index
    %c0_24 = arith.constant 0 : index
    %12 = vector.load %arg9[%c0_22, %c0_23, %c0_24] : memref<2x1x32xf32, #tpu.memory_space<vmem>>, vector<1x1x32xf32>
    %13 = vector.shape_cast %12 : vector<1x1x32xf32> to vector<1x32xf32>
    %c0_25 = arith.constant 0 : index
    %c0_26 = arith.constant 0 : index
    %c0_27 = arith.constant 0 : index
    %14 = vector.load %arg10[%c0_25, %c0_26, %c0_27] : memref<2x1x32xf32, #tpu.memory_space<vmem>>, vector<1x1x32xf32>
    %15 = vector.shape_cast %14 : vector<1x1x32xf32> to vector<1x32xf32>
    %16 = arith.truncf %0 : vector<16x32xf32> to vector<16x32xbf16>
    %cst = arith.constant dense<0.000000e+00> : vector<16x32xf32>
    %17 = tpu.matmul %16, %5, %cst {dimension_numbers = #tpu.dot_dimension_numbers<[1], [0], [0], [1], [0, 0, 1, 1], [], []>} : vector<16x32xbf16>, vector<32x32xbf16>, vector<16x32xf32> -> vector<16x32xf32>
    %18 = arith.truncf %0 : vector<16x32xf32> to vector<16x32xbf16>
    %cst_28 = arith.constant dense<0.000000e+00> : vector<16x32xf32>
    %19 = tpu.matmul %18, %7, %cst_28 {dimension_numbers = #tpu.dot_dimension_numbers<[1], [0], [0], [1], [0, 0, 1, 1], [], []>} : vector<16x32xbf16>, vector<32x32xbf16>, vector<16x32xf32> -> vector<16x32xf32>
    %20 = arith.truncf %0 : vector<16x32xf32> to vector<16x32xbf16>
    %cst_29 = arith.constant dense<0.000000e+00> : vector<16x32xf32>
    %21 = tpu.matmul %20, %9, %cst_29 {dimension_numbers = #tpu.dot_dimension_numbers<[1], [0], [0], [1], [0, 0, 1, 1], [], []>} : vector<16x32xbf16>, vector<32x32xbf16>, vector<16x32xf32> -> vector<16x32xf32>
    %22 = vector.shape_cast %17 : vector<16x32xf32> to vector<2x8x32xf32>
    %23 = vector.shape_cast %19 : vector<16x32xf32> to vector<2x8x32xf32>
    %24 = vector.shape_cast %21 : vector<16x32xf32> to vector<2x8x32xf32>
    %cst_30 = arith.constant 0.000000e+00 : f32
    %25 = vector.broadcast %cst_30 : f32 to vector<16x32xf32>
    %26 = vector.extract_strided_slice %22 {offsets = [0, 0, 0], sizes = [2, 8, 8], strides = [1, 1, 1]} : vector<2x8x32xf32> to vector<2x8x8xf32>
    %27 = arith.truncf %26 : vector<2x8x8xf32> to vector<2x8x8xbf16>
    %28 = vector.extract_strided_slice %23 {offsets = [0, 0, 0], sizes = [2, 8, 8], strides = [1, 1, 1]} : vector<2x8x32xf32> to vector<2x8x8xf32>
    %29 = arith.truncf %28 : vector<2x8x8xf32> to vector<2x8x8xbf16>
    %30 = vector.extract_strided_slice %24 {offsets = [0, 0, 0], sizes = [2, 8, 8], strides = [1, 1, 1]} : vector<2x8x32xf32> to vector<2x8x8xf32>
    %31 = arith.truncf %30 : vector<2x8x8xf32> to vector<2x8x8xbf16>
    "tpu.trace_start"() <{level = 10 : i32, message = "bqd,bkd->bqk"}> : () -> ()
    %cst_31 = arith.constant dense<0.000000e+00> : vector<2x8x8xf32>
    %32 = tpu.matmul %27, %29, %cst_31 {dimension_numbers = #tpu.dot_dimension_numbers<[2], [2], [1], [1], [0, 0, 0, 1, 1, 1], [0], [0]>} : vector<2x8x8xbf16>, vector<2x8x8xbf16>, vector<2x8x8xf32> -> vector<2x8x8xf32>
    "tpu.trace_stop"() : () -> ()
    %cst_32 = arith.constant 0.353553385 : f32
    %33 = vector.broadcast %cst_32 : f32 to vector<2x8x8xf32>
    %34 = arith.mulf %32, %33 : vector<2x8x8xf32>
    %35 = arith.addf %34, %2 : vector<2x8x8xf32>
    %cst_33 = arith.constant dense<0xFF800000> : vector<2x8xf32>
    %36 = vector.multi_reduction <maximumf>, %35, %cst_33 [2] : vector<2x8x8xf32> to vector<2x8xf32>
    %37 = vector.shape_cast %36 : vector<2x8xf32> to vector<2x8x1xf32>
    %38 = vector.broadcast %37 : vector<2x8x1xf32> to vector<2x8x8xf32>
    %39 = arith.subf %35, %38 : vector<2x8x8xf32>
    %40 = math.exp %39 : vector<2x8x8xf32>
    %cst_34 = arith.constant dense<0.000000e+00> : vector<2x8xf32>
    %41 = vector.multi_reduction <add>, %40, %cst_34 [2] : vector<2x8x8xf32> to vector<2x8xf32>
    %42 = vector.shape_cast %41 : vector<2x8xf32> to vector<2x8x1xf32>
    %43 = tpu.reciprocal %42 {approx = true} : vector<2x8x1xf32> -> vector<2x8x1xf32>
    %44 = vector.broadcast %43 : vector<2x8x1xf32> to vector<2x8x8xf32>
    %45 = arith.mulf %40, %44 : vector<2x8x8xf32>
    %46 = arith.truncf %45 : vector<2x8x8xf32> to vector<2x8x8xbf16>
    "tpu.trace_start"() <{level = 10 : i32, message = "bqk,bkd->bqd"}> : () -> ()
    %cst_35 = arith.constant dense<0.000000e+00> : vector<2x8x8xf32>
    %47 = tpu.matmul %46, %31, %cst_35 {dimension_numbers = #tpu.dot_dimension_numbers<[2], [1], [1], [2], [0, 0, 0, 1, 1, 2], [0], [0]>} : vector<2x8x8xbf16>, vector<2x8x8xbf16>, vector<2x8x8xf32> -> vector<2x8x8xf32>
    "tpu.trace_stop"() : () -> ()
    %48 = vector.shape_cast %47 : vector<2x8x8xf32> to vector<16x8xf32>
    %49 = arith.truncf %48 : vector<16x8xf32> to vector<16x8xbf16>
    %50 = vector.extract_strided_slice %11 {offsets = [0, 0, 0], sizes = [1, 8, 32], strides = [1, 1, 1]} : vector<4x8x32xbf16> to vector<1x8x32xbf16>
    %51 = vector.shape_cast %50 : vector<1x8x32xbf16> to vector<8x32xbf16>
    %cst_36 = arith.constant dense<0.000000e+00> : vector<16x32xf32>
    %52 = tpu.matmul %49, %51, %cst_36 {dimension_numbers = #tpu.dot_dimension_numbers<[1], [0], [0], [1], [0, 0, 1, 1], [], []>} : vector<16x8xbf16>, vector<8x32xbf16>, vector<16x32xf32> -> vector<16x32xf32>
    %53 = arith.addf %25, %52 : vector<16x32xf32>
    %54 = vector.extract_strided_slice %22 {offsets = [0, 0, 8], sizes = [2, 8, 8], strides = [1, 1, 1]} : vector<2x8x32xf32> to vector<2x8x8xf32>
    %55 = arith.truncf %54 : vector<2x8x8xf32> to vector<2x8x8xbf16>
    %56 = vector.extract_strided_slice %23 {offsets = [0, 0, 8], sizes = [2, 8, 8], strides = [1, 1, 1]} : vector<2x8x32xf32> to vector<2x8x8xf32>
    %57 = arith.truncf %56 : vector<2x8x8xf32> to vector<2x8x8xbf16>
    %58 = vector.extract_strided_slice %24 {offsets = [0, 0, 8], sizes = [2, 8, 8], strides = [1, 1, 1]} : vector<2x8x32xf32> to vector<2x8x8xf32>
    %59 = arith.truncf %58 : vector<2x8x8xf32> to vector<2x8x8xbf16>
    "tpu.trace_start"() <{level = 10 : i32, message = "bqd,bkd->bqk"}> : () -> ()
    %cst_37 = arith.constant dense<0.000000e+00> : vector<2x8x8xf32>
    %60 = tpu.matmul %55, %57, %cst_37 {dimension_numbers = #tpu.dot_dimension_numbers<[2], [2], [1], [1], [0, 0, 0, 1, 1, 1], [0], [0]>} : vector<2x8x8xbf16>, vector<2x8x8xbf16>, vector<2x8x8xf32> -> vector<2x8x8xf32>
    "tpu.trace_stop"() : () -> ()
    %cst_38 = arith.constant 0.353553385 : f32
    %61 = vector.broadcast %cst_38 : f32 to vector<2x8x8xf32>
    %62 = arith.mulf %60, %61 : vector<2x8x8xf32>
    %63 = arith.addf %62, %2 : vector<2x8x8xf32>
    %cst_39 = arith.constant dense<0xFF800000> : vector<2x8xf32>
    %64 = vector.multi_reduction <maximumf>, %63, %cst_39 [2] : vector<2x8x8xf32> to vector<2x8xf32>
    %65 = vector.shape_cast %64 : vector<2x8xf32> to vector<2x8x1xf32>
    %66 = vector.broadcast %65 : vector<2x8x1xf32> to vector<2x8x8xf32>
    %67 = arith.subf %63, %66 : vector<2x8x8xf32>
    %68 = math.exp %67 : vector<2x8x8xf32>
    %cst_40 = arith.constant dense<0.000000e+00> : vector<2x8xf32>
    %69 = vector.multi_reduction <add>, %68, %cst_40 [2] : vector<2x8x8xf32> to vector<2x8xf32>
    %70 = vector.shape_cast %69 : vector<2x8xf32> to vector<2x8x1xf32>
    %71 = tpu.reciprocal %70 {approx = true} : vector<2x8x1xf32> -> vector<2x8x1xf32>
    %72 = vector.broadcast %71 : vector<2x8x1xf32> to vector<2x8x8xf32>
    %73 = arith.mulf %68, %72 : vector<2x8x8xf32>
    %74 = arith.truncf %73 : vector<2x8x8xf32> to vector<2x8x8xbf16>
    "tpu.trace_start"() <{level = 10 : i32, message = "bqk,bkd->bqd"}> : () -> ()
    %cst_41 = arith.constant dense<0.000000e+00> : vector<2x8x8xf32>
    %75 = tpu.matmul %74, %59, %cst_41 {dimension_numbers = #tpu.dot_dimension_numbers<[2], [1], [1], [2], [0, 0, 0, 1, 1, 2], [0], [0]>} : vector<2x8x8xbf16>, vector<2x8x8xbf16>, vector<2x8x8xf32> -> vector<2x8x8xf32>
    "tpu.trace_stop"() : () -> ()
    %76 = vector.shape_cast %75 : vector<2x8x8xf32> to vector<16x8xf32>
    %77 = arith.truncf %76 : vector<16x8xf32> to vector<16x8xbf16>
    %78 = vector.extract_strided_slice %11 {offsets = [1, 0, 0], sizes = [1, 8, 32], strides = [1, 1, 1]} : vector<4x8x32xbf16> to vector<1x8x32xbf16>
    %79 = vector.shape_cast %78 : vector<1x8x32xbf16> to vector<8x32xbf16>
    %cst_42 = arith.constant dense<0.000000e+00> : vector<16x32xf32>
    %80 = tpu.matmul %77, %79, %cst_42 {dimension_numbers = #tpu.dot_dimension_numbers<[1], [0], [0], [1], [0, 0, 1, 1], [], []>} : vector<16x8xbf16>, vector<8x32xbf16>, vector<16x32xf32> -> vector<16x32xf32>
    %81 = arith.addf %53, %80 : vector<16x32xf32>
    %82 = vector.extract_strided_slice %22 {offsets = [0, 0, 16], sizes = [2, 8, 8], strides = [1, 1, 1]} : vector<2x8x32xf32> to vector<2x8x8xf32>
    %83 = arith.truncf %82 : vector<2x8x8xf32> to vector<2x8x8xbf16>
    %84 = vector.extract_strided_slice %23 {offsets = [0, 0, 16], sizes = [2, 8, 8], strides = [1, 1, 1]} : vector<2x8x32xf32> to vector<2x8x8xf32>
    %85 = arith.truncf %84 : vector<2x8x8xf32> to vector<2x8x8xbf16>
    %86 = vector.extract_strided_slice %24 {offsets = [0, 0, 16], sizes = [2, 8, 8], strides = [1, 1, 1]} : vector<2x8x32xf32> to vector<2x8x8xf32>
    %87 = arith.truncf %86 : vector<2x8x8xf32> to vector<2x8x8xbf16>
    "tpu.trace_start"() <{level = 10 : i32, message = "bqd,bkd->bqk"}> : () -> ()
    %cst_43 = arith.constant dense<0.000000e+00> : vector<2x8x8xf32>
    %88 = tpu.matmul %83, %85, %cst_43 {dimension_numbers = #tpu.dot_dimension_numbers<[2], [2], [1], [1], [0, 0, 0, 1, 1, 1], [0], [0]>} : vector<2x8x8xbf16>, vector<2x8x8xbf16>, vector<2x8x8xf32> -> vector<2x8x8xf32>
    "tpu.trace_stop"() : () -> ()
    %cst_44 = arith.constant 0.353553385 : f32
    %89 = vector.broadcast %cst_44 : f32 to vector<2x8x8xf32>
    %90 = arith.mulf %88, %89 : vector<2x8x8xf32>
    %91 = arith.addf %90, %2 : vector<2x8x8xf32>
    %cst_45 = arith.constant dense<0xFF800000> : vector<2x8xf32>
    %92 = vector.multi_reduction <maximumf>, %91, %cst_45 [2] : vector<2x8x8xf32> to vector<2x8xf32>
    %93 = vector.shape_cast %92 : vector<2x8xf32> to vector<2x8x1xf32>
    %94 = vector.broadcast %93 : vector<2x8x1xf32> to vector<2x8x8xf32>
    %95 = arith.subf %91, %94 : vector<2x8x8xf32>
    %96 = math.exp %95 : vector<2x8x8xf32>
    %cst_46 = arith.constant dense<0.000000e+00> : vector<2x8xf32>
    %97 = vector.multi_reduction <add>, %96, %cst_46 [2] : vector<2x8x8xf32> to vector<2x8xf32>
    %98 = vector.shape_cast %97 : vector<2x8xf32> to vector<2x8x1xf32>
    %99 = tpu.reciprocal %98 {approx = true} : vector<2x8x1xf32> -> vector<2x8x1xf32>
    %100 = vector.broadcast %99 : vector<2x8x1xf32> to vector<2x8x8xf32>
    %101 = arith.mulf %96, %100 : vector<2x8x8xf32>
    %102 = arith.truncf %101 : vector<2x8x8xf32> to vector<2x8x8xbf16>
    "tpu.trace_start"() <{level = 10 : i32, message = "bqk,bkd->bqd"}> : () -> ()
    %cst_47 = arith.constant dense<0.000000e+00> : vector<2x8x8xf32>
    %103 = tpu.matmul %102, %87, %cst_47 {dimension_numbers = #tpu.dot_dimension_numbers<[2], [1], [1], [2], [0, 0, 0, 1, 1, 2], [0], [0]>} : vector<2x8x8xbf16>, vector<2x8x8xbf16>, vector<2x8x8xf32> -> vector<2x8x8xf32>
    "tpu.trace_stop"() : () -> ()
    %104 = vector.shape_cast %103 : vector<2x8x8xf32> to vector<16x8xf32>
    %105 = arith.truncf %104 : vector<16x8xf32> to vector<16x8xbf16>
    %106 = vector.extract_strided_slice %11 {offsets = [2, 0, 0], sizes = [1, 8, 32], strides = [1, 1, 1]} : vector<4x8x32xbf16> to vector<1x8x32xbf16>
    %107 = vector.shape_cast %106 : vector<1x8x32xbf16> to vector<8x32xbf16>
    %cst_48 = arith.constant dense<0.000000e+00> : vector<16x32xf32>
    %108 = tpu.matmul %105, %107, %cst_48 {dimension_numbers = #tpu.dot_dimension_numbers<[1], [0], [0], [1], [0, 0, 1, 1], [], []>} : vector<16x8xbf16>, vector<8x32xbf16>, vector<16x32xf32> -> vector<16x32xf32>
    %109 = arith.addf %81, %108 : vector<16x32xf32>
    %110 = vector.extract_strided_slice %22 {offsets = [0, 0, 24], sizes = [2, 8, 8], strides = [1, 1, 1]} : vector<2x8x32xf32> to vector<2x8x8xf32>
    %111 = arith.truncf %110 : vector<2x8x8xf32> to vector<2x8x8xbf16>
    %112 = vector.extract_strided_slice %23 {offsets = [0, 0, 24], sizes = [2, 8, 8], strides = [1, 1, 1]} : vector<2x8x32xf32> to vector<2x8x8xf32>
    %113 = arith.truncf %112 : vector<2x8x8xf32> to vector<2x8x8xbf16>
    %114 = vector.extract_strided_slice %24 {offsets = [0, 0, 24], sizes = [2, 8, 8], strides = [1, 1, 1]} : vector<2x8x32xf32> to vector<2x8x8xf32>
    %115 = arith.truncf %114 : vector<2x8x8xf32> to vector<2x8x8xbf16>
    "tpu.trace_start"() <{level = 10 : i32, message = "bqd,bkd->bqk"}> : () -> ()
    %cst_49 = arith.constant dense<0.000000e+00> : vector<2x8x8xf32>
    %116 = tpu.matmul %111, %113, %cst_49 {dimension_numbers = #tpu.dot_dimension_numbers<[2], [2], [1], [1], [0, 0, 0, 1, 1, 1], [0], [0]>} : vector<2x8x8xbf16>, vector<2x8x8xbf16>, vector<2x8x8xf32> -> vector<2x8x8xf32>
    "tpu.trace_stop"() : () -> ()
    %cst_50 = arith.constant 0.353553385 : f32
    %117 = vector.broadcast %cst_50 : f32 to vector<2x8x8xf32>
    %118 = arith.mulf %116, %117 : vector<2x8x8xf32>
    %119 = arith.addf %118, %2 : vector<2x8x8xf32>
    %cst_51 = arith.constant dense<0xFF800000> : vector<2x8xf32>
    %120 = vector.multi_reduction <maximumf>, %119, %cst_51 [2] : vector<2x8x8xf32> to vector<2x8xf32>
    %121 = vector.shape_cast %120 : vector<2x8xf32> to vector<2x8x1xf32>
    %122 = vector.broadcast %121 : vector<2x8x1xf32> to vector<2x8x8xf32>
    %123 = arith.subf %119, %122 : vector<2x8x8xf32>
    %124 = math.exp %123 : vector<2x8x8xf32>
    %cst_52 = arith.constant dense<0.000000e+00> : vector<2x8xf32>
    %125 = vector.multi_reduction <add>, %124, %cst_52 [2] : vector<2x8x8xf32> to vector<2x8xf32>
    %126 = vector.shape_cast %125 : vector<2x8xf32> to vector<2x8x1xf32>
    %127 = tpu.reciprocal %126 {approx = true} : vector<2x8x1xf32> -> vector<2x8x1xf32>
    %128 = vector.broadcast %127 : vector<2x8x1xf32> to vector<2x8x8xf32>
    %129 = arith.mulf %124, %128 : vector<2x8x8xf32>
    %130 = arith.truncf %129 : vector<2x8x8xf32> to vector<2x8x8xbf16>
    "tpu.trace_start"() <{level = 10 : i32, message = "bqk,bkd->bqd"}> : () -> ()
    %cst_53 = arith.constant dense<0.000000e+00> : vector<2x8x8xf32>
    %131 = tpu.matmul %130, %115, %cst_53 {dimension_numbers = #tpu.dot_dimension_numbers<[2], [1], [1], [2], [0, 0, 0, 1, 1, 2], [0], [0]>} : vector<2x8x8xbf16>, vector<2x8x8xbf16>, vector<2x8x8xf32> -> vector<2x8x8xf32>
    "tpu.trace_stop"() : () -> ()
    %132 = vector.shape_cast %131 : vector<2x8x8xf32> to vector<16x8xf32>
    %133 = arith.truncf %132 : vector<16x8xf32> to vector<16x8xbf16>
    %134 = vector.extract_strided_slice %11 {offsets = [3, 0, 0], sizes = [1, 8, 32], strides = [1, 1, 1]} : vector<4x8x32xbf16> to vector<1x8x32xbf16>
    %135 = vector.shape_cast %134 : vector<1x8x32xbf16> to vector<8x32xbf16>
    %cst_54 = arith.constant dense<0.000000e+00> : vector<16x32xf32>
    %136 = tpu.matmul %133, %135, %cst_54 {dimension_numbers = #tpu.dot_dimension_numbers<[1], [0], [0], [1], [0, 0, 1, 1], [], []>} : vector<16x8xbf16>, vector<8x32xbf16>, vector<16x32xf32> -> vector<16x32xf32>
    %137 = arith.addf %109, %136 : vector<16x32xf32>
    %138 = arith.addf %137, %0 : vector<16x32xf32>
    %cst_55 = arith.constant dense<0.000000e+00> : vector<16xf32>
    %139 = vector.multi_reduction <add>, %138, %cst_55 [1] : vector<16x32xf32> to vector<16xf32>
    %140 = vector.shape_cast %139 : vector<16xf32> to vector<16x1xf32>
    %cst_56 = arith.constant 3.200000e+01 : f32
    %141 = vector.broadcast %cst_56 : f32 to vector<16x1xf32>
    %142 = arith.divf %140, %141 : vector<16x1xf32>
    %143 = vector.broadcast %142 : vector<16x1xf32> to vector<16x32xf32>
    %144 = arith.subf %138, %143 : vector<16x32xf32>
    %145 = arith.mulf %144, %144 : vector<16x32xf32>
    %cst_57 = arith.constant dense<0.000000e+00> : vector<16xf32>
    %146 = vector.multi_reduction <add>, %145, %cst_57 [1] : vector<16x32xf32> to vector<16xf32>
    %147 = vector.shape_cast %146 : vector<16xf32> to vector<16x1xf32>
    %cst_58 = arith.constant 3.200000e+01 : f32
    %148 = vector.broadcast %cst_58 : f32 to vector<16x1xf32>
    %149 = arith.divf %147, %148 : vector<16x1xf32>
    %150 = vector.broadcast %142 : vector<16x1xf32> to vector<16x32xf32>
    %151 = arith.subf %138, %150 : vector<16x32xf32>
    %cst_59 = arith.constant 9.99999974E-6 : f32
    %152 = vector.broadcast %cst_59 : f32 to vector<16x1xf32>
    %153 = arith.addf %149, %152 : vector<16x1xf32>
    %154 = math.rsqrt %153 : vector<16x1xf32>
    %155 = vector.broadcast %154 : vector<16x1xf32> to vector<16x32xf32>
    %156 = arith.mulf %151, %155 : vector<16x32xf32>
    %157 = vector.broadcast %13 : vector<1x32xf32> to vector<16x32xf32>
    %158 = arith.mulf %156, %157 : vector<16x32xf32>
    %159 = vector.broadcast %15 : vector<1x32xf32> to vector<16x32xf32>
    %160 = arith.addf %158, %159 : vector<16x32xf32>
    %c0_60 = arith.constant 0 : index
    %c0_61 = arith.constant 0 : index
    %c0_62 = arith.constant 0 : index
    %161 = vector.load %arg11[%c0_60, %c0_61, %c0_62] : memref<2x32x32xbf16, #tpu.memory_space<vmem>>, vector<1x32x32xbf16>
    %162 = vector.shape_cast %161 : vector<1x32x32xbf16> to vector<32x32xbf16>
    %c0_63 = arith.constant 0 : index
    %c0_64 = arith.constant 0 : index
    %c0_65 = arith.constant 0 : index
    %163 = vector.load %arg12[%c0_63, %c0_64, %c0_65] : memref<2x32x32xbf16, #tpu.memory_space<vmem>>, vector<1x32x32xbf16>
    %164 = vector.shape_cast %163 : vector<1x32x32xbf16> to vector<32x32xbf16>
    %c0_66 = arith.constant 0 : index
    %c0_67 = arith.constant 0 : index
    %c0_68 = arith.constant 0 : index
    %165 = vector.load %arg13[%c0_66, %c0_67, %c0_68] : memref<2x32x32xbf16, #tpu.memory_space<vmem>>, vector<1x32x32xbf16>
    %166 = vector.shape_cast %165 : vector<1x32x32xbf16> to vector<32x32xbf16>
    %c0_69 = arith.constant 0 : index
    %c0_70 = arith.constant 0 : index
    %c0_71 = arith.constant 0 : index
    %c0_72 = arith.constant 0 : index
    %167 = vector.load %arg14[%c0_69, %c0_70, %c0_71, %c0_72] : memref<2x4x8x32xbf16, #tpu.memory_space<vmem>>, vector<1x4x8x32xbf16>
    %168 = vector.shape_cast %167 : vector<1x4x8x32xbf16> to vector<4x8x32xbf16>
    %c0_73 = arith.constant 0 : index
    %c0_74 = arith.constant 0 : index
    %c0_75 = arith.constant 0 : index
    %169 = vector.load %arg15[%c0_73, %c0_74, %c0_75] : memref<2x1x32xf32, #tpu.memory_space<vmem>>, vector<1x1x32xf32>
    %170 = vector.shape_cast %169 : vector<1x1x32xf32> to vector<1x32xf32>
    %c0_76 = arith.constant 0 : index
    %c0_77 = arith.constant 0 : index
    %c0_78 = arith.constant 0 : index
    %171 = vector.load %arg16[%c0_76, %c0_77, %c0_78] : memref<2x1x32xf32, #tpu.memory_space<vmem>>, vector<1x1x32xf32>
    %172 = vector.shape_cast %171 : vector<1x1x32xf32> to vector<1x32xf32>
    %173 = arith.truncf %160 : vector<16x32xf32> to vector<16x32xbf16>
    %cst_79 = arith.constant dense<0.000000e+00> : vector<16x32xf32>
    %174 = tpu.matmul %173, %162, %cst_79 {dimension_numbers = #tpu.dot_dimension_numbers<[1], [0], [0], [1], [0, 0, 1, 1], [], []>} : vector<16x32xbf16>, vector<32x32xbf16>, vector<16x32xf32> -> vector<16x32xf32>
    %175 = arith.truncf %1 : vector<16x32xf32> to vector<16x32xbf16>
    %cst_80 = arith.constant dense<0.000000e+00> : vector<16x32xf32>
    %176 = tpu.matmul %175, %164, %cst_80 {dimension_numbers = #tpu.dot_dimension_numbers<[1], [0], [0], [1], [0, 0, 1, 1], [], []>} : vector<16x32xbf16>, vector<32x32xbf16>, vector<16x32xf32> -> vector<16x32xf32>
    %177 = arith.truncf %1 : vector<16x32xf32> to vector<16x32xbf16>
    %cst_81 = arith.constant dense<0.000000e+00> : vector<16x32xf32>
    %178 = tpu.matmul %177, %166, %cst_81 {dimension_numbers = #tpu.dot_dimension_numbers<[1], [0], [0], [1], [0, 0, 1, 1], [], []>} : vector<16x32xbf16>, vector<32x32xbf16>, vector<16x32xf32> -> vector<16x32xf32>
    %179 = vector.shape_cast %174 : vector<16x32xf32> to vector<2x8x32xf32>
    %180 = vector.shape_cast %176 : vector<16x32xf32> to vector<2x8x32xf32>
    %181 = vector.shape_cast %178 : vector<16x32xf32> to vector<2x8x32xf32>
    %cst_82 = arith.constant 0.000000e+00 : f32
    %182 = vector.broadcast %cst_82 : f32 to vector<16x32xf32>
    %183 = vector.extract_strided_slice %179 {offsets = [0, 0, 0], sizes = [2, 8, 8], strides = [1, 1, 1]} : vector<2x8x32xf32> to vector<2x8x8xf32>
    %184 = arith.truncf %183 : vector<2x8x8xf32> to vector<2x8x8xbf16>
    %185 = vector.extract_strided_slice %180 {offsets = [0, 0, 0], sizes = [2, 8, 8], strides = [1, 1, 1]} : vector<2x8x32xf32> to vector<2x8x8xf32>
    %186 = arith.truncf %185 : vector<2x8x8xf32> to vector<2x8x8xbf16>
    %187 = vector.extract_strided_slice %181 {offsets = [0, 0, 0], sizes = [2, 8, 8], strides = [1, 1, 1]} : vector<2x8x32xf32> to vector<2x8x8xf32>
    %188 = arith.truncf %187 : vector<2x8x8xf32> to vector<2x8x8xbf16>
    "tpu.trace_start"() <{level = 10 : i32, message = "bqd,bkd->bqk"}> : () -> ()
    %cst_83 = arith.constant dense<0.000000e+00> : vector<2x8x8xf32>
    %189 = tpu.matmul %184, %186, %cst_83 {dimension_numbers = #tpu.dot_dimension_numbers<[2], [2], [1], [1], [0, 0, 0, 1, 1, 1], [0], [0]>} : vector<2x8x8xbf16>, vector<2x8x8xbf16>, vector<2x8x8xf32> -> vector<2x8x8xf32>
    "tpu.trace_stop"() : () -> ()
    %cst_84 = arith.constant 0.353553385 : f32
    %190 = vector.broadcast %cst_84 : f32 to vector<2x8x8xf32>
    %191 = arith.mulf %189, %190 : vector<2x8x8xf32>
    %192 = arith.addf %191, %3 : vector<2x8x8xf32>
    %cst_85 = arith.constant dense<0xFF800000> : vector<2x8xf32>
    %193 = vector.multi_reduction <maximumf>, %192, %cst_85 [2] : vector<2x8x8xf32> to vector<2x8xf32>
    %194 = vector.shape_cast %193 : vector<2x8xf32> to vector<2x8x1xf32>
    %195 = vector.broadcast %194 : vector<2x8x1xf32> to vector<2x8x8xf32>
    %196 = arith.subf %192, %195 : vector<2x8x8xf32>
    %197 = math.exp %196 : vector<2x8x8xf32>
    %cst_86 = arith.constant dense<0.000000e+00> : vector<2x8xf32>
    %198 = vector.multi_reduction <add>, %197, %cst_86 [2] : vector<2x8x8xf32> to vector<2x8xf32>
    %199 = vector.shape_cast %198 : vector<2x8xf32> to vector<2x8x1xf32>
    %200 = tpu.reciprocal %199 {approx = true} : vector<2x8x1xf32> -> vector<2x8x1xf32>
    %201 = vector.broadcast %200 : vector<2x8x1xf32> to vector<2x8x8xf32>
    %202 = arith.mulf %197, %201 : vector<2x8x8xf32>
    %203 = arith.truncf %202 : vector<2x8x8xf32> to vector<2x8x8xbf16>
    "tpu.trace_start"() <{level = 10 : i32, message = "bqk,bkd->bqd"}> : () -> ()
    %cst_87 = arith.constant dense<0.000000e+00> : vector<2x8x8xf32>
    %204 = tpu.matmul %203, %188, %cst_87 {dimension_numbers = #tpu.dot_dimension_numbers<[2], [1], [1], [2], [0, 0, 0, 1, 1, 2], [0], [0]>} : vector<2x8x8xbf16>, vector<2x8x8xbf16>, vector<2x8x8xf32> -> vector<2x8x8xf32>
    "tpu.trace_stop"() : () -> ()
    %205 = vector.shape_cast %204 : vector<2x8x8xf32> to vector<16x8xf32>
    %206 = arith.truncf %205 : vector<16x8xf32> to vector<16x8xbf16>
    %207 = vector.extract_strided_slice %168 {offsets = [0, 0, 0], sizes = [1, 8, 32], strides = [1, 1, 1]} : vector<4x8x32xbf16> to vector<1x8x32xbf16>
    %208 = vector.shape_cast %207 : vector<1x8x32xbf16> to vector<8x32xbf16>
    %cst_88 = arith.constant dense<0.000000e+00> : vector<16x32xf32>
    %209 = tpu.matmul %206, %208, %cst_88 {dimension_numbers = #tpu.dot_dimension_numbers<[1], [0], [0], [1], [0, 0, 1, 1], [], []>} : vector<16x8xbf16>, vector<8x32xbf16>, vector<16x32xf32> -> vector<16x32xf32>
    %210 = arith.addf %182, %209 : vector<16x32xf32>
    %211 = vector.extract_strided_slice %179 {offsets = [0, 0, 8], sizes = [2, 8, 8], strides = [1, 1, 1]} : vector<2x8x32xf32> to vector<2x8x8xf32>
    %212 = arith.truncf %211 : vector<2x8x8xf32> to vector<2x8x8xbf16>
    %213 = vector.extract_strided_slice %180 {offsets = [0, 0, 8], sizes = [2, 8, 8], strides = [1, 1, 1]} : vector<2x8x32xf32> to vector<2x8x8xf32>
    %214 = arith.truncf %213 : vector<2x8x8xf32> to vector<2x8x8xbf16>
    %215 = vector.extract_strided_slice %181 {offsets = [0, 0, 8], sizes = [2, 8, 8], strides = [1, 1, 1]} : vector<2x8x32xf32> to vector<2x8x8xf32>
    %216 = arith.truncf %215 : vector<2x8x8xf32> to vector<2x8x8xbf16>
    "tpu.trace_start"() <{level = 10 : i32, message = "bqd,bkd->bqk"}> : () -> ()
    %cst_89 = arith.constant dense<0.000000e+00> : vector<2x8x8xf32>
    %217 = tpu.matmul %212, %214, %cst_89 {dimension_numbers = #tpu.dot_dimension_numbers<[2], [2], [1], [1], [0, 0, 0, 1, 1, 1], [0], [0]>} : vector<2x8x8xbf16>, vector<2x8x8xbf16>, vector<2x8x8xf32> -> vector<2x8x8xf32>
    "tpu.trace_stop"() : () -> ()
    %cst_90 = arith.constant 0.353553385 : f32
    %218 = vector.broadcast %cst_90 : f32 to vector<2x8x8xf32>
    %219 = arith.mulf %217, %218 : vector<2x8x8xf32>
    %220 = arith.addf %219, %3 : vector<2x8x8xf32>
    %cst_91 = arith.constant dense<0xFF800000> : vector<2x8xf32>
    %221 = vector.multi_reduction <maximumf>, %220, %cst_91 [2] : vector<2x8x8xf32> to vector<2x8xf32>
    %222 = vector.shape_cast %221 : vector<2x8xf32> to vector<2x8x1xf32>
    %223 = vector.broadcast %222 : vector<2x8x1xf32> to vector<2x8x8xf32>
    %224 = arith.subf %220, %223 : vector<2x8x8xf32>
    %225 = math.exp %224 : vector<2x8x8xf32>
    %cst_92 = arith.constant dense<0.000000e+00> : vector<2x8xf32>
    %226 = vector.multi_reduction <add>, %225, %cst_92 [2] : vector<2x8x8xf32> to vector<2x8xf32>
    %227 = vector.shape_cast %226 : vector<2x8xf32> to vector<2x8x1xf32>
    %228 = tpu.reciprocal %227 {approx = true} : vector<2x8x1xf32> -> vector<2x8x1xf32>
    %229 = vector.broadcast %228 : vector<2x8x1xf32> to vector<2x8x8xf32>
    %230 = arith.mulf %225, %229 : vector<2x8x8xf32>
    %231 = arith.truncf %230 : vector<2x8x8xf32> to vector<2x8x8xbf16>
    "tpu.trace_start"() <{level = 10 : i32, message = "bqk,bkd->bqd"}> : () -> ()
    %cst_93 = arith.constant dense<0.000000e+00> : vector<2x8x8xf32>
    %232 = tpu.matmul %231, %216, %cst_93 {dimension_numbers = #tpu.dot_dimension_numbers<[2], [1], [1], [2], [0, 0, 0, 1, 1, 2], [0], [0]>} : vector<2x8x8xbf16>, vector<2x8x8xbf16>, vector<2x8x8xf32> -> vector<2x8x8xf32>
    "tpu.trace_stop"() : () -> ()
    %233 = vector.shape_cast %232 : vector<2x8x8xf32> to vector<16x8xf32>
    %234 = arith.truncf %233 : vector<16x8xf32> to vector<16x8xbf16>
    %235 = vector.extract_strided_slice %168 {offsets = [1, 0, 0], sizes = [1, 8, 32], strides = [1, 1, 1]} : vector<4x8x32xbf16> to vector<1x8x32xbf16>
    %236 = vector.shape_cast %235 : vector<1x8x32xbf16> to vector<8x32xbf16>
    %cst_94 = arith.constant dense<0.000000e+00> : vector<16x32xf32>
    %237 = tpu.matmul %234, %236, %cst_94 {dimension_numbers = #tpu.dot_dimension_numbers<[1], [0], [0], [1], [0, 0, 1, 1], [], []>} : vector<16x8xbf16>, vector<8x32xbf16>, vector<16x32xf32> -> vector<16x32xf32>
    %238 = arith.addf %210, %237 : vector<16x32xf32>
    %239 = vector.extract_strided_slice %179 {offsets = [0, 0, 16], sizes = [2, 8, 8], strides = [1, 1, 1]} : vector<2x8x32xf32> to vector<2x8x8xf32>
    %240 = arith.truncf %239 : vector<2x8x8xf32> to vector<2x8x8xbf16>
    %241 = vector.extract_strided_slice %180 {offsets = [0, 0, 16], sizes = [2, 8, 8], strides = [1, 1, 1]} : vector<2x8x32xf32> to vector<2x8x8xf32>
    %242 = arith.truncf %241 : vector<2x8x8xf32> to vector<2x8x8xbf16>
    %243 = vector.extract_strided_slice %181 {offsets = [0, 0, 16], sizes = [2, 8, 8], strides = [1, 1, 1]} : vector<2x8x32xf32> to vector<2x8x8xf32>
    %244 = arith.truncf %243 : vector<2x8x8xf32> to vector<2x8x8xbf16>
    "tpu.trace_start"() <{level = 10 : i32, message = "bqd,bkd->bqk"}> : () -> ()
    %cst_95 = arith.constant dense<0.000000e+00> : vector<2x8x8xf32>
    %245 = tpu.matmul %240, %242, %cst_95 {dimension_numbers = #tpu.dot_dimension_numbers<[2], [2], [1], [1], [0, 0, 0, 1, 1, 1], [0], [0]>} : vector<2x8x8xbf16>, vector<2x8x8xbf16>, vector<2x8x8xf32> -> vector<2x8x8xf32>
    "tpu.trace_stop"() : () -> ()
    %cst_96 = arith.constant 0.353553385 : f32
    %246 = vector.broadcast %cst_96 : f32 to vector<2x8x8xf32>
    %247 = arith.mulf %245, %246 : vector<2x8x8xf32>
    %248 = arith.addf %247, %3 : vector<2x8x8xf32>
    %cst_97 = arith.constant dense<0xFF800000> : vector<2x8xf32>
    %249 = vector.multi_reduction <maximumf>, %248, %cst_97 [2] : vector<2x8x8xf32> to vector<2x8xf32>
    %250 = vector.shape_cast %249 : vector<2x8xf32> to vector<2x8x1xf32>
    %251 = vector.broadcast %250 : vector<2x8x1xf32> to vector<2x8x8xf32>
    %252 = arith.subf %248, %251 : vector<2x8x8xf32>
    %253 = math.exp %252 : vector<2x8x8xf32>
    %cst_98 = arith.constant dense<0.000000e+00> : vector<2x8xf32>
    %254 = vector.multi_reduction <add>, %253, %cst_98 [2] : vector<2x8x8xf32> to vector<2x8xf32>
    %255 = vector.shape_cast %254 : vector<2x8xf32> to vector<2x8x1xf32>
    %256 = tpu.reciprocal %255 {approx = true} : vector<2x8x1xf32> -> vector<2x8x1xf32>
    %257 = vector.broadcast %256 : vector<2x8x1xf32> to vector<2x8x8xf32>
    %258 = arith.mulf %253, %257 : vector<2x8x8xf32>
    %259 = arith.truncf %258 : vector<2x8x8xf32> to vector<2x8x8xbf16>
    "tpu.trace_start"() <{level = 10 : i32, message = "bqk,bkd->bqd"}> : () -> ()
    %cst_99 = arith.constant dense<0.000000e+00> : vector<2x8x8xf32>
    %260 = tpu.matmul %259, %244, %cst_99 {dimension_numbers = #tpu.dot_dimension_numbers<[2], [1], [1], [2], [0, 0, 0, 1, 1, 2], [0], [0]>} : vector<2x8x8xbf16>, vector<2x8x8xbf16>, vector<2x8x8xf32> -> vector<2x8x8xf32>
    "tpu.trace_stop"() : () -> ()
    %261 = vector.shape_cast %260 : vector<2x8x8xf32> to vector<16x8xf32>
    %262 = arith.truncf %261 : vector<16x8xf32> to vector<16x8xbf16>
    %263 = vector.extract_strided_slice %168 {offsets = [2, 0, 0], sizes = [1, 8, 32], strides = [1, 1, 1]} : vector<4x8x32xbf16> to vector<1x8x32xbf16>
    %264 = vector.shape_cast %263 : vector<1x8x32xbf16> to vector<8x32xbf16>
    %cst_100 = arith.constant dense<0.000000e+00> : vector<16x32xf32>
    %265 = tpu.matmul %262, %264, %cst_100 {dimension_numbers = #tpu.dot_dimension_numbers<[1], [0], [0], [1], [0, 0, 1, 1], [], []>} : vector<16x8xbf16>, vector<8x32xbf16>, vector<16x32xf32> -> vector<16x32xf32>
    %266 = arith.addf %238, %265 : vector<16x32xf32>
    %267 = vector.extract_strided_slice %179 {offsets = [0, 0, 24], sizes = [2, 8, 8], strides = [1, 1, 1]} : vector<2x8x32xf32> to vector<2x8x8xf32>
    %268 = arith.truncf %267 : vector<2x8x8xf32> to vector<2x8x8xbf16>
    %269 = vector.extract_strided_slice %180 {offsets = [0, 0, 24], sizes = [2, 8, 8], strides = [1, 1, 1]} : vector<2x8x32xf32> to vector<2x8x8xf32>
    %270 = arith.truncf %269 : vector<2x8x8xf32> to vector<2x8x8xbf16>
    %271 = vector.extract_strided_slice %181 {offsets = [0, 0, 24], sizes = [2, 8, 8], strides = [1, 1, 1]} : vector<2x8x32xf32> to vector<2x8x8xf32>
    %272 = arith.truncf %271 : vector<2x8x8xf32> to vector<2x8x8xbf16>
    "tpu.trace_start"() <{level = 10 : i32, message = "bqd,bkd->bqk"}> : () -> ()
    %cst_101 = arith.constant dense<0.000000e+00> : vector<2x8x8xf32>
    %273 = tpu.matmul %268, %270, %cst_101 {dimension_numbers = #tpu.dot_dimension_numbers<[2], [2], [1], [1], [0, 0, 0, 1, 1, 1], [0], [0]>} : vector<2x8x8xbf16>, vector<2x8x8xbf16>, vector<2x8x8xf32> -> vector<2x8x8xf32>
    "tpu.trace_stop"() : () -> ()
    %cst_102 = arith.constant 0.353553385 : f32
    %274 = vector.broadcast %cst_102 : f32 to vector<2x8x8xf32>
    %275 = arith.mulf %273, %274 : vector<2x8x8xf32>
    %276 = arith.addf %275, %3 : vector<2x8x8xf32>
    %cst_103 = arith.constant dense<0xFF800000> : vector<2x8xf32>
    %277 = vector.multi_reduction <maximumf>, %276, %cst_103 [2] : vector<2x8x8xf32> to vector<2x8xf32>
    %278 = vector.shape_cast %277 : vector<2x8xf32> to vector<2x8x1xf32>
    %279 = vector.broadcast %278 : vector<2x8x1xf32> to vector<2x8x8xf32>
    %280 = arith.subf %276, %279 : vector<2x8x8xf32>
    %281 = math.exp %280 : vector<2x8x8xf32>
    %cst_104 = arith.constant dense<0.000000e+00> : vector<2x8xf32>
    %282 = vector.multi_reduction <add>, %281, %cst_104 [2] : vector<2x8x8xf32> to vector<2x8xf32>
    %283 = vector.shape_cast %282 : vector<2x8xf32> to vector<2x8x1xf32>
    %284 = tpu.reciprocal %283 {approx = true} : vector<2x8x1xf32> -> vector<2x8x1xf32>
    %285 = vector.broadcast %284 : vector<2x8x1xf32> to vector<2x8x8xf32>
    %286 = arith.mulf %281, %285 : vector<2x8x8xf32>
    %287 = arith.truncf %286 : vector<2x8x8xf32> to vector<2x8x8xbf16>
    "tpu.trace_start"() <{level = 10 : i32, message = "bqk,bkd->bqd"}> : () -> ()
    %cst_105 = arith.constant dense<0.000000e+00> : vector<2x8x8xf32>
    %288 = tpu.matmul %287, %272, %cst_105 {dimension_numbers = #tpu.dot_dimension_numbers<[2], [1], [1], [2], [0, 0, 0, 1, 1, 2], [0], [0]>} : vector<2x8x8xbf16>, vector<2x8x8xbf16>, vector<2x8x8xf32> -> vector<2x8x8xf32>
    "tpu.trace_stop"() : () -> ()
    %289 = vector.shape_cast %288 : vector<2x8x8xf32> to vector<16x8xf32>
    %290 = arith.truncf %289 : vector<16x8xf32> to vector<16x8xbf16>
    %291 = vector.extract_strided_slice %168 {offsets = [3, 0, 0], sizes = [1, 8, 32], strides = [1, 1, 1]} : vector<4x8x32xbf16> to vector<1x8x32xbf16>
    %292 = vector.shape_cast %291 : vector<1x8x32xbf16> to vector<8x32xbf16>
    %cst_106 = arith.constant dense<0.000000e+00> : vector<16x32xf32>
    %293 = tpu.matmul %290, %292, %cst_106 {dimension_numbers = #tpu.dot_dimension_numbers<[1], [0], [0], [1], [0, 0, 1, 1], [], []>} : vector<16x8xbf16>, vector<8x32xbf16>, vector<16x32xf32> -> vector<16x32xf32>
    %294 = arith.addf %266, %293 : vector<16x32xf32>
    %295 = arith.addf %294, %160 : vector<16x32xf32>
    %cst_107 = arith.constant dense<0.000000e+00> : vector<16xf32>
    %296 = vector.multi_reduction <add>, %295, %cst_107 [1] : vector<16x32xf32> to vector<16xf32>
    %297 = vector.shape_cast %296 : vector<16xf32> to vector<16x1xf32>
    %cst_108 = arith.constant 3.200000e+01 : f32
    %298 = vector.broadcast %cst_108 : f32 to vector<16x1xf32>
    %299 = arith.divf %297, %298 : vector<16x1xf32>
    %300 = vector.broadcast %299 : vector<16x1xf32> to vector<16x32xf32>
    %301 = arith.subf %295, %300 : vector<16x32xf32>
    %302 = arith.mulf %301, %301 : vector<16x32xf32>
    %cst_109 = arith.constant dense<0.000000e+00> : vector<16xf32>
    %303 = vector.multi_reduction <add>, %302, %cst_109 [1] : vector<16x32xf32> to vector<16xf32>
    %304 = vector.shape_cast %303 : vector<16xf32> to vector<16x1xf32>
    %cst_110 = arith.constant 3.200000e+01 : f32
    %305 = vector.broadcast %cst_110 : f32 to vector<16x1xf32>
    %306 = arith.divf %304, %305 : vector<16x1xf32>
    %307 = vector.broadcast %299 : vector<16x1xf32> to vector<16x32xf32>
    %308 = arith.subf %295, %307 : vector<16x32xf32>
    %cst_111 = arith.constant 9.99999974E-6 : f32
    %309 = vector.broadcast %cst_111 : f32 to vector<16x1xf32>
    %310 = arith.addf %306, %309 : vector<16x1xf32>
    %311 = math.rsqrt %310 : vector<16x1xf32>
    %312 = vector.broadcast %311 : vector<16x1xf32> to vector<16x32xf32>
    %313 = arith.mulf %308, %312 : vector<16x32xf32>
    %314 = vector.broadcast %170 : vector<1x32xf32> to vector<16x32xf32>
    %315 = arith.mulf %313, %314 : vector<16x32xf32>
    %316 = vector.broadcast %172 : vector<1x32xf32> to vector<16x32xf32>
    %317 = arith.addf %315, %316 : vector<16x32xf32>
    %318 = arith.truncf %317 : vector<16x32xf32> to vector<16x32xbf16>
    %c0_112 = arith.constant 0 : index
    %c0_113 = arith.constant 0 : index
    %c0_114 = arith.constant 0 : index
    %319 = vector.load %arg17[%c0_112, %c0_113, %c0_114] : memref<2x32x64xbf16, #tpu.memory_space<vmem>>, vector<1x32x64xbf16>
    %320 = vector.shape_cast %319 : vector<1x32x64xbf16> to vector<32x64xbf16>
    %cst_115 = arith.constant dense<0.000000e+00> : vector<16x64xf32>
    %321 = tpu.matmul %318, %320, %cst_115 {dimension_numbers = #tpu.dot_dimension_numbers<[1], [0], [0], [1], [0, 0, 1, 1], [], []>} : vector<16x32xbf16>, vector<32x64xbf16>, vector<16x64xf32> -> vector<16x64xf32>
    %cst_116 = arith.constant 0.000000e+00 : f32
    %322 = vector.broadcast %cst_116 : f32 to vector<16x64xf32>
    %323 = arith.maximumf %321, %322 : vector<16x64xf32>
    %324 = arith.truncf %323 : vector<16x64xf32> to vector<16x64xbf16>
    %c0_117 = arith.constant 0 : index
    %c0_118 = arith.constant 0 : index
    %c0_119 = arith.constant 0 : index
    %325 = vector.load %arg18[%c0_117, %c0_118, %c0_119] : memref<2x64x32xbf16, #tpu.memory_space<vmem>>, vector<1x64x32xbf16>
    %326 = vector.shape_cast %325 : vector<1x64x32xbf16> to vector<64x32xbf16>
    %cst_120 = arith.constant dense<0.000000e+00> : vector<16x32xf32>
    %327 = tpu.matmul %324, %326, %cst_120 {dimension_numbers = #tpu.dot_dimension_numbers<[1], [0], [0], [1], [0, 0, 1, 1], [], []>} : vector<16x64xbf16>, vector<64x32xbf16>, vector<16x32xf32> -> vector<16x32xf32>
    %328 = arith.addf %327, %317 : vector<16x32xf32>
    %c0_121 = arith.constant 0 : index
    %c0_122 = arith.constant 0 : index
    %c0_123 = arith.constant 0 : index
    %329 = vector.load %arg19[%c0_121, %c0_122, %c0_123] : memref<2x1x32xf32, #tpu.memory_space<vmem>>, vector<1x1x32xf32>
    %330 = vector.shape_cast %329 : vector<1x1x32xf32> to vector<1x32xf32>
    %c0_124 = arith.constant 0 : index
    %c0_125 = arith.constant 0 : index
    %c0_126 = arith.constant 0 : index
    %331 = vector.load %arg20[%c0_124, %c0_125, %c0_126] : memref<2x1x32xf32, #tpu.memory_space<vmem>>, vector<1x1x32xf32>
    %332 = vector.shape_cast %331 : vector<1x1x32xf32> to vector<1x32xf32>
    %cst_127 = arith.constant dense<0.000000e+00> : vector<16xf32>
    %333 = vector.multi_reduction <add>, %328, %cst_127 [1] : vector<16x32xf32> to vector<16xf32>
    %334 = vector.shape_cast %333 : vector<16xf32> to vector<16x1xf32>
    %cst_128 = arith.constant 3.200000e+01 : f32
    %335 = vector.broadcast %cst_128 : f32 to vector<16x1xf32>
    %336 = arith.divf %334, %335 : vector<16x1xf32>
    %337 = vector.broadcast %336 : vector<16x1xf32> to vector<16x32xf32>
    %338 = arith.subf %328, %337 : vector<16x32xf32>
    %339 = arith.mulf %338, %338 : vector<16x32xf32>
    %cst_129 = arith.constant dense<0.000000e+00> : vector<16xf32>
    %340 = vector.multi_reduction <add>, %339, %cst_129 [1] : vector<16x32xf32> to vector<16xf32>
    %341 = vector.shape_cast %340 : vector<16xf32> to vector<16x1xf32>
    %cst_130 = arith.constant 3.200000e+01 : f32
    %342 = vector.broadcast %cst_130 : f32 to vector<16x1xf32>
    %343 = arith.divf %341, %342 : vector<16x1xf32>
    %344 = vector.broadcast %336 : vector<16x1xf32> to vector<16x32xf32>
    %345 = arith.subf %328, %344 : vector<16x32xf32>
    %cst_131 = arith.constant 9.99999974E-6 : f32
    %346 = vector.broadcast %cst_131 : f32 to vector<16x1xf32>
    %347 = arith.addf %343, %346 : vector<16x1xf32>
    %348 = math.rsqrt %347 : vector<16x1xf32>
    %349 = vector.broadcast %348 : vector<16x1xf32> to vector<16x32xf32>
    %350 = arith.mulf %345, %349 : vector<16x32xf32>
    %351 = vector.broadcast %330 : vector<1x32xf32> to vector<16x32xf32>
    %352 = arith.mulf %350, %351 : vector<16x32xf32>
    %353 = vector.broadcast %332 : vector<1x32xf32> to vector<16x32xf32>
    %354 = arith.addf %352, %353 : vector<16x32xf32>
    %c1 = arith.constant 1 : index
    %c0_132 = arith.constant 0 : index
    %c0_133 = arith.constant 0 : index
    %355 = vector.load %arg5[%c1, %c0_132, %c0_133] : memref<2x32x32xbf16, #tpu.memory_space<vmem>>, vector<1x32x32xbf16>
    %356 = vector.shape_cast %355 : vector<1x32x32xbf16> to vector<32x32xbf16>
    %c1_134 = arith.constant 1 : index
    %c0_135 = arith.constant 0 : index
    %c0_136 = arith.constant 0 : index
    %357 = vector.load %arg6[%c1_134, %c0_135, %c0_136] : memref<2x32x32xbf16, #tpu.memory_space<vmem>>, vector<1x32x32xbf16>
    %358 = vector.shape_cast %357 : vector<1x32x32xbf16> to vector<32x32xbf16>
    %c1_137 = arith.constant 1 : index
    %c0_138 = arith.constant 0 : index
    %c0_139 = arith.constant 0 : index
    %359 = vector.load %arg7[%c1_137, %c0_138, %c0_139] : memref<2x32x32xbf16, #tpu.memory_space<vmem>>, vector<1x32x32xbf16>
    %360 = vector.shape_cast %359 : vector<1x32x32xbf16> to vector<32x32xbf16>
    %c1_140 = arith.constant 1 : index
    %c0_141 = arith.constant 0 : index
    %c0_142 = arith.constant 0 : index
    %c0_143 = arith.constant 0 : index
    %361 = vector.load %arg8[%c1_140, %c0_141, %c0_142, %c0_143] : memref<2x4x8x32xbf16, #tpu.memory_space<vmem>>, vector<1x4x8x32xbf16>
    %362 = vector.shape_cast %361 : vector<1x4x8x32xbf16> to vector<4x8x32xbf16>
    %c1_144 = arith.constant 1 : index
    %c0_145 = arith.constant 0 : index
    %c0_146 = arith.constant 0 : index
    %363 = vector.load %arg9[%c1_144, %c0_145, %c0_146] : memref<2x1x32xf32, #tpu.memory_space<vmem>>, vector<1x1x32xf32>
    %364 = vector.shape_cast %363 : vector<1x1x32xf32> to vector<1x32xf32>
    %c1_147 = arith.constant 1 : index
    %c0_148 = arith.constant 0 : index
    %c0_149 = arith.constant 0 : index
    %365 = vector.load %arg10[%c1_147, %c0_148, %c0_149] : memref<2x1x32xf32, #tpu.memory_space<vmem>>, vector<1x1x32xf32>
    %366 = vector.shape_cast %365 : vector<1x1x32xf32> to vector<1x32xf32>
    %367 = arith.truncf %354 : vector<16x32xf32> to vector<16x32xbf16>
    %cst_150 = arith.constant dense<0.000000e+00> : vector<16x32xf32>
    %368 = tpu.matmul %367, %356, %cst_150 {dimension_numbers = #tpu.dot_dimension_numbers<[1], [0], [0], [1], [0, 0, 1, 1], [], []>} : vector<16x32xbf16>, vector<32x32xbf16>, vector<16x32xf32> -> vector<16x32xf32>
    %369 = arith.truncf %354 : vector<16x32xf32> to vector<16x32xbf16>
    %cst_151 = arith.constant dense<0.000000e+00> : vector<16x32xf32>
    %370 = tpu.matmul %369, %358, %cst_151 {dimension_numbers = #tpu.dot_dimension_numbers<[1], [0], [0], [1], [0, 0, 1, 1], [], []>} : vector<16x32xbf16>, vector<32x32xbf16>, vector<16x32xf32> -> vector<16x32xf32>
    %371 = arith.truncf %354 : vector<16x32xf32> to vector<16x32xbf16>
    %cst_152 = arith.constant dense<0.000000e+00> : vector<16x32xf32>
    %372 = tpu.matmul %371, %360, %cst_152 {dimension_numbers = #tpu.dot_dimension_numbers<[1], [0], [0], [1], [0, 0, 1, 1], [], []>} : vector<16x32xbf16>, vector<32x32xbf16>, vector<16x32xf32> -> vector<16x32xf32>
    %373 = vector.shape_cast %368 : vector<16x32xf32> to vector<2x8x32xf32>
    %374 = vector.shape_cast %370 : vector<16x32xf32> to vector<2x8x32xf32>
    %375 = vector.shape_cast %372 : vector<16x32xf32> to vector<2x8x32xf32>
    %cst_153 = arith.constant 0.000000e+00 : f32
    %376 = vector.broadcast %cst_153 : f32 to vector<16x32xf32>
    %377 = vector.extract_strided_slice %373 {offsets = [0, 0, 0], sizes = [2, 8, 8], strides = [1, 1, 1]} : vector<2x8x32xf32> to vector<2x8x8xf32>
    %378 = arith.truncf %377 : vector<2x8x8xf32> to vector<2x8x8xbf16>
    %379 = vector.extract_strided_slice %374 {offsets = [0, 0, 0], sizes = [2, 8, 8], strides = [1, 1, 1]} : vector<2x8x32xf32> to vector<2x8x8xf32>
    %380 = arith.truncf %379 : vector<2x8x8xf32> to vector<2x8x8xbf16>
    %381 = vector.extract_strided_slice %375 {offsets = [0, 0, 0], sizes = [2, 8, 8], strides = [1, 1, 1]} : vector<2x8x32xf32> to vector<2x8x8xf32>
    %382 = arith.truncf %381 : vector<2x8x8xf32> to vector<2x8x8xbf16>
    "tpu.trace_start"() <{level = 10 : i32, message = "bqd,bkd->bqk"}> : () -> ()
    %cst_154 = arith.constant dense<0.000000e+00> : vector<2x8x8xf32>
    %383 = tpu.matmul %378, %380, %cst_154 {dimension_numbers = #tpu.dot_dimension_numbers<[2], [2], [1], [1], [0, 0, 0, 1, 1, 1], [0], [0]>} : vector<2x8x8xbf16>, vector<2x8x8xbf16>, vector<2x8x8xf32> -> vector<2x8x8xf32>
    "tpu.trace_stop"() : () -> ()
    %cst_155 = arith.constant 0.353553385 : f32
    %384 = vector.broadcast %cst_155 : f32 to vector<2x8x8xf32>
    %385 = arith.mulf %383, %384 : vector<2x8x8xf32>
    %386 = arith.addf %385, %2 : vector<2x8x8xf32>
    %cst_156 = arith.constant dense<0xFF800000> : vector<2x8xf32>
    %387 = vector.multi_reduction <maximumf>, %386, %cst_156 [2] : vector<2x8x8xf32> to vector<2x8xf32>
    %388 = vector.shape_cast %387 : vector<2x8xf32> to vector<2x8x1xf32>
    %389 = vector.broadcast %388 : vector<2x8x1xf32> to vector<2x8x8xf32>
    %390 = arith.subf %386, %389 : vector<2x8x8xf32>
    %391 = math.exp %390 : vector<2x8x8xf32>
    %cst_157 = arith.constant dense<0.000000e+00> : vector<2x8xf32>
    %392 = vector.multi_reduction <add>, %391, %cst_157 [2] : vector<2x8x8xf32> to vector<2x8xf32>
    %393 = vector.shape_cast %392 : vector<2x8xf32> to vector<2x8x1xf32>
    %394 = tpu.reciprocal %393 {approx = true} : vector<2x8x1xf32> -> vector<2x8x1xf32>
    %395 = vector.broadcast %394 : vector<2x8x1xf32> to vector<2x8x8xf32>
    %396 = arith.mulf %391, %395 : vector<2x8x8xf32>
    %397 = arith.truncf %396 : vector<2x8x8xf32> to vector<2x8x8xbf16>
    "tpu.trace_start"() <{level = 10 : i32, message = "bqk,bkd->bqd"}> : () -> ()
    %cst_158 = arith.constant dense<0.000000e+00> : vector<2x8x8xf32>
    %398 = tpu.matmul %397, %382, %cst_158 {dimension_numbers = #tpu.dot_dimension_numbers<[2], [1], [1], [2], [0, 0, 0, 1, 1, 2], [0], [0]>} : vector<2x8x8xbf16>, vector<2x8x8xbf16>, vector<2x8x8xf32> -> vector<2x8x8xf32>
    "tpu.trace_stop"() : () -> ()
    %399 = vector.shape_cast %398 : vector<2x8x8xf32> to vector<16x8xf32>
    %400 = arith.truncf %399 : vector<16x8xf32> to vector<16x8xbf16>
    %401 = vector.extract_strided_slice %362 {offsets = [0, 0, 0], sizes = [1, 8, 32], strides = [1, 1, 1]} : vector<4x8x32xbf16> to vector<1x8x32xbf16>
    %402 = vector.shape_cast %401 : vector<1x8x32xbf16> to vector<8x32xbf16>
    %cst_159 = arith.constant dense<0.000000e+00> : vector<16x32xf32>
    %403 = tpu.matmul %400, %402, %cst_159 {dimension_numbers = #tpu.dot_dimension_numbers<[1], [0], [0], [1], [0, 0, 1, 1], [], []>} : vector<16x8xbf16>, vector<8x32xbf16>, vector<16x32xf32> -> vector<16x32xf32>
    %404 = arith.addf %376, %403 : vector<16x32xf32>
    %405 = vector.extract_strided_slice %373 {offsets = [0, 0, 8], sizes = [2, 8, 8], strides = [1, 1, 1]} : vector<2x8x32xf32> to vector<2x8x8xf32>
    %406 = arith.truncf %405 : vector<2x8x8xf32> to vector<2x8x8xbf16>
    %407 = vector.extract_strided_slice %374 {offsets = [0, 0, 8], sizes = [2, 8, 8], strides = [1, 1, 1]} : vector<2x8x32xf32> to vector<2x8x8xf32>
    %408 = arith.truncf %407 : vector<2x8x8xf32> to vector<2x8x8xbf16>
    %409 = vector.extract_strided_slice %375 {offsets = [0, 0, 8], sizes = [2, 8, 8], strides = [1, 1, 1]} : vector<2x8x32xf32> to vector<2x8x8xf32>
    %410 = arith.truncf %409 : vector<2x8x8xf32> to vector<2x8x8xbf16>
    "tpu.trace_start"() <{level = 10 : i32, message = "bqd,bkd->bqk"}> : () -> ()
    %cst_160 = arith.constant dense<0.000000e+00> : vector<2x8x8xf32>
    %411 = tpu.matmul %406, %408, %cst_160 {dimension_numbers = #tpu.dot_dimension_numbers<[2], [2], [1], [1], [0, 0, 0, 1, 1, 1], [0], [0]>} : vector<2x8x8xbf16>, vector<2x8x8xbf16>, vector<2x8x8xf32> -> vector<2x8x8xf32>
    "tpu.trace_stop"() : () -> ()
    %cst_161 = arith.constant 0.353553385 : f32
    %412 = vector.broadcast %cst_161 : f32 to vector<2x8x8xf32>
    %413 = arith.mulf %411, %412 : vector<2x8x8xf32>
    %414 = arith.addf %413, %2 : vector<2x8x8xf32>
    %cst_162 = arith.constant dense<0xFF800000> : vector<2x8xf32>
    %415 = vector.multi_reduction <maximumf>, %414, %cst_162 [2] : vector<2x8x8xf32> to vector<2x8xf32>
    %416 = vector.shape_cast %415 : vector<2x8xf32> to vector<2x8x1xf32>
    %417 = vector.broadcast %416 : vector<2x8x1xf32> to vector<2x8x8xf32>
    %418 = arith.subf %414, %417 : vector<2x8x8xf32>
    %419 = math.exp %418 : vector<2x8x8xf32>
    %cst_163 = arith.constant dense<0.000000e+00> : vector<2x8xf32>
    %420 = vector.multi_reduction <add>, %419, %cst_163 [2] : vector<2x8x8xf32> to vector<2x8xf32>
    %421 = vector.shape_cast %420 : vector<2x8xf32> to vector<2x8x1xf32>
    %422 = tpu.reciprocal %421 {approx = true} : vector<2x8x1xf32> -> vector<2x8x1xf32>
    %423 = vector.broadcast %422 : vector<2x8x1xf32> to vector<2x8x8xf32>
    %424 = arith.mulf %419, %423 : vector<2x8x8xf32>
    %425 = arith.truncf %424 : vector<2x8x8xf32> to vector<2x8x8xbf16>
    "tpu.trace_start"() <{level = 10 : i32, message = "bqk,bkd->bqd"}> : () -> ()
    %cst_164 = arith.constant dense<0.000000e+00> : vector<2x8x8xf32>
    %426 = tpu.matmul %425, %410, %cst_164 {dimension_numbers = #tpu.dot_dimension_numbers<[2], [1], [1], [2], [0, 0, 0, 1, 1, 2], [0], [0]>} : vector<2x8x8xbf16>, vector<2x8x8xbf16>, vector<2x8x8xf32> -> vector<2x8x8xf32>
    "tpu.trace_stop"() : () -> ()
    %427 = vector.shape_cast %426 : vector<2x8x8xf32> to vector<16x8xf32>
    %428 = arith.truncf %427 : vector<16x8xf32> to vector<16x8xbf16>
    %429 = vector.extract_strided_slice %362 {offsets = [1, 0, 0], sizes = [1, 8, 32], strides = [1, 1, 1]} : vector<4x8x32xbf16> to vector<1x8x32xbf16>
    %430 = vector.shape_cast %429 : vector<1x8x32xbf16> to vector<8x32xbf16>
    %cst_165 = arith.constant dense<0.000000e+00> : vector<16x32xf32>
    %431 = tpu.matmul %428, %430, %cst_165 {dimension_numbers = #tpu.dot_dimension_numbers<[1], [0], [0], [1], [0, 0, 1, 1], [], []>} : vector<16x8xbf16>, vector<8x32xbf16>, vector<16x32xf32> -> vector<16x32xf32>
    %432 = arith.addf %404, %431 : vector<16x32xf32>
    %433 = vector.extract_strided_slice %373 {offsets = [0, 0, 16], sizes = [2, 8, 8], strides = [1, 1, 1]} : vector<2x8x32xf32> to vector<2x8x8xf32>
    %434 = arith.truncf %433 : vector<2x8x8xf32> to vector<2x8x8xbf16>
    %435 = vector.extract_strided_slice %374 {offsets = [0, 0, 16], sizes = [2, 8, 8], strides = [1, 1, 1]} : vector<2x8x32xf32> to vector<2x8x8xf32>
    %436 = arith.truncf %435 : vector<2x8x8xf32> to vector<2x8x8xbf16>
    %437 = vector.extract_strided_slice %375 {offsets = [0, 0, 16], sizes = [2, 8, 8], strides = [1, 1, 1]} : vector<2x8x32xf32> to vector<2x8x8xf32>
    %438 = arith.truncf %437 : vector<2x8x8xf32> to vector<2x8x8xbf16>
    "tpu.trace_start"() <{level = 10 : i32, message = "bqd,bkd->bqk"}> : () -> ()
    %cst_166 = arith.constant dense<0.000000e+00> : vector<2x8x8xf32>
    %439 = tpu.matmul %434, %436, %cst_166 {dimension_numbers = #tpu.dot_dimension_numbers<[2], [2], [1], [1], [0, 0, 0, 1, 1, 1], [0], [0]>} : vector<2x8x8xbf16>, vector<2x8x8xbf16>, vector<2x8x8xf32> -> vector<2x8x8xf32>
    "tpu.trace_stop"() : () -> ()
    %cst_167 = arith.constant 0.353553385 : f32
    %440 = vector.broadcast %cst_167 : f32 to vector<2x8x8xf32>
    %441 = arith.mulf %439, %440 : vector<2x8x8xf32>
    %442 = arith.addf %441, %2 : vector<2x8x8xf32>
    %cst_168 = arith.constant dense<0xFF800000> : vector<2x8xf32>
    %443 = vector.multi_reduction <maximumf>, %442, %cst_168 [2] : vector<2x8x8xf32> to vector<2x8xf32>
    %444 = vector.shape_cast %443 : vector<2x8xf32> to vector<2x8x1xf32>
    %445 = vector.broadcast %444 : vector<2x8x1xf32> to vector<2x8x8xf32>
    %446 = arith.subf %442, %445 : vector<2x8x8xf32>
    %447 = math.exp %446 : vector<2x8x8xf32>
    %cst_169 = arith.constant dense<0.000000e+00> : vector<2x8xf32>
    %448 = vector.multi_reduction <add>, %447, %cst_169 [2] : vector<2x8x8xf32> to vector<2x8xf32>
    %449 = vector.shape_cast %448 : vector<2x8xf32> to vector<2x8x1xf32>
    %450 = tpu.reciprocal %449 {approx = true} : vector<2x8x1xf32> -> vector<2x8x1xf32>
    %451 = vector.broadcast %450 : vector<2x8x1xf32> to vector<2x8x8xf32>
    %452 = arith.mulf %447, %451 : vector<2x8x8xf32>
    %453 = arith.truncf %452 : vector<2x8x8xf32> to vector<2x8x8xbf16>
    "tpu.trace_start"() <{level = 10 : i32, message = "bqk,bkd->bqd"}> : () -> ()
    %cst_170 = arith.constant dense<0.000000e+00> : vector<2x8x8xf32>
    %454 = tpu.matmul %453, %438, %cst_170 {dimension_numbers = #tpu.dot_dimension_numbers<[2], [1], [1], [2], [0, 0, 0, 1, 1, 2], [0], [0]>} : vector<2x8x8xbf16>, vector<2x8x8xbf16>, vector<2x8x8xf32> -> vector<2x8x8xf32>
    "tpu.trace_stop"() : () -> ()
    %455 = vector.shape_cast %454 : vector<2x8x8xf32> to vector<16x8xf32>
    %456 = arith.truncf %455 : vector<16x8xf32> to vector<16x8xbf16>
    %457 = vector.extract_strided_slice %362 {offsets = [2, 0, 0], sizes = [1, 8, 32], strides = [1, 1, 1]} : vector<4x8x32xbf16> to vector<1x8x32xbf16>
    %458 = vector.shape_cast %457 : vector<1x8x32xbf16> to vector<8x32xbf16>
    %cst_171 = arith.constant dense<0.000000e+00> : vector<16x32xf32>
    %459 = tpu.matmul %456, %458, %cst_171 {dimension_numbers = #tpu.dot_dimension_numbers<[1], [0], [0], [1], [0, 0, 1, 1], [], []>} : vector<16x8xbf16>, vector<8x32xbf16>, vector<16x32xf32> -> vector<16x32xf32>
    %460 = arith.addf %432, %459 : vector<16x32xf32>
    %461 = vector.extract_strided_slice %373 {offsets = [0, 0, 24], sizes = [2, 8, 8], strides = [1, 1, 1]} : vector<2x8x32xf32> to vector<2x8x8xf32>
    %462 = arith.truncf %461 : vector<2x8x8xf32> to vector<2x8x8xbf16>
    %463 = vector.extract_strided_slice %374 {offsets = [0, 0, 24], sizes = [2, 8, 8], strides = [1, 1, 1]} : vector<2x8x32xf32> to vector<2x8x8xf32>
    %464 = arith.truncf %463 : vector<2x8x8xf32> to vector<2x8x8xbf16>
    %465 = vector.extract_strided_slice %375 {offsets = [0, 0, 24], sizes = [2, 8, 8], strides = [1, 1, 1]} : vector<2x8x32xf32> to vector<2x8x8xf32>
    %466 = arith.truncf %465 : vector<2x8x8xf32> to vector<2x8x8xbf16>
    "tpu.trace_start"() <{level = 10 : i32, message = "bqd,bkd->bqk"}> : () -> ()
    %cst_172 = arith.constant dense<0.000000e+00> : vector<2x8x8xf32>
    %467 = tpu.matmul %462, %464, %cst_172 {dimension_numbers = #tpu.dot_dimension_numbers<[2], [2], [1], [1], [0, 0, 0, 1, 1, 1], [0], [0]>} : vector<2x8x8xbf16>, vector<2x8x8xbf16>, vector<2x8x8xf32> -> vector<2x8x8xf32>
    "tpu.trace_stop"() : () -> ()
    %cst_173 = arith.constant 0.353553385 : f32
    %468 = vector.broadcast %cst_173 : f32 to vector<2x8x8xf32>
    %469 = arith.mulf %467, %468 : vector<2x8x8xf32>
    %470 = arith.addf %469, %2 : vector<2x8x8xf32>
    %cst_174 = arith.constant dense<0xFF800000> : vector<2x8xf32>
    %471 = vector.multi_reduction <maximumf>, %470, %cst_174 [2] : vector<2x8x8xf32> to vector<2x8xf32>
    %472 = vector.shape_cast %471 : vector<2x8xf32> to vector<2x8x1xf32>
    %473 = vector.broadcast %472 : vector<2x8x1xf32> to vector<2x8x8xf32>
    %474 = arith.subf %470, %473 : vector<2x8x8xf32>
    %475 = math.exp %474 : vector<2x8x8xf32>
    %cst_175 = arith.constant dense<0.000000e+00> : vector<2x8xf32>
    %476 = vector.multi_reduction <add>, %475, %cst_175 [2] : vector<2x8x8xf32> to vector<2x8xf32>
    %477 = vector.shape_cast %476 : vector<2x8xf32> to vector<2x8x1xf32>
    %478 = tpu.reciprocal %477 {approx = true} : vector<2x8x1xf32> -> vector<2x8x1xf32>
    %479 = vector.broadcast %478 : vector<2x8x1xf32> to vector<2x8x8xf32>
    %480 = arith.mulf %475, %479 : vector<2x8x8xf32>
    %481 = arith.truncf %480 : vector<2x8x8xf32> to vector<2x8x8xbf16>
    "tpu.trace_start"() <{level = 10 : i32, message = "bqk,bkd->bqd"}> : () -> ()
    %cst_176 = arith.constant dense<0.000000e+00> : vector<2x8x8xf32>
    %482 = tpu.matmul %481, %466, %cst_176 {dimension_numbers = #tpu.dot_dimension_numbers<[2], [1], [1], [2], [0, 0, 0, 1, 1, 2], [0], [0]>} : vector<2x8x8xbf16>, vector<2x8x8xbf16>, vector<2x8x8xf32> -> vector<2x8x8xf32>
    "tpu.trace_stop"() : () -> ()
    %483 = vector.shape_cast %482 : vector<2x8x8xf32> to vector<16x8xf32>
    %484 = arith.truncf %483 : vector<16x8xf32> to vector<16x8xbf16>
    %485 = vector.extract_strided_slice %362 {offsets = [3, 0, 0], sizes = [1, 8, 32], strides = [1, 1, 1]} : vector<4x8x32xbf16> to vector<1x8x32xbf16>
    %486 = vector.shape_cast %485 : vector<1x8x32xbf16> to vector<8x32xbf16>
    %cst_177 = arith.constant dense<0.000000e+00> : vector<16x32xf32>
    %487 = tpu.matmul %484, %486, %cst_177 {dimension_numbers = #tpu.dot_dimension_numbers<[1], [0], [0], [1], [0, 0, 1, 1], [], []>} : vector<16x8xbf16>, vector<8x32xbf16>, vector<16x32xf32> -> vector<16x32xf32>
    %488 = arith.addf %460, %487 : vector<16x32xf32>
    %489 = arith.addf %488, %354 : vector<16x32xf32>
    %cst_178 = arith.constant dense<0.000000e+00> : vector<16xf32>
    %490 = vector.multi_reduction <add>, %489, %cst_178 [1] : vector<16x32xf32> to vector<16xf32>
    %491 = vector.shape_cast %490 : vector<16xf32> to vector<16x1xf32>
    %cst_179 = arith.constant 3.200000e+01 : f32
    %492 = vector.broadcast %cst_179 : f32 to vector<16x1xf32>
    %493 = arith.divf %491, %492 : vector<16x1xf32>
    %494 = vector.broadcast %493 : vector<16x1xf32> to vector<16x32xf32>
    %495 = arith.subf %489, %494 : vector<16x32xf32>
    %496 = arith.mulf %495, %495 : vector<16x32xf32>
    %cst_180 = arith.constant dense<0.000000e+00> : vector<16xf32>
    %497 = vector.multi_reduction <add>, %496, %cst_180 [1] : vector<16x32xf32> to vector<16xf32>
    %498 = vector.shape_cast %497 : vector<16xf32> to vector<16x1xf32>
    %cst_181 = arith.constant 3.200000e+01 : f32
    %499 = vector.broadcast %cst_181 : f32 to vector<16x1xf32>
    %500 = arith.divf %498, %499 : vector<16x1xf32>
    %501 = vector.broadcast %493 : vector<16x1xf32> to vector<16x32xf32>
    %502 = arith.subf %489, %501 : vector<16x32xf32>
    %cst_182 = arith.constant 9.99999974E-6 : f32
    %503 = vector.broadcast %cst_182 : f32 to vector<16x1xf32>
    %504 = arith.addf %500, %503 : vector<16x1xf32>
    %505 = math.rsqrt %504 : vector<16x1xf32>
    %506 = vector.broadcast %505 : vector<16x1xf32> to vector<16x32xf32>
    %507 = arith.mulf %502, %506 : vector<16x32xf32>
    %508 = vector.broadcast %364 : vector<1x32xf32> to vector<16x32xf32>
    %509 = arith.mulf %507, %508 : vector<16x32xf32>
    %510 = vector.broadcast %366 : vector<1x32xf32> to vector<16x32xf32>
    %511 = arith.addf %509, %510 : vector<16x32xf32>
    %c1_183 = arith.constant 1 : index
    %c0_184 = arith.constant 0 : index
    %c0_185 = arith.constant 0 : index
    %512 = vector.load %arg11[%c1_183, %c0_184, %c0_185] : memref<2x32x32xbf16, #tpu.memory_space<vmem>>, vector<1x32x32xbf16>
    %513 = vector.shape_cast %512 : vector<1x32x32xbf16> to vector<32x32xbf16>
    %c1_186 = arith.constant 1 : index
    %c0_187 = arith.constant 0 : index
    %c0_188 = arith.constant 0 : index
    %514 = vector.load %arg12[%c1_186, %c0_187, %c0_188] : memref<2x32x32xbf16, #tpu.memory_space<vmem>>, vector<1x32x32xbf16>
    %515 = vector.shape_cast %514 : vector<1x32x32xbf16> to vector<32x32xbf16>
    %c1_189 = arith.constant 1 : index
    %c0_190 = arith.constant 0 : index
    %c0_191 = arith.constant 0 : index
    %516 = vector.load %arg13[%c1_189, %c0_190, %c0_191] : memref<2x32x32xbf16, #tpu.memory_space<vmem>>, vector<1x32x32xbf16>
    %517 = vector.shape_cast %516 : vector<1x32x32xbf16> to vector<32x32xbf16>
    %c1_192 = arith.constant 1 : index
    %c0_193 = arith.constant 0 : index
    %c0_194 = arith.constant 0 : index
    %c0_195 = arith.constant 0 : index
    %518 = vector.load %arg14[%c1_192, %c0_193, %c0_194, %c0_195] : memref<2x4x8x32xbf16, #tpu.memory_space<vmem>>, vector<1x4x8x32xbf16>
    %519 = vector.shape_cast %518 : vector<1x4x8x32xbf16> to vector<4x8x32xbf16>
    %c1_196 = arith.constant 1 : index
    %c0_197 = arith.constant 0 : index
    %c0_198 = arith.constant 0 : index
    %520 = vector.load %arg15[%c1_196, %c0_197, %c0_198] : memref<2x1x32xf32, #tpu.memory_space<vmem>>, vector<1x1x32xf32>
    %521 = vector.shape_cast %520 : vector<1x1x32xf32> to vector<1x32xf32>
    %c1_199 = arith.constant 1 : index
    %c0_200 = arith.constant 0 : index
    %c0_201 = arith.constant 0 : index
    %522 = vector.load %arg16[%c1_199, %c0_200, %c0_201] : memref<2x1x32xf32, #tpu.memory_space<vmem>>, vector<1x1x32xf32>
    %523 = vector.shape_cast %522 : vector<1x1x32xf32> to vector<1x32xf32>
    %524 = arith.truncf %511 : vector<16x32xf32> to vector<16x32xbf16>
    %cst_202 = arith.constant dense<0.000000e+00> : vector<16x32xf32>
    %525 = tpu.matmul %524, %513, %cst_202 {dimension_numbers = #tpu.dot_dimension_numbers<[1], [0], [0], [1], [0, 0, 1, 1], [], []>} : vector<16x32xbf16>, vector<32x32xbf16>, vector<16x32xf32> -> vector<16x32xf32>
    %526 = arith.truncf %1 : vector<16x32xf32> to vector<16x32xbf16>
    %cst_203 = arith.constant dense<0.000000e+00> : vector<16x32xf32>
    %527 = tpu.matmul %526, %515, %cst_203 {dimension_numbers = #tpu.dot_dimension_numbers<[1], [0], [0], [1], [0, 0, 1, 1], [], []>} : vector<16x32xbf16>, vector<32x32xbf16>, vector<16x32xf32> -> vector<16x32xf32>
    %528 = arith.truncf %1 : vector<16x32xf32> to vector<16x32xbf16>
    %cst_204 = arith.constant dense<0.000000e+00> : vector<16x32xf32>
    %529 = tpu.matmul %528, %517, %cst_204 {dimension_numbers = #tpu.dot_dimension_numbers<[1], [0], [0], [1], [0, 0, 1, 1], [], []>} : vector<16x32xbf16>, vector<32x32xbf16>, vector<16x32xf32> -> vector<16x32xf32>
    %530 = vector.shape_cast %525 : vector<16x32xf32> to vector<2x8x32xf32>
    %531 = vector.shape_cast %527 : vector<16x32xf32> to vector<2x8x32xf32>
    %532 = vector.shape_cast %529 : vector<16x32xf32> to vector<2x8x32xf32>
    %cst_205 = arith.constant 0.000000e+00 : f32
    %533 = vector.broadcast %cst_205 : f32 to vector<16x32xf32>
    %534 = vector.extract_strided_slice %530 {offsets = [0, 0, 0], sizes = [2, 8, 8], strides = [1, 1, 1]} : vector<2x8x32xf32> to vector<2x8x8xf32>
    %535 = arith.truncf %534 : vector<2x8x8xf32> to vector<2x8x8xbf16>
    %536 = vector.extract_strided_slice %531 {offsets = [0, 0, 0], sizes = [2, 8, 8], strides = [1, 1, 1]} : vector<2x8x32xf32> to vector<2x8x8xf32>
    %537 = arith.truncf %536 : vector<2x8x8xf32> to vector<2x8x8xbf16>
    %538 = vector.extract_strided_slice %532 {offsets = [0, 0, 0], sizes = [2, 8, 8], strides = [1, 1, 1]} : vector<2x8x32xf32> to vector<2x8x8xf32>
    %539 = arith.truncf %538 : vector<2x8x8xf32> to vector<2x8x8xbf16>
    "tpu.trace_start"() <{level = 10 : i32, message = "bqd,bkd->bqk"}> : () -> ()
    %cst_206 = arith.constant dense<0.000000e+00> : vector<2x8x8xf32>
    %540 = tpu.matmul %535, %537, %cst_206 {dimension_numbers = #tpu.dot_dimension_numbers<[2], [2], [1], [1], [0, 0, 0, 1, 1, 1], [0], [0]>} : vector<2x8x8xbf16>, vector<2x8x8xbf16>, vector<2x8x8xf32> -> vector<2x8x8xf32>
    "tpu.trace_stop"() : () -> ()
    %cst_207 = arith.constant 0.353553385 : f32
    %541 = vector.broadcast %cst_207 : f32 to vector<2x8x8xf32>
    %542 = arith.mulf %540, %541 : vector<2x8x8xf32>
    %543 = arith.addf %542, %3 : vector<2x8x8xf32>
    %cst_208 = arith.constant dense<0xFF800000> : vector<2x8xf32>
    %544 = vector.multi_reduction <maximumf>, %543, %cst_208 [2] : vector<2x8x8xf32> to vector<2x8xf32>
    %545 = vector.shape_cast %544 : vector<2x8xf32> to vector<2x8x1xf32>
    %546 = vector.broadcast %545 : vector<2x8x1xf32> to vector<2x8x8xf32>
    %547 = arith.subf %543, %546 : vector<2x8x8xf32>
    %548 = math.exp %547 : vector<2x8x8xf32>
    %cst_209 = arith.constant dense<0.000000e+00> : vector<2x8xf32>
    %549 = vector.multi_reduction <add>, %548, %cst_209 [2] : vector<2x8x8xf32> to vector<2x8xf32>
    %550 = vector.shape_cast %549 : vector<2x8xf32> to vector<2x8x1xf32>
    %551 = tpu.reciprocal %550 {approx = true} : vector<2x8x1xf32> -> vector<2x8x1xf32>
    %552 = vector.broadcast %551 : vector<2x8x1xf32> to vector<2x8x8xf32>
    %553 = arith.mulf %548, %552 : vector<2x8x8xf32>
    %554 = arith.truncf %553 : vector<2x8x8xf32> to vector<2x8x8xbf16>
    "tpu.trace_start"() <{level = 10 : i32, message = "bqk,bkd->bqd"}> : () -> ()
    %cst_210 = arith.constant dense<0.000000e+00> : vector<2x8x8xf32>
    %555 = tpu.matmul %554, %539, %cst_210 {dimension_numbers = #tpu.dot_dimension_numbers<[2], [1], [1], [2], [0, 0, 0, 1, 1, 2], [0], [0]>} : vector<2x8x8xbf16>, vector<2x8x8xbf16>, vector<2x8x8xf32> -> vector<2x8x8xf32>
    "tpu.trace_stop"() : () -> ()
    %556 = vector.shape_cast %555 : vector<2x8x8xf32> to vector<16x8xf32>
    %557 = arith.truncf %556 : vector<16x8xf32> to vector<16x8xbf16>
    %558 = vector.extract_strided_slice %519 {offsets = [0, 0, 0], sizes = [1, 8, 32], strides = [1, 1, 1]} : vector<4x8x32xbf16> to vector<1x8x32xbf16>
    %559 = vector.shape_cast %558 : vector<1x8x32xbf16> to vector<8x32xbf16>
    %cst_211 = arith.constant dense<0.000000e+00> : vector<16x32xf32>
    %560 = tpu.matmul %557, %559, %cst_211 {dimension_numbers = #tpu.dot_dimension_numbers<[1], [0], [0], [1], [0, 0, 1, 1], [], []>} : vector<16x8xbf16>, vector<8x32xbf16>, vector<16x32xf32> -> vector<16x32xf32>
    %561 = arith.addf %533, %560 : vector<16x32xf32>
    %562 = vector.extract_strided_slice %530 {offsets = [0, 0, 8], sizes = [2, 8, 8], strides = [1, 1, 1]} : vector<2x8x32xf32> to vector<2x8x8xf32>
    %563 = arith.truncf %562 : vector<2x8x8xf32> to vector<2x8x8xbf16>
    %564 = vector.extract_strided_slice %531 {offsets = [0, 0, 8], sizes = [2, 8, 8], strides = [1, 1, 1]} : vector<2x8x32xf32> to vector<2x8x8xf32>
    %565 = arith.truncf %564 : vector<2x8x8xf32> to vector<2x8x8xbf16>
    %566 = vector.extract_strided_slice %532 {offsets = [0, 0, 8], sizes = [2, 8, 8], strides = [1, 1, 1]} : vector<2x8x32xf32> to vector<2x8x8xf32>
    %567 = arith.truncf %566 : vector<2x8x8xf32> to vector<2x8x8xbf16>
    "tpu.trace_start"() <{level = 10 : i32, message = "bqd,bkd->bqk"}> : () -> ()
    %cst_212 = arith.constant dense<0.000000e+00> : vector<2x8x8xf32>
    %568 = tpu.matmul %563, %565, %cst_212 {dimension_numbers = #tpu.dot_dimension_numbers<[2], [2], [1], [1], [0, 0, 0, 1, 1, 1], [0], [0]>} : vector<2x8x8xbf16>, vector<2x8x8xbf16>, vector<2x8x8xf32> -> vector<2x8x8xf32>
    "tpu.trace_stop"() : () -> ()
    %cst_213 = arith.constant 0.353553385 : f32
    %569 = vector.broadcast %cst_213 : f32 to vector<2x8x8xf32>
    %570 = arith.mulf %568, %569 : vector<2x8x8xf32>
    %571 = arith.addf %570, %3 : vector<2x8x8xf32>
    %cst_214 = arith.constant dense<0xFF800000> : vector<2x8xf32>
    %572 = vector.multi_reduction <maximumf>, %571, %cst_214 [2] : vector<2x8x8xf32> to vector<2x8xf32>
    %573 = vector.shape_cast %572 : vector<2x8xf32> to vector<2x8x1xf32>
    %574 = vector.broadcast %573 : vector<2x8x1xf32> to vector<2x8x8xf32>
    %575 = arith.subf %571, %574 : vector<2x8x8xf32>
    %576 = math.exp %575 : vector<2x8x8xf32>
    %cst_215 = arith.constant dense<0.000000e+00> : vector<2x8xf32>
    %577 = vector.multi_reduction <add>, %576, %cst_215 [2] : vector<2x8x8xf32> to vector<2x8xf32>
    %578 = vector.shape_cast %577 : vector<2x8xf32> to vector<2x8x1xf32>
    %579 = tpu.reciprocal %578 {approx = true} : vector<2x8x1xf32> -> vector<2x8x1xf32>
    %580 = vector.broadcast %579 : vector<2x8x1xf32> to vector<2x8x8xf32>
    %581 = arith.mulf %576, %580 : vector<2x8x8xf32>
    %582 = arith.truncf %581 : vector<2x8x8xf32> to vector<2x8x8xbf16>
    "tpu.trace_start"() <{level = 10 : i32, message = "bqk,bkd->bqd"}> : () -> ()
    %cst_216 = arith.constant dense<0.000000e+00> : vector<2x8x8xf32>
    %583 = tpu.matmul %582, %567, %cst_216 {dimension_numbers = #tpu.dot_dimension_numbers<[2], [1], [1], [2], [0, 0, 0, 1, 1, 2], [0], [0]>} : vector<2x8x8xbf16>, vector<2x8x8xbf16>, vector<2x8x8xf32> -> vector<2x8x8xf32>
    "tpu.trace_stop"() : () -> ()
    %584 = vector.shape_cast %583 : vector<2x8x8xf32> to vector<16x8xf32>
    %585 = arith.truncf %584 : vector<16x8xf32> to vector<16x8xbf16>
    %586 = vector.extract_strided_slice %519 {offsets = [1, 0, 0], sizes = [1, 8, 32], strides = [1, 1, 1]} : vector<4x8x32xbf16> to vector<1x8x32xbf16>
    %587 = vector.shape_cast %586 : vector<1x8x32xbf16> to vector<8x32xbf16>
    %cst_217 = arith.constant dense<0.000000e+00> : vector<16x32xf32>
    %588 = tpu.matmul %585, %587, %cst_217 {dimension_numbers = #tpu.dot_dimension_numbers<[1], [0], [0], [1], [0, 0, 1, 1], [], []>} : vector<16x8xbf16>, vector<8x32xbf16>, vector<16x32xf32> -> vector<16x32xf32>
    %589 = arith.addf %561, %588 : vector<16x32xf32>
    %590 = vector.extract_strided_slice %530 {offsets = [0, 0, 16], sizes = [2, 8, 8], strides = [1, 1, 1]} : vector<2x8x32xf32> to vector<2x8x8xf32>
    %591 = arith.truncf %590 : vector<2x8x8xf32> to vector<2x8x8xbf16>
    %592 = vector.extract_strided_slice %531 {offsets = [0, 0, 16], sizes = [2, 8, 8], strides = [1, 1, 1]} : vector<2x8x32xf32> to vector<2x8x8xf32>
    %593 = arith.truncf %592 : vector<2x8x8xf32> to vector<2x8x8xbf16>
    %594 = vector.extract_strided_slice %532 {offsets = [0, 0, 16], sizes = [2, 8, 8], strides = [1, 1, 1]} : vector<2x8x32xf32> to vector<2x8x8xf32>
    %595 = arith.truncf %594 : vector<2x8x8xf32> to vector<2x8x8xbf16>
    "tpu.trace_start"() <{level = 10 : i32, message = "bqd,bkd->bqk"}> : () -> ()
    %cst_218 = arith.constant dense<0.000000e+00> : vector<2x8x8xf32>
    %596 = tpu.matmul %591, %593, %cst_218 {dimension_numbers = #tpu.dot_dimension_numbers<[2], [2], [1], [1], [0, 0, 0, 1, 1, 1], [0], [0]>} : vector<2x8x8xbf16>, vector<2x8x8xbf16>, vector<2x8x8xf32> -> vector<2x8x8xf32>
    "tpu.trace_stop"() : () -> ()
    %cst_219 = arith.constant 0.353553385 : f32
    %597 = vector.broadcast %cst_219 : f32 to vector<2x8x8xf32>
    %598 = arith.mulf %596, %597 : vector<2x8x8xf32>
    %599 = arith.addf %598, %3 : vector<2x8x8xf32>
    %cst_220 = arith.constant dense<0xFF800000> : vector<2x8xf32>
    %600 = vector.multi_reduction <maximumf>, %599, %cst_220 [2] : vector<2x8x8xf32> to vector<2x8xf32>
    %601 = vector.shape_cast %600 : vector<2x8xf32> to vector<2x8x1xf32>
    %602 = vector.broadcast %601 : vector<2x8x1xf32> to vector<2x8x8xf32>
    %603 = arith.subf %599, %602 : vector<2x8x8xf32>
    %604 = math.exp %603 : vector<2x8x8xf32>
    %cst_221 = arith.constant dense<0.000000e+00> : vector<2x8xf32>
    %605 = vector.multi_reduction <add>, %604, %cst_221 [2] : vector<2x8x8xf32> to vector<2x8xf32>
    %606 = vector.shape_cast %605 : vector<2x8xf32> to vector<2x8x1xf32>
    %607 = tpu.reciprocal %606 {approx = true} : vector<2x8x1xf32> -> vector<2x8x1xf32>
    %608 = vector.broadcast %607 : vector<2x8x1xf32> to vector<2x8x8xf32>
    %609 = arith.mulf %604, %608 : vector<2x8x8xf32>
    %610 = arith.truncf %609 : vector<2x8x8xf32> to vector<2x8x8xbf16>
    "tpu.trace_start"() <{level = 10 : i32, message = "bqk,bkd->bqd"}> : () -> ()
    %cst_222 = arith.constant dense<0.000000e+00> : vector<2x8x8xf32>
    %611 = tpu.matmul %610, %595, %cst_222 {dimension_numbers = #tpu.dot_dimension_numbers<[2], [1], [1], [2], [0, 0, 0, 1, 1, 2], [0], [0]>} : vector<2x8x8xbf16>, vector<2x8x8xbf16>, vector<2x8x8xf32> -> vector<2x8x8xf32>
    "tpu.trace_stop"() : () -> ()
    %612 = vector.shape_cast %611 : vector<2x8x8xf32> to vector<16x8xf32>
    %613 = arith.truncf %612 : vector<16x8xf32> to vector<16x8xbf16>
    %614 = vector.extract_strided_slice %519 {offsets = [2, 0, 0], sizes = [1, 8, 32], strides = [1, 1, 1]} : vector<4x8x32xbf16> to vector<1x8x32xbf16>
    %615 = vector.shape_cast %614 : vector<1x8x32xbf16> to vector<8x32xbf16>
    %cst_223 = arith.constant dense<0.000000e+00> : vector<16x32xf32>
    %616 = tpu.matmul %613, %615, %cst_223 {dimension_numbers = #tpu.dot_dimension_numbers<[1], [0], [0], [1], [0, 0, 1, 1], [], []>} : vector<16x8xbf16>, vector<8x32xbf16>, vector<16x32xf32> -> vector<16x32xf32>
    %617 = arith.addf %589, %616 : vector<16x32xf32>
    %618 = vector.extract_strided_slice %530 {offsets = [0, 0, 24], sizes = [2, 8, 8], strides = [1, 1, 1]} : vector<2x8x32xf32> to vector<2x8x8xf32>
    %619 = arith.truncf %618 : vector<2x8x8xf32> to vector<2x8x8xbf16>
    %620 = vector.extract_strided_slice %531 {offsets = [0, 0, 24], sizes = [2, 8, 8], strides = [1, 1, 1]} : vector<2x8x32xf32> to vector<2x8x8xf32>
    %621 = arith.truncf %620 : vector<2x8x8xf32> to vector<2x8x8xbf16>
    %622 = vector.extract_strided_slice %532 {offsets = [0, 0, 24], sizes = [2, 8, 8], strides = [1, 1, 1]} : vector<2x8x32xf32> to vector<2x8x8xf32>
    %623 = arith.truncf %622 : vector<2x8x8xf32> to vector<2x8x8xbf16>
    "tpu.trace_start"() <{level = 10 : i32, message = "bqd,bkd->bqk"}> : () -> ()
    %cst_224 = arith.constant dense<0.000000e+00> : vector<2x8x8xf32>
    %624 = tpu.matmul %619, %621, %cst_224 {dimension_numbers = #tpu.dot_dimension_numbers<[2], [2], [1], [1], [0, 0, 0, 1, 1, 1], [0], [0]>} : vector<2x8x8xbf16>, vector<2x8x8xbf16>, vector<2x8x8xf32> -> vector<2x8x8xf32>
    "tpu.trace_stop"() : () -> ()
    %cst_225 = arith.constant 0.353553385 : f32
    %625 = vector.broadcast %cst_225 : f32 to vector<2x8x8xf32>
    %626 = arith.mulf %624, %625 : vector<2x8x8xf32>
    %627 = arith.addf %626, %3 : vector<2x8x8xf32>
    %cst_226 = arith.constant dense<0xFF800000> : vector<2x8xf32>
    %628 = vector.multi_reduction <maximumf>, %627, %cst_226 [2] : vector<2x8x8xf32> to vector<2x8xf32>
    %629 = vector.shape_cast %628 : vector<2x8xf32> to vector<2x8x1xf32>
    %630 = vector.broadcast %629 : vector<2x8x1xf32> to vector<2x8x8xf32>
    %631 = arith.subf %627, %630 : vector<2x8x8xf32>
    %632 = math.exp %631 : vector<2x8x8xf32>
    %cst_227 = arith.constant dense<0.000000e+00> : vector<2x8xf32>
    %633 = vector.multi_reduction <add>, %632, %cst_227 [2] : vector<2x8x8xf32> to vector<2x8xf32>
    %634 = vector.shape_cast %633 : vector<2x8xf32> to vector<2x8x1xf32>
    %635 = tpu.reciprocal %634 {approx = true} : vector<2x8x1xf32> -> vector<2x8x1xf32>
    %636 = vector.broadcast %635 : vector<2x8x1xf32> to vector<2x8x8xf32>
    %637 = arith.mulf %632, %636 : vector<2x8x8xf32>
    %638 = arith.truncf %637 : vector<2x8x8xf32> to vector<2x8x8xbf16>
    "tpu.trace_start"() <{level = 10 : i32, message = "bqk,bkd->bqd"}> : () -> ()
    %cst_228 = arith.constant dense<0.000000e+00> : vector<2x8x8xf32>
    %639 = tpu.matmul %638, %623, %cst_228 {dimension_numbers = #tpu.dot_dimension_numbers<[2], [1], [1], [2], [0, 0, 0, 1, 1, 2], [0], [0]>} : vector<2x8x8xbf16>, vector<2x8x8xbf16>, vector<2x8x8xf32> -> vector<2x8x8xf32>
    "tpu.trace_stop"() : () -> ()
    %640 = vector.shape_cast %639 : vector<2x8x8xf32> to vector<16x8xf32>
    %641 = arith.truncf %640 : vector<16x8xf32> to vector<16x8xbf16>
    %642 = vector.extract_strided_slice %519 {offsets = [3, 0, 0], sizes = [1, 8, 32], strides = [1, 1, 1]} : vector<4x8x32xbf16> to vector<1x8x32xbf16>
    %643 = vector.shape_cast %642 : vector<1x8x32xbf16> to vector<8x32xbf16>
    %cst_229 = arith.constant dense<0.000000e+00> : vector<16x32xf32>
    %644 = tpu.matmul %641, %643, %cst_229 {dimension_numbers = #tpu.dot_dimension_numbers<[1], [0], [0], [1], [0, 0, 1, 1], [], []>} : vector<16x8xbf16>, vector<8x32xbf16>, vector<16x32xf32> -> vector<16x32xf32>
    %645 = arith.addf %617, %644 : vector<16x32xf32>
    %646 = arith.addf %645, %511 : vector<16x32xf32>
    %cst_230 = arith.constant dense<0.000000e+00> : vector<16xf32>
    %647 = vector.multi_reduction <add>, %646, %cst_230 [1] : vector<16x32xf32> to vector<16xf32>
    %648 = vector.shape_cast %647 : vector<16xf32> to vector<16x1xf32>
    %cst_231 = arith.constant 3.200000e+01 : f32
    %649 = vector.broadcast %cst_231 : f32 to vector<16x1xf32>
    %650 = arith.divf %648, %649 : vector<16x1xf32>
    %651 = vector.broadcast %650 : vector<16x1xf32> to vector<16x32xf32>
    %652 = arith.subf %646, %651 : vector<16x32xf32>
    %653 = arith.mulf %652, %652 : vector<16x32xf32>
    %cst_232 = arith.constant dense<0.000000e+00> : vector<16xf32>
    %654 = vector.multi_reduction <add>, %653, %cst_232 [1] : vector<16x32xf32> to vector<16xf32>
    %655 = vector.shape_cast %654 : vector<16xf32> to vector<16x1xf32>
    %cst_233 = arith.constant 3.200000e+01 : f32
    %656 = vector.broadcast %cst_233 : f32 to vector<16x1xf32>
    %657 = arith.divf %655, %656 : vector<16x1xf32>
    %658 = vector.broadcast %650 : vector<16x1xf32> to vector<16x32xf32>
    %659 = arith.subf %646, %658 : vector<16x32xf32>
    %cst_234 = arith.constant 9.99999974E-6 : f32
    %660 = vector.broadcast %cst_234 : f32 to vector<16x1xf32>
    %661 = arith.addf %657, %660 : vector<16x1xf32>
    %662 = math.rsqrt %661 : vector<16x1xf32>
    %663 = vector.broadcast %662 : vector<16x1xf32> to vector<16x32xf32>
    %664 = arith.mulf %659, %663 : vector<16x32xf32>
    %665 = vector.broadcast %521 : vector<1x32xf32> to vector<16x32xf32>
    %666 = arith.mulf %664, %665 : vector<16x32xf32>
    %667 = vector.broadcast %523 : vector<1x32xf32> to vector<16x32xf32>
    %668 = arith.addf %666, %667 : vector<16x32xf32>
    %669 = arith.truncf %668 : vector<16x32xf32> to vector<16x32xbf16>
    %c1_235 = arith.constant 1 : index
    %c0_236 = arith.constant 0 : index
    %c0_237 = arith.constant 0 : index
    %670 = vector.load %arg17[%c1_235, %c0_236, %c0_237] : memref<2x32x64xbf16, #tpu.memory_space<vmem>>, vector<1x32x64xbf16>
    %671 = vector.shape_cast %670 : vector<1x32x64xbf16> to vector<32x64xbf16>
    %cst_238 = arith.constant dense<0.000000e+00> : vector<16x64xf32>
    %672 = tpu.matmul %669, %671, %cst_238 {dimension_numbers = #tpu.dot_dimension_numbers<[1], [0], [0], [1], [0, 0, 1, 1], [], []>} : vector<16x32xbf16>, vector<32x64xbf16>, vector<16x64xf32> -> vector<16x64xf32>
    %cst_239 = arith.constant 0.000000e+00 : f32
    %673 = vector.broadcast %cst_239 : f32 to vector<16x64xf32>
    %674 = arith.maximumf %672, %673 : vector<16x64xf32>
    %675 = arith.truncf %674 : vector<16x64xf32> to vector<16x64xbf16>
    %c1_240 = arith.constant 1 : index
    %c0_241 = arith.constant 0 : index
    %c0_242 = arith.constant 0 : index
    %676 = vector.load %arg18[%c1_240, %c0_241, %c0_242] : memref<2x64x32xbf16, #tpu.memory_space<vmem>>, vector<1x64x32xbf16>
    %677 = vector.shape_cast %676 : vector<1x64x32xbf16> to vector<64x32xbf16>
    %cst_243 = arith.constant dense<0.000000e+00> : vector<16x32xf32>
    %678 = tpu.matmul %675, %677, %cst_243 {dimension_numbers = #tpu.dot_dimension_numbers<[1], [0], [0], [1], [0, 0, 1, 1], [], []>} : vector<16x64xbf16>, vector<64x32xbf16>, vector<16x32xf32> -> vector<16x32xf32>
    %679 = arith.addf %678, %668 : vector<16x32xf32>
    %c1_244 = arith.constant 1 : index
    %c0_245 = arith.constant 0 : index
    %c0_246 = arith.constant 0 : index
    %680 = vector.load %arg19[%c1_244, %c0_245, %c0_246] : memref<2x1x32xf32, #tpu.memory_space<vmem>>, vector<1x1x32xf32>
    %681 = vector.shape_cast %680 : vector<1x1x32xf32> to vector<1x32xf32>
    %c1_247 = arith.constant 1 : index
    %c0_248 = arith.constant 0 : index
    %c0_249 = arith.constant 0 : index
    %682 = vector.load %arg20[%c1_247, %c0_248, %c0_249] : memref<2x1x32xf32, #tpu.memory_space<vmem>>, vector<1x1x32xf32>
    %683 = vector.shape_cast %682 : vector<1x1x32xf32> to vector<1x32xf32>
    %cst_250 = arith.constant dense<0.000000e+00> : vector<16xf32>
    %684 = vector.multi_reduction <add>, %679, %cst_250 [1] : vector<16x32xf32> to vector<16xf32>
    %685 = vector.shape_cast %684 : vector<16xf32> to vector<16x1xf32>
    %cst_251 = arith.constant 3.200000e+01 : f32
    %686 = vector.broadcast %cst_251 : f32 to vector<16x1xf32>
    %687 = arith.divf %685, %686 : vector<16x1xf32>
    %688 = vector.broadcast %687 : vector<16x1xf32> to vector<16x32xf32>
    %689 = arith.subf %679, %688 : vector<16x32xf32>
    %690 = arith.mulf %689, %689 : vector<16x32xf32>
    %cst_252 = arith.constant dense<0.000000e+00> : vector<16xf32>
    %691 = vector.multi_reduction <add>, %690, %cst_252 [1] : vector<16x32xf32> to vector<16xf32>
    %692 = vector.shape_cast %691 : vector<16xf32> to vector<16x1xf32>
    %cst_253 = arith.constant 3.200000e+01 : f32
    %693 = vector.broadcast %cst_253 : f32 to vector<16x1xf32>
    %694 = arith.divf %692, %693 : vector<16x1xf32>
    %695 = vector.broadcast %687 : vector<16x1xf32> to vector<16x32xf32>
    %696 = arith.subf %679, %695 : vector<16x32xf32>
    %cst_254 = arith.constant 9.99999974E-6 : f32
    %697 = vector.broadcast %cst_254 : f32 to vector<16x1xf32>
    %698 = arith.addf %694, %697 : vector<16x1xf32>
    %699 = math.rsqrt %698 : vector<16x1xf32>
    %700 = vector.broadcast %699 : vector<16x1xf32> to vector<16x32xf32>
    %701 = arith.mulf %696, %700 : vector<16x32xf32>
    %702 = vector.broadcast %681 : vector<1x32xf32> to vector<16x32xf32>
    %703 = arith.mulf %701, %702 : vector<16x32xf32>
    %704 = vector.broadcast %683 : vector<1x32xf32> to vector<16x32xf32>
    %705 = arith.addf %703, %704 : vector<16x32xf32>
    %c0_255 = arith.constant 0 : index
    %c0_256 = arith.constant 0 : index
    %706 = vector.load %arg21[%c0_255, %c0_256] : memref<16x32xf32, #tpu.memory_space<vmem>>, vector<16x32xf32>
    tpu.vector_store %arg21[%c0_255, %c0_256], %705 {strides = array<i32>} : memref<16x32xf32, #tpu.memory_space<vmem>>, vector<16x32xf32>,
    return
  }
  func.func @transform_0(%arg0: i32) -> (i32, i32) {
    %c0_i32 = arith.constant 0 : i32
    %c0_i32_0 = arith.constant 0 : i32
    %c0_i32_1 = arith.constant 0 : i32
    return %c0_i32, %c0_i32_0 : i32, i32
  }
  func.func @transform_1(%arg0: i32) -> (i32, i32) {
    %c0_i32 = arith.constant 0 : i32
    %c0_i32_0 = arith.constant 0 : i32
    %c0_i32_1 = arith.constant 0 : i32
    return %c0_i32, %c0_i32_0 : i32, i32
  }
  func.func @transform_2(%arg0: i32) -> (i32, i32, i32) {
    %c0_i32 = arith.constant 0 : i32
    %c0_i32_0 = arith.constant 0 : i32
    %c0_i32_1 = arith.constant 0 : i32
    %c0_i32_2 = arith.constant 0 : i32
    return %c0_i32, %c0_i32_0, %c0_i32_1 : i32, i32, i32
  }
  func.func @transform_3(%arg0: i32) -> (i32, i32, i32) {
    %c0_i32 = arith.constant 0 : i32
    %c0_i32_0 = arith.constant 0 : i32
    %c0_i32_1 = arith.constant 0 : i32
    %c0_i32_2 = arith.constant 0 : i32
    return %c0_i32, %c0_i32_0, %c0_i32_1 : i32, i32, i32
  }
  func.func @transform_4(%arg0: i32) -> (i32, i32, i32) {
    %c0_i32 = arith.constant 0 : i32
    %c0_i32_0 = arith.constant 0 : i32
    %c0_i32_1 = arith.constant 0 : i32
    %c0_i32_2 = arith.constant 0 : i32
    return %c0_i32, %c0_i32_0, %c0_i32_1 : i32, i32, i32
  }
  func.func @transform_5(%arg0: i32) -> (i32, i32, i32) {
    %c0_i32 = arith.constant 0 : i32
    %c0_i32_0 = arith.constant 0 : i32
    %c0_i32_1 = arith.constant 0 : i32
    %c0_i32_2 = arith.constant 0 : i32
    return %c0_i32, %c0_i32_0, %c0_i32_1 : i32, i32, i32
  }
  func.func @transform_6(%arg0: i32) -> (i32, i32, i32) {
    %c0_i32 = arith.constant 0 : i32
    %c0_i32_0 = arith.constant 0 : i32
    %c0_i32_1 = arith.constant 0 : i32
    %c0_i32_2 = arith.constant 0 : i32
    return %c0_i32, %c0_i32_0, %c0_i32_1 : i32, i32, i32
  }
  func.func @transform_7(%arg0: i32) -> (i32, i32, i32, i32) {
    %c0_i32 = arith.constant 0 : i32
    %c0_i32_0 = arith.constant 0 : i32
    %c0_i32_1 = arith.constant 0 : i32
    %c0_i32_2 = arith.constant 0 : i32
    %c0_i32_3 = arith.constant 0 : i32
    return %c0_i32, %c0_i32_0, %c0_i32_1, %c0_i32_2 : i32, i32, i32, i32
  }
  func.func @transform_8(%arg0: i32) -> (i32, i32, i32) {
    %c0_i32 = arith.constant 0 : i32
    %c0_i32_0 = arith.constant 0 : i32
    %c0_i32_1 = arith.constant 0 : i32
    %c0_i32_2 = arith.constant 0 : i32
    return %c0_i32, %c0_i32_0, %c0_i32_1 : i32, i32, i32
  }
  func.func @transform_9(%arg0: i32) -> (i32, i32, i32) {
    %c0_i32 = arith.constant 0 : i32
    %c0_i32_0 = arith.constant 0 : i32
    %c0_i32_1 = arith.constant 0 : i32
    %c0_i32_2 = arith.constant 0 : i32
    return %c0_i32, %c0_i32_0, %c0_i32_1 : i32, i32, i32
  }
  func.func @transform_10(%arg0: i32) -> (i32, i32, i32) {
    %c0_i32 = arith.constant 0 : i32
    %c0_i32_0 = arith.constant 0 : i32
    %c0_i32_1 = arith.constant 0 : i32
    %c0_i32_2 = arith.constant 0 : i32
    return %c0_i32, %c0_i32_0, %c0_i32_1 : i32, i32, i32
  }
  func.func @transform_11(%arg0: i32) -> (i32, i32, i32) {
    %c0_i32 = arith.constant 0 : i32
    %c0_i32_0 = arith.constant 0 : i32
    %c0_i32_1 = arith.constant 0 : i32
    %c0_i32_2 = arith.constant 0 : i32
    return %c0_i32, %c0_i32_0, %c0_i32_1 : i32, i32, i32
  }
  func.func @transform_12(%arg0: i32) -> (i32, i32, i32) {
    %c0_i32 = arith.constant 0 : i32
    %c0_i32_0 = arith.constant 0 : i32
    %c0_i32_1 = arith.constant 0 : i32
    %c0_i32_2 = arith.constant 0 : i32
    return %c0_i32, %c0_i32_0, %c0_i32_1 : i32, i32, i32
  }
  func.func @transform_13(%arg0: i32) -> (i32, i32, i32, i32) {
    %c0_i32 = arith.constant 0 : i32
    %c0_i32_0 = arith.constant 0 : i32
    %c0_i32_1 = arith.constant 0 : i32
    %c0_i32_2 = arith.constant 0 : i32
    %c0_i32_3 = arith.constant 0 : i32
    return %c0_i32, %c0_i32_0, %c0_i32_1, %c0_i32_2 : i32, i32, i32, i32
  }
  func.func @transform_14(%arg0: i32) -> (i32, i32, i32) {
    %c0_i32 = arith.constant 0 : i32
    %c0_i32_0 = arith.constant 0 : i32
    %c0_i32_1 = arith.constant 0 : i32
    %c0_i32_2 = arith.constant 0 : i32
    return %c0_i32, %c0_i32_0, %c0_i32_1 : i32, i32, i32
  }
  func.func @transform_15(%arg0: i32) -> (i32, i32, i32) {
    %c0_i32 = arith.constant 0 : i32
    %c0_i32_0 = arith.constant 0 : i32
    %c0_i32_1 = arith.constant 0 : i32
    %c0_i32_2 = arith.constant 0 : i32
    return %c0_i32, %c0_i32_0, %c0_i32_1 : i32, i32, i32
  }
  func.func @transform_16(%arg0: i32) -> (i32, i32, i32) {
    %c0_i32 = arith.constant 0 : i32
    %c0_i32_0 = arith.constant 0 : i32
    %c0_i32_1 = arith.constant 0 : i32
    %c0_i32_2 = arith.constant 0 : i32
    return %c0_i32, %c0_i32_0, %c0_i32_1 : i32, i32, i32
  }
  func.func @transform_17(%arg0: i32) -> (i32, i32, i32) {
    %c0_i32 = arith.constant 0 : i32
    %c0_i32_0 = arith.constant 0 : i32
    %c0_i32_1 = arith.constant 0 : i32
    %c0_i32_2 = arith.constant 0 : i32
    return %c0_i32, %c0_i32_0, %c0_i32_1 : i32, i32, i32
  }
  func.func @transform_18(%arg0: i32) -> (i32, i32, i32) {
    %c0_i32 = arith.constant 0 : i32
    %c0_i32_0 = arith.constant 0 : i32
    %c0_i32_1 = arith.constant 0 : i32
    %c0_i32_2 = arith.constant 0 : i32
    return %c0_i32, %c0_i32_0, %c0_i32_1 : i32, i32, i32
  }
  func.func @transform_19(%arg0: i32) -> (i32, i32, i32) {
    %c0_i32 = arith.constant 0 : i32
    %c0_i32_0 = arith.constant 0 : i32
    %c0_i32_1 = arith.constant 0 : i32
    %c0_i32_2 = arith.constant 0 : i32
    return %c0_i32, %c0_i32_0, %c0_i32_1 : i32, i32, i32
  }
  func.func @transform_20(%arg0: i32) -> (i32, i32) {
    %c0_i32 = arith.constant 0 : i32
    %c0_i32_0 = arith.constant 0 : i32
    %c0_i32_1 = arith.constant 0 : i32
    return %c0_i32, %c0_i32_0 : i32, i32
  }
}

</mosaic_0001>

<llo_original>
// kernel: tpu_custom_call.1
$region0: #{tpu_custom_call.1}
  #allocation0 [shape = 'u32[]', space=smem, size = 0x4, offset = 0x4, fixed_abs, tag = 'smem constant byte address 0x4 - core index']
  #allocation1 [shape = 'u32[72,128]{1,0:T(1,128)}', space=vmem, size = 0x9000, scoped, tag = 'internal scratch']
  %s0 = inlined_call_operand.hbm [shape: f32[16,32], index: 0, kind: input, shape index: {}]
  %s1 = inlined_call_operand.hbm [shape: f32[16,32], index: 1, kind: input, shape index: {}]
  %s2 = inlined_call_operand.hbm [shape: f32[2,8,8], index: 2, kind: input, shape index: {}]
  %s3 = inlined_call_operand.hbm [shape: f32[2,8,8], index: 3, kind: input, shape index: {}]
  %s4 = inlined_call_operand.vmem [shape: bf16[2,32,32], index: 4, kind: input, shape index: {}]
  %s5 = inlined_call_operand.vmem [shape: bf16[2,32,32], index: 5, kind: input, shape index: {}]
  %s6 = inlined_call_operand.vmem [shape: bf16[2,32,32], index: 6, kind: input, shape index: {}]
  %s7 = inlined_call_operand.hbm [shape: bf16[2,4,8,32], index: 7, kind: input, shape index: {}]
  %s8 = inlined_call_operand.vmem [shape: f32[2,1,32], index: 8, kind: input, shape index: {}]
  %s9 = inlined_call_operand.vmem [shape: f32[2,1,32], index: 9, kind: input, shape index: {}]
  %s10 = inlined_call_operand.hbm [shape: bf16[2,32,32], index: 10, kind: input, shape index: {}]
  %s11 = inlined_call_operand.hbm [shape: bf16[2,32,32], index: 11, kind: input, shape index: {}]
  %s12 = inlined_call_operand.hbm [shape: bf16[2,32,32], index: 12, kind: input, shape index: {}]
  %s13 = inlined_call_operand.hbm [shape: bf16[2,4,8,32], index: 13, kind: input, shape index: {}]
  %s14 = inlined_call_operand.vmem [shape: f32[2,1,32], index: 14, kind: input, shape index: {}]
  %s15 = inlined_call_operand.vmem [shape: f32[2,1,32], index: 15, kind: input, shape index: {}]
  %s16 = inlined_call_operand.hbm [shape: bf16[2,32,64], index: 16, kind: input, shape index: {}]
  %s17 = inlined_call_operand.vmem [shape: bf16[2,64,32], index: 17, kind: input, shape index: {}]
  %s18 = inlined_call_operand.vmem [shape: f32[2,1,32], index: 18, kind: input, shape index: {}]
  %s19 = inlined_call_operand.vmem [shape: f32[2,1,32], index: 19, kind: input, shape index: {}]
  %s20 = inlined_call_operand.hbm [shape: f32[16,32], index: 20, kind: output, shape index: {}]
  %s21 = sld [smem:[#allocation0]]
  $region130: #{tpu_custom_call.1} parent=0
    _
  %s23 = ssub.s32 1, %s21
  %s24 = scalar_select 0, %s23, %s21
  $region1: #{tpu_custom_call.1} parent=0
    #allocation2 [shape = 'u8[8192]{0}', space=vmem, size = 0x2000, scoped, tag = 'input window, operand 0, single buffered']
    #allocation3 [shape = 's32[1]{0}', space=sflag, size = 0x4, scoped, tag = 'scoped memory for tpu_custom_call.1']
    #allocation4 [shape = 's32[1]{0}', space=sflag, size = 0x4, scoped, tag = 'scoped memory for tpu_custom_call.1']
    #allocation5 [shape = 'u8[8192]{0}', space=vmem, size = 0x2000, scoped, tag = 'input window, operand 1, single buffered']
    #allocation6 [shape = 's32[1]{0}', space=sflag, size = 0x4, scoped, tag = 'scoped memory for tpu_custom_call.1']
    #allocation7 [shape = 'u8[8192]{0}', space=vmem, size = 0x2000, scoped, tag = 'input window, operand 2, single buffered']
    #allocation8 [shape = 'u8[8192]{0}', space=vmem, size = 0x2000, scoped, tag = 'input window, operand 3, single buffered']
    #allocation9 [shape = 's32[1]{0}', space=sflag, size = 0x4, scoped, tag = 'scoped memory for tpu_custom_call.1']
    #allocation10 [shape = 'u8[16384]{0}', space=vmem, size = 0x4000, scoped, tag = 'input window, operand 7, single buffered']
    #allocation11 [shape = 'u8[16384]{0}', space=vmem, size = 0x4000, scoped, tag = 'input window, operand 10, single buffered']
    #allocation12 [shape = 's32[1]{0}', space=sflag, size = 0x4, scoped, tag = 'scoped memory for tpu_custom_call.1']
    #allocation13 [shape = 'u8[16384]{0}', space=vmem, size = 0x4000, scoped, tag = 'input window, operand 11, single buffered']
    #allocation14 [shape = 'u8[16384]{0}', space=vmem, size = 0x4000, scoped, tag = 'input window, operand 12, single buffered']
    #allocation15 [shape = 's32[1]{0}', space=sflag, size = 0x4, scoped, tag = 'scoped memory for tpu_custom_call.1']
    #allocation16 [shape = 'u8[16384]{0}', space=vmem, size = 0x4000, scoped, tag = 'input window, operand 13, single buffered']
    #allocation17 [shape = 'u8[16384]{0}', space=vmem, size = 0x4000, scoped, tag = 'input window, operand 16, single buffered']
    #allocation18 [shape = 's32[1]{0}', space=sflag, size = 0x4, scoped, tag = 'scoped memory for tpu_custom_call.1']
    #allocation19 [shape = 'u8[8192]{0}', space=vmem, size = 0x2000, scoped, tag = 'output window, operand 0, single buffered']
    %25 = vsyncpa [#allocation3], 0
    %26 = vsyncpa [#allocation6], 0
    %27 = vsyncpa [#allocation9], 0
    %28 = vsyncpa [#allocation12], 0
    %29 = vsyncpa [#allocation15], 0
    %30 = vsyncpa [#allocation18], 0
    %31 = vsyncpa [#allocation4], 0
    // Predicated region
    $region2: #{tpu_custom_call.1} parent=1 // pred_check
      _
    $region3: #{tpu_custom_call.1} parent=1 // pred_check_branch
      %33 = sbr.rel (0) target = $region5
    $region4: #{tpu_custom_call.1} parent=1 // pred_region
      %35 = vsyncadd [#allocation3], 0
      %s36 = sshll.u32 %s0, 4
      %s37 = int_to_ptr.hbm [resolvable:$true] %s36
      %s38 = sshll.u32 [#allocation2], 4
      %s39 = int_to_ptr.vmem [resolvable:$true] %s38
      %44 = dma.hbm_to_vmem [thread:$0]  %s37, 256, %s39, [#allocation3], 128, 128, 8
    $region5: #{tpu_custom_call.1} parent=1 // pred_fallthru
      _
    // Predicated region
    $region6: #{tpu_custom_call.1} parent=1 // pred_check
      _
    $region7: #{tpu_custom_call.1} parent=1 // pred_check_branch
      %46 = sbr.rel (0) target = $region9
    $region8: #{tpu_custom_call.1} parent=1 // pred_region
      %48 = vsyncadd [#allocation6], 0
      %s49 = sshll.u32 %s1, 4
      %s50 = int_to_ptr.hbm [resolvable:$true] %s49
      %s51 = sshll.u32 [#allocation5], 4
      %s52 = int_to_ptr.vmem [resolvable:$true] %s51
      %57 = dma.hbm_to_vmem [thread:$0]  %s50, 256, %s52, [#allocation6], 128, 128, 8
    $region9: #{tpu_custom_call.1} parent=1 // pred_fallthru
      _
    // Predicated region
    $region10: #{tpu_custom_call.1} parent=1 // pred_check
      _
    $region11: #{tpu_custom_call.1} parent=1 // pred_check_branch
      %59 = sbr.rel (0) target = $region13
    $region12: #{tpu_custom_call.1} parent=1 // pred_region
      %61 = vsyncadd [#allocation6], 0
      %s62 = sshll.u32 %s2, 4
      %s63 = int_to_ptr.hbm [resolvable:$true] %s62
      %s64 = sshll.u32 [#allocation7], 4
      %s65 = int_to_ptr.vmem [resolvable:$true] %s64
      %70 = dma.hbm_to_vmem [thread:$0]  %s63, 256, %s65, [#allocation6], 128, 128, 8
    $region13: #{tpu_custom_call.1} parent=1 // pred_fallthru
      _
    // Predicated region
    $region14: #{tpu_custom_call.1} parent=1 // pred_check
      _
    $region15: #{tpu_custom_call.1} parent=1 // pred_check_branch
      %72 = sbr.rel (0) target = $region17
    $region16: #{tpu_custom_call.1} parent=1 // pred_region
      %74 = vsyncadd [#allocation9], 0
      %s75 = sshll.u32 %s3, 4
      %s76 = int_to_ptr.hbm [resolvable:$true] %s75
      %s77 = sshll.u32 [#allocation8], 4
      %s78 = int_to_ptr.vmem [resolvable:$true] %s77
      %83 = dma.hbm_to_vmem [thread:$0]  %s76, 256, %s78, [#allocation9], 128, 128, 8
    $region17: #{tpu_custom_call.1} parent=1 // pred_fallthru
      _
    // Predicated region
    $region18: #{tpu_custom_call.1} parent=1 // pred_check
      _
    $region19: #{tpu_custom_call.1} parent=1 // pred_check_branch
      %85 = sbr.rel (0) target = $region21
    $region20: #{tpu_custom_call.1} parent=1 // pred_region
      _
    $region21: #{tpu_custom_call.1} parent=1 // pred_fallthru
      _
    // Predicated region
    $region22: #{tpu_custom_call.1} parent=1 // pred_check
      _
    $region23: #{tpu_custom_call.1} parent=1 // pred_check_branch
      %87 = sbr.rel (0) target = $region25
    $region24: #{tpu_custom_call.1} parent=1 // pred_region
      _
    $region25: #{tpu_custom_call.1} parent=1 // pred_fallthru
      _
    // Predicated region
    $region26: #{tpu_custom_call.1} parent=1 // pred_check
      _
    $region27: #{tpu_custom_call.1} parent=1 // pred_check_branch
      %89 = sbr.rel (0) target = $region29
    $region28: #{tpu_custom_call.1} parent=1 // pred_region
      _
    $region29: #{tpu_custom_call.1} parent=1 // pred_fallthru
      _
    // Predicated region
    $region30: #{tpu_custom_call.1} parent=1 // pred_check
      _
    $region31: #{tpu_custom_call.1} parent=1 // pred_check_branch
      %91 = sbr.rel (0) target = $region33
    $region32: #{tpu_custom_call.1} parent=1 // pred_region
      %93 = vsyncadd [#allocation9], 0
      %s94 = sshll.u32 %s7, 4
      %s95 = int_to_ptr.hbm [resolvable:$true] %s94
      %s96 = sshll.u32 [#allocation10], 4
      %s97 = int_to_ptr.vmem [resolvable:$true] %s96
      %102 = dma.hbm_to_vmem [thread:$0]  %s95, 512, %s97, [#allocation9], 64, 64, 4
    $region33: #{tpu_custom_call.1} parent=1 // pred_fallthru
      _
    // Predicated region
    $region34: #{tpu_custom_call.1} parent=1 // pred_check
      _
    $region35: #{tpu_custom_call.1} parent=1 // pred_check_branch
      %104 = sbr.rel (0) target = $region37
    $region36: #{tpu_custom_call.1} parent=1 // pred_region
      _
    $region37: #{tpu_custom_call.1} parent=1 // pred_fallthru
      _
    // Predicated region
    $region38: #{tpu_custom_call.1} parent=1 // pred_check
      _
    $region39: #{tpu_custom_call.1} parent=1 // pred_check_branch
      %106 = sbr.rel (0) target = $region41
    $region40: #{tpu_custom_call.1} parent=1 // pred_region
      _
    $region41: #{tpu_custom_call.1} parent=1 // pred_fallthru
      _
    // Predicated region
    $region42: #{tpu_custom_call.1} parent=1 // pred_check
      _
    $region43: #{tpu_custom_call.1} parent=1 // pred_check_branch
      %108 = sbr.rel (0) target = $region45
    $region44: #{tpu_custom_call.1} parent=1 // pred_region
      %110 = vsyncadd [#allocation12], 0
      %s111 = sshll.u32 %s10, 4
      %s112 = int_to_ptr.hbm [resolvable:$true] %s111
      %s113 = sshll.u32 [#allocation11], 4
      %s114 = int_to_ptr.vmem [resolvable:$true] %s113
      %119 = dma.hbm_to_vmem [thread:$0]  %s112, 512, %s114, [#allocation12], 64, 64, 4
    $region45: #{tpu_custom_call.1} parent=1 // pred_fallthru
      _
    // Predicated region
    $region46: #{tpu_custom_call.1} parent=1 // pred_check
      _
    $region47: #{tpu_custom_call.1} parent=1 // pred_check_branch
      %121 = sbr.rel (0) target = $region49
    $region48: #{tpu_custom_call.1} parent=1 // pred_region
      %123 = vsyncadd [#allocation12], 0
      %s124 = sshll.u32 %s11, 4
      %s125 = int_to_ptr.hbm [resolvable:$true] %s124
      %s126 = sshll.u32 [#allocation13], 4
      %s127 = int_to_ptr.vmem [resolvable:$true] %s126
      %132 = dma.hbm_to_vmem [thread:$0]  %s125, 512, %s127, [#allocation12], 64, 64, 4
    $region49: #{tpu_custom_call.1} parent=1 // pred_fallthru
      _
    // Predicated region
    $region50: #{tpu_custom_call.1} parent=1 // pred_check
      _
    $region51: #{tpu_custom_call.1} parent=1 // pred_check_branch
      %134 = sbr.rel (0) target = $region53
    $region52: #{tpu_custom_call.1} parent=1 // pred_region
      %136 = vsyncadd [#allocation15], 0
      %s137 = sshll.u32 %s12, 4
      %s138 = int_to_ptr.hbm [resolvable:$true] %s137
      %s139 = sshll.u32 [#allocation14], 4
      %s140 = int_to_ptr.vmem [resolvable:$true] %s139
      %145 = dma.hbm_to_vmem [thread:$0]  %s138, 512, %s140, [#allocation15], 64, 64, 4
    $region53: #{tpu_custom_call.1} parent=1 // pred_fallthru
      _
    // Predicated region
    $region54: #{tpu_custom_call.1} parent=1 // pred_check
      _
    $region55: #{tpu_custom_call.1} parent=1 // pred_check_branch
      %147 = sbr.rel (0) target = $region57
    $region56: #{tpu_custom_call.1} parent=1 // pred_region
      %149 = vsyncadd [#allocation15], 0
      %s150 = sshll.u32 %s13, 4
      %s151 = int_to_ptr.hbm [resolvable:$true] %s150
      %s152 = sshll.u32 [#allocation16], 4
      %s153 = int_to_ptr.vmem [resolvable:$true] %s152
      %158 = dma.hbm_to_vmem [thread:$0]  %s151, 512, %s153, [#allocation15], 64, 64, 4
    $region57: #{tpu_custom_call.1} parent=1 // pred_fallthru
      _
    // Predicated region
    $region58: #{tpu_custom_call.1} parent=1 // pred_check
      _
    $region59: #{tpu_custom_call.1} parent=1 // pred_check_branch
      %160 = sbr.rel (0) target = $region61
    $region60: #{tpu_custom_call.1} parent=1 // pred_region
      _
    $region61: #{tpu_custom_call.1} parent=1 // pred_fallthru
      _
    // Predicated region
    $region62: #{tpu_custom_call.1} parent=1 // pred_check
      _
    $region63: #{tpu_custom_call.1} parent=1 // pred_check_branch
      %162 = sbr.rel (0) target = $region65
    $region64: #{tpu_custom_call.1} parent=1 // pred_region
      _
    $region65: #{tpu_custom_call.1} parent=1 // pred_fallthru
      _
    // Predicated region
    $region66: #{tpu_custom_call.1} parent=1 // pred_check
      _
    $region67: #{tpu_custom_call.1} parent=1 // pred_check_branch
      %164 = sbr.rel (0) target = $region69
    $region68: #{tpu_custom_call.1} parent=1 // pred_region
      %166 = vsyncadd [#allocation18], 0
      %s167 = sshll.u32 %s16, 4
      %s168 = int_to_ptr.hbm [resolvable:$true] %s167
      %s169 = sshll.u32 [#allocation17], 4
      %s170 = int_to_ptr.vmem [resolvable:$true] %s169
      %175 = dma.hbm_to_vmem [thread:$0]  %s168, 512, %s170, [#allocation18], 64, 64, 4
    $region69: #{tpu_custom_call.1} parent=1 // pred_fallthru
      _
    // Predicated region
    $region70: #{tpu_custom_call.1} parent=1 // pred_check
      _
    $region71: #{tpu_custom_call.1} parent=1 // pred_check_branch
      %177 = sbr.rel (0) target = $region73
    $region72: #{tpu_custom_call.1} parent=1 // pred_region
      _
    $region73: #{tpu_custom_call.1} parent=1 // pred_fallthru
      _
    // Predicated region
    $region74: #{tpu_custom_call.1} parent=1 // pred_check
      _
    $region75: #{tpu_custom_call.1} parent=1 // pred_check_branch
      %179 = sbr.rel (0) target = $region77
    $region76: #{tpu_custom_call.1} parent=1 // pred_region
      _
    $region77: #{tpu_custom_call.1} parent=1 // pred_fallthru
      _
    // Predicated region
    $region78: #{tpu_custom_call.1} parent=1 // pred_check
      _
    $region79: #{tpu_custom_call.1} parent=1 // pred_check_branch
      %181 = sbr.rel (0) target = $region81
    $region80: #{tpu_custom_call.1} parent=1 // pred_region
      _
    $region81: #{tpu_custom_call.1} parent=1 // pred_fallthru
      _
    // Predicated region
    $region82: #{tpu_custom_call.1} parent=1 // pred_check
      _
    $region83: #{tpu_custom_call.1} parent=1 // pred_check_branch
      %183 = sbr.rel (0) target = $region85
    $region84: #{tpu_custom_call.1} parent=1 // pred_region
      %185 = dma.done [#allocation3], 256
    $region85: #{tpu_custom_call.1} parent=1 // pred_fallthru
      _
    // Predicated region
    $region86: #{tpu_custom_call.1} parent=1 // pred_check
      _
    $region87: #{tpu_custom_call.1} parent=1 // pred_check_branch
      %187 = sbr.rel (0) target = $region89
    $region88: #{tpu_custom_call.1} parent=1 // pred_region
      %189 = dma.done [#allocation6], 256
    $region89: #{tpu_custom_call.1} parent=1 // pred_fallthru
      _
    // Predicated region
    $region90: #{tpu_custom_call.1} parent=1 // pred_check
      _
    $region91: #{tpu_custom_call.1} parent=1 // pred_check_branch
      %191 = sbr.rel (0) target = $region93
    $region92: #{tpu_custom_call.1} parent=1 // pred_region
      %193 = dma.done [#allocation6], 256
    $region93: #{tpu_custom_call.1} parent=1 // pred_fallthru
      _
    // Predicated region
    $region94: #{tpu_custom_call.1} parent=1 // pred_check
      _
    $region95: #{tpu_custom_call.1} parent=1 // pred_check_branch
      %195 = sbr.rel (0) target = $region97
    $region96: #{tpu_custom_call.1} parent=1 // pred_region
      %197 = dma.done [#allocation9], 256
    $region97: #{tpu_custom_call.1} parent=1 // pred_fallthru
      _
    // Predicated region
    $region98: #{tpu_custom_call.1} parent=1 // pred_check
      _
    $region99: #{tpu_custom_call.1} parent=1 // pred_check_branch
      %199 = sbr.rel (0) target = $region101
    $region100: #{tpu_custom_call.1} parent=1 // pred_region
      %201 = dma.done [#allocation9], 512
    $region101: #{tpu_custom_call.1} parent=1 // pred_fallthru
      _
    // Predicated region
    $region102: #{tpu_custom_call.1} parent=1 // pred_check
      _
    $region103: #{tpu_custom_call.1} parent=1 // pred_check_branch
      %203 = sbr.rel (0) target = $region105
    $region104: #{tpu_custom_call.1} parent=1 // pred_region
      %205 = dma.done [#allocation12], 512
    $region105: #{tpu_custom_call.1} parent=1 // pred_fallthru
      _
    // Predicated region
    $region106: #{tpu_custom_call.1} parent=1 // pred_check
      _
    $region107: #{tpu_custom_call.1} parent=1 // pred_check_branch
      %207 = sbr.rel (0) target = $region109
    $region108: #{tpu_custom_call.1} parent=1 // pred_region
      %209 = dma.done [#allocation12], 512
    $region109: #{tpu_custom_call.1} parent=1 // pred_fallthru
      _
    // Predicated region
    $region110: #{tpu_custom_call.1} parent=1 // pred_check
      _
    $region111: #{tpu_custom_call.1} parent=1 // pred_check_branch
      %211 = sbr.rel (0) target = $region113
    $region112: #{tpu_custom_call.1} parent=1 // pred_region
      %213 = dma.done [#allocation15], 512
    $region113: #{tpu_custom_call.1} parent=1 // pred_fallthru
      _
    // Predicated region
    $region114: #{tpu_custom_call.1} parent=1 // pred_check
      _
    $region115: #{tpu_custom_call.1} parent=1 // pred_check_branch
      %215 = sbr.rel (0) target = $region117
    $region116: #{tpu_custom_call.1} parent=1 // pred_region
      %217 = dma.done [#allocation15], 512
    $region117: #{tpu_custom_call.1} parent=1 // pred_fallthru
      _
    // Predicated region
    $region118: #{tpu_custom_call.1} parent=1 // pred_check
      _
    $region119: #{tpu_custom_call.1} parent=1 // pred_check_branch
      %219 = sbr.rel (0) target = $region121
    $region120: #{tpu_custom_call.1} parent=1 // pred_region
      %221 = dma.done [#allocation18], 512
    $region121: #{tpu_custom_call.1} parent=1 // pred_fallthru
      _
    %v223 = vld [vmem:[#allocation2] sm:$0xff]
    %v224 = vld [vmem:[#allocation2 + $0x8] sm:$0xff]
    %v225 = vld [vmem:[#allocation5] sm:$0xff]
    %v226 = vld [vmem:[#allocation5 + $0x8] sm:$0xff]
    %v227 = vld [vmem:[#allocation7] sm:$0xff]
    %v228 = vld [vmem:[#allocation7 + $0x8] sm:$0xff]
    %v229 = vld [vmem:[#allocation8] sm:$0xff]
    %v230 = vld [vmem:[#allocation8 + $0x8] sm:$0xff]
    %v231 = vld [vmem:[%s4] sm:$0xf]
    %v232 = vld [vmem:[%s4 + $0x4] sm:$0xf]
    %v233 = vld [vmem:[%s4 + $0x8] sm:$0xf]
    %v234 = vld [vmem:[%s4 + $0xc] sm:$0xf]
    %v235 = vld [vmem:[%s5] sm:$0xf]
    %v236 = vld [vmem:[%s5 + $0x4] sm:$0xf]
    %v237 = vld [vmem:[%s5 + $0x8] sm:$0xf]
    %v238 = vld [vmem:[%s5 + $0xc] sm:$0xf]
    %v239 = vld [vmem:[%s6] sm:$0xf]
    %v240 = vld [vmem:[%s6 + $0x4] sm:$0xf]
    %v241 = vld [vmem:[%s6 + $0x8] sm:$0xf]
    %v242 = vld [vmem:[%s6 + $0xc] sm:$0xf]
    %v243 = vld [vmem:[#allocation10] sm:$0xf]
    %v244 = vld [vmem:[#allocation10 + $0x4] sm:$0xf]
    %v245 = vld [vmem:[#allocation10 + $0x8] sm:$0xf]
    %v246 = vld [vmem:[#allocation10 + $0xc] sm:$0xf]
    %v247 = vld [vmem:[%s8] sm:$0x1]
    %v248 = vld [vmem:[%s9] sm:$0x1]
    %v249 = vpack.c.bf16 %v224, %v223
    %v254 = vunpack.c.l.b16 %v231
    %v255 = vunpack.c.l.b16 %v232
    %v256 = vunpack.c.l.b16 %v233
    %v257 = vunpack.c.l.b16 %v234
    %v258 = vpack.c.b16 %v255, %v254
    %v259 = vpack.c.b16 %v257, %v256
    %vm262 = vcmask 261120
    %v264 = vsel %vm262, %v249, 0
    %266 = vmatpush.bf16.msra.mxu0 0
    %267 = vmatpush.bf16.msra.mxu0 0
    %268 = vmatpush.bf16.msra.mxu0 0
    %269 = vmatpush.bf16.msra.mxu0 0
    %270 = vmatpush.bf16.msra.mxu0 0
    %271 = vmatpush.bf16.msra.mxu0 0
    %272 = vmatpush.bf16.msra.mxu0 %v259
    %273 = vmatpush.bf16.msra.mxu0 %v258
    %274 = vmatmul.bf16.gmra.mxu0 %v264
    %v275 = vpop.f32.mrf.mxu0
    %v276 = vadd.f32 0.0, %v275
    %v277 = vpop.f32.mrf.mxu0
    %v278 = vadd.f32 0.0, %v277
    %279 = vdwg.mxu0
    %v284 = vunpack.c.l.b16 %v235
    %v285 = vunpack.c.l.b16 %v236
    %v286 = vunpack.c.l.b16 %v237
    %v287 = vunpack.c.l.b16 %v238
    %v288 = vpack.c.b16 %v285, %v284
    %v289 = vpack.c.b16 %v287, %v286
    %292 = vmatpush.bf16.msra.mxu0 0
    %293 = vmatpush.bf16.msra.mxu0 0
    %294 = vmatpush.bf16.msra.mxu0 0
    %295 = vmatpush.bf16.msra.mxu0 0
    %296 = vmatpush.bf16.msra.mxu0 0
    %297 = vmatpush.bf16.msra.mxu0 0
    %298 = vmatpush.bf16.msra.mxu0 %v289
    %299 = vmatpush.bf16.msra.mxu0 %v288
    %300 = vmatmul.bf16.gmra.mxu0 %v264
    %v301 = vpop.f32.mrf.mxu0
    %v302 = vadd.f32 0.0, %v301
    %v303 = vpop.f32.mrf.mxu0
    %v304 = vadd.f32 0.0, %v303
    %305 = vdwg.mxu0
    %v310 = vunpack.c.l.b16 %v239
    %v311 = vunpack.c.l.b16 %v240
    %v312 = vunpack.c.l.b16 %v241
    %v313 = vunpack.c.l.b16 %v242
    %v314 = vpack.c.b16 %v311, %v310
    %v315 = vpack.c.b16 %v313, %v312
    %318 = vmatpush.bf16.msra.mxu0 0
    %319 = vmatpush.bf16.msra.mxu0 0
    %320 = vmatpush.bf16.msra.mxu0 0
    %321 = vmatpush.bf16.msra.mxu0 0
    %322 = vmatpush.bf16.msra.mxu0 0
    %323 = vmatpush.bf16.msra.mxu0 0
    %324 = vmatpush.bf16.msra.mxu0 %v315
    %325 = vmatpush.bf16.msra.mxu0 %v314
    %326 = vmatmul.bf16.gmra.mxu0 %v264
    %v327 = vpop.f32.mrf.mxu0
    %v328 = vadd.f32 0.0, %v327
    %v329 = vpop.f32.mrf.mxu0
    %v330 = vadd.f32 0.0, %v329
    %331 = vdwg.mxu0
    %v332 = vpack.c.bf16 %v276, %v276
    %v333 = vpack.c.bf16 %v278, %v278
    %v334 = vpack.c.bf16 %v302, %v302
    %v335 = vpack.c.bf16 %v304, %v304
    %v336 = vpack.c.bf16 %v328, %v328
    %v337 = vpack.c.bf16 %v330, %v330
    %vm338 = vcmask 64512
    %v340 = vsel %vm338, %v332, 0
    %v343 = vsel %vm338, %v334, 0
    %345 = vmatpush.bf16.xpose.msra.mxu0 0
    %346 = vmatpush.bf16.xpose.msra.mxu0 0
    %347 = vmatpush.bf16.xpose.msra.mxu0 0
    %348 = vmatpush.bf16.xpose.msra.mxu0 0
    %349 = vmatpush.bf16.xpose.msra.mxu0 0
    %350 = vmatpush.bf16.xpose.msra.mxu0 0
    %351 = vmatpush.bf16.xpose.msra.mxu0 0
    %352 = vmatpush.bf16.xpose.msra.mxu0 %v343
    %353 = vmatmul.bf16.gmra.mxu0 %v340
    %v354 = vpop.f32.mrf.mxu0
    %v355 = vadd.f32 0.0, %v354
    %v356 = vpop.f32.mrf.mxu0
    %357 = vdwg.mxu0
    %v359 = vsel %vm338, %v333, 0
    %v362 = vsel %vm338, %v335, 0
    %364 = vmatpush.bf16.xpose.msra.mxu0 0
    %365 = vmatpush.bf16.xpose.msra.mxu0 0
    %366 = vmatpush.bf16.xpose.msra.mxu0 0
    %367 = vmatpush.bf16.xpose.msra.mxu0 0
    %368 = vmatpush.bf16.xpose.msra.mxu0 0
    %369 = vmatpush.bf16.xpose.msra.mxu0 0
    %370 = vmatpush.bf16.xpose.msra.mxu0 0
    %371 = vmatpush.bf16.xpose.msra.mxu0 %v362
    %372 = vmatmul.bf16.gmra.mxu0 %v359
    %v373 = vpop.f32.mrf.mxu0
    %v374 = vadd.f32 0.0, %v373
    %v375 = vpop.f32.mrf.mxu0
    %376 = vdwg.mxu0
    %v377 = vmul.f32 %v355, 0.35355338
    %v378 = vmul.f32 %v374, 0.35355338
    %v379 = vadd.f32 %v377, %v227
    %v380 = vadd.f32 %v378, %v228
    %v381 = vsel %vm338, %v379, -inf
    %382 = vmax.xlane.f32.xlu0 %v381
    %v383 = vpop.xlane.xlu0 %382
    %v384 = vsel %vm338, %v380, -inf
    %385 = vmax.xlane.f32.xlu0 %v384
    %v386 = vpop.xlane.xlu0 %385
    %v387 = vsub.f32 %v379, %v383
    %v388 = vsub.f32 %v380, %v386
    %v389 = vmul.f32 %v387, 1.442695
    %v390 = vpow.pop %v389
    %v391 = vmul.f32 %v388, 1.442695
    %v392 = vpow.pop %v391
    %v393 = vsel %vm338, %v390, 0.0
    %394 = vadd.xlane.f32.xlu0 %v393
    %v395 = vpop.xlane.xlu0 %394
    %v396 = vsel %vm338, %v392, 0.0
    %397 = vadd.xlane.f32.xlu0 %v396
    %v398 = vpop.xlane.xlu0 %397
    %v399 = vrcp.pop %v395
    %v400 = vrcp.pop %v398
    %v401 = vmul.f32 %v390, %v399
    %v402 = vmul.f32 %v392, %v400
    %v403 = vpack.c.bf16 %v401, %v401
    %v404 = vpack.c.bf16 %v402, %v402
    %v406 = vsel %vm338, %v403, 0
    %vm408 = vcmask 1043456
    %v410 = vsel %vm408, %v336, 0
    %412 = vmatpush.bf16.msra.mxu0 0
    %413 = vmatpush.bf16.msra.mxu0 0
    %414 = vmatpush.bf16.msra.mxu0 0
    %415 = vmatpush.bf16.msra.mxu0 0
    %416 = vmatpush.bf16.msra.mxu0 0
    %417 = vmatpush.bf16.msra.mxu0 0
    %418 = vmatpush.bf16.msra.mxu0 0
    %419 = vmatpush.bf16.msra.mxu0 %v410
    %420 = vmatmul.bf16.gmra.mxu0 %v406
    %v421 = vpop.f32.mrf.mxu0
    %v422 = vadd.f32 0.0, %v421
    %v423 = vpop.f32.mrf.mxu0
    %424 = vdwg.mxu0
    %v426 = vsel %vm338, %v404, 0
    %v429 = vsel %vm408, %v337, 0
    %431 = vmatpush.bf16.msra.mxu0 0
    %432 = vmatpush.bf16.msra.mxu0 0
    %433 = vmatpush.bf16.msra.mxu0 0
    %434 = vmatpush.bf16.msra.mxu0 0
    %435 = vmatpush.bf16.msra.mxu0 0
    %436 = vmatpush.bf16.msra.mxu0 0
    %437 = vmatpush.bf16.msra.mxu0 0
    %438 = vmatpush.bf16.msra.mxu0 %v429
    %439 = vmatmul.bf16.gmra.mxu0 %v426
    %v440 = vpop.f32.mrf.mxu0
    %v441 = vadd.f32 0.0, %v440
    %v442 = vpop.f32.mrf.mxu0
    %443 = vdwg.mxu0
    %v444 = vpack.c.bf16 %v441, %v422
    %v446 = vunpack.c.l.b16 %v332
    %v447 = vpack.c.b16 %v446, %v446
    %448 = vrot.lane.b32.xlu0 %v447, 120
    %v449 = vpop.permute.xlu0 %448
    %v451 = vunpack.c.l.b16 %v334
    %v452 = vpack.c.b16 %v451, %v451
    %453 = vrot.lane.b32.xlu0 %v452, 120
    %v454 = vpop.permute.xlu0 %453
    %v456 = vsel %vm338, %v449, 0
    %v459 = vsel %vm338, %v454, 0
    %461 = vmatpush.bf16.xpose.msra.mxu0 0
    %462 = vmatpush.bf16.xpose.msra.mxu0 0
    %463 = vmatpush.bf16.xpose.msra.mxu0 0
    %464 = vmatpush.bf16.xpose.msra.mxu0 0
    %465 = vmatpush.bf16.xpose.msra.mxu0 0
    %466 = vmatpush.bf16.xpose.msra.mxu0 0
    %467 = vmatpush.bf16.xpose.msra.mxu0 0
    %468 = vmatpush.bf16.xpose.msra.mxu0 %v459
    %469 = vmatmul.bf16.gmra.mxu0 %v456
    %v470 = vpop.f32.mrf.mxu0
    %v471 = vadd.f32 0.0, %v470
    %v472 = vpop.f32.mrf.mxu0
    %473 = vdwg.mxu0
    %v475 = vunpack.c.l.b16 %v333
    %v476 = vpack.c.b16 %v475, %v475
    %477 = vrot.lane.b32.xlu0 %v476, 120
    %v478 = vpop.permute.xlu0 %477
    %v480 = vunpack.c.l.b16 %v335
    %v481 = vpack.c.b16 %v480, %v480
    %482 = vrot.lane.b32.xlu0 %v481, 120
    %v483 = vpop.permute.xlu0 %482
    %v485 = vsel %vm338, %v478, 0
    %v488 = vsel %vm338, %v483, 0
    %490 = vmatpush.bf16.xpose.msra.mxu0 0
    %491 = vmatpush.bf16.xpose.msra.mxu0 0
    %492 = vmatpush.bf16.xpose.msra.mxu0 0
    %493 = vmatpush.bf16.xpose.msra.mxu0 0
    %494 = vmatpush.bf16.xpose.msra.mxu0 0
    %495 = vmatpush.bf16.xpose.msra.mxu0 0
    %496 = vmatpush.bf16.xpose.msra.mxu0 0
    %497 = vmatpush.bf16.xpose.msra.mxu0 %v488
    %498 = vmatmul.bf16.gmra.mxu0 %v485
    %v499 = vpop.f32.mrf.mxu0
    %v500 = vadd.f32 0.0, %v499
    %v501 = vpop.f32.mrf.mxu0
    %502 = vdwg.mxu0
    %v503 = vmul.f32 %v471, 0.35355338
    %v504 = vmul.f32 %v500, 0.35355338
    %v505 = vadd.f32 %v503, %v227
    %v506 = vadd.f32 %v504, %v228
    %v507 = vsel %vm338, %v505, -inf
    %508 = vmax.xlane.f32.xlu0 %v507
    %v509 = vpop.xlane.xlu0 %508
    %v510 = vsel %vm338, %v506, -inf
    %511 = vmax.xlane.f32.xlu0 %v510
    %v512 = vpop.xlane.xlu0 %511
    %v513 = vsub.f32 %v505, %v509
    %v514 = vsub.f32 %v506, %v512
    %v515 = vmul.f32 %v513, 1.442695
    %v516 = vpow.pop %v515
    %v517 = vmul.f32 %v514, 1.442695
    %v518 = vpow.pop %v517
    %v519 = vsel %vm338, %v516, 0.0
    %520 = vadd.xlane.f32.xlu0 %v519
    %v521 = vpop.xlane.xlu0 %520
    %v522 = vsel %vm338, %v518, 0.0
    %523 = vadd.xlane.f32.xlu0 %v522
    %v524 = vpop.xlane.xlu0 %523
    %v525 = vrcp.pop %v521
    %v526 = vrcp.pop %v524
    %v527 = vmul.f32 %v516, %v525
    %v528 = vmul.f32 %v518, %v526
    %v529 = vpack.c.bf16 %v527, %v527
    %v530 = vpack.c.bf16 %v528, %v528
    %v532 = vunpack.c.l.b16 %v336
    %v533 = vpack.c.b16 %v532, %v532
    %534 = vrot.lane.b32.xlu0 %v533, 120
    %v535 = vpop.permute.xlu0 %534
    %v537 = vsel %vm338, %v529, 0
    %v540 = vsel %vm408, %v535, 0
    %542 = vmatpush.bf16.msra.mxu0 0
    %543 = vmatpush.bf16.msra.mxu0 0
    %544 = vmatpush.bf16.msra.mxu0 0
    %545 = vmatpush.bf16.msra.mxu0 0
    %546 = vmatpush.bf16.msra.mxu0 0
    %547 = vmatpush.bf16.msra.mxu0 0
    %548 = vmatpush.bf16.msra.mxu0 0
    %549 = vmatpush.bf16.msra.mxu0 %v540
    %550 = vmatmul.bf16.gmra.mxu0 %v537
    %v551 = vpop.f32.mrf.mxu0
    %v552 = vadd.f32 0.0, %v551
    %v553 = vpop.f32.mrf.mxu0
    %554 = vdwg.mxu0
    %v556 = vunpack.c.l.b16 %v337
    %v557 = vpack.c.b16 %v556, %v556
    %558 = vrot.lane.b32.xlu0 %v557, 120
    %v559 = vpop.permute.xlu0 %558
    %v561 = vsel %vm338, %v530, 0
    %v564 = vsel %vm408, %v559, 0
    %566 = vmatpush.bf16.msra.mxu0 0
    %567 = vmatpush.bf16.msra.mxu0 0
    %568 = vmatpush.bf16.msra.mxu0 0
    %569 = vmatpush.bf16.msra.mxu0 0
    %570 = vmatpush.bf16.msra.mxu0 0
    %571 = vmatpush.bf16.msra.mxu0 0
    %572 = vmatpush.bf16.msra.mxu0 0
    %573 = vmatpush.bf16.msra.mxu0 %v564
    %574 = vmatmul.bf16.gmra.mxu0 %v561
    %v575 = vpop.f32.mrf.mxu0
    %v576 = vadd.f32 0.0, %v575
    %v577 = vpop.f32.mrf.mxu0
    %578 = vdwg.mxu0
    %v579 = vpack.c.bf16 %v576, %v552
    %v581 = vsel %vm338, %v579, 0
    %v584 = vsel %vm408, %v244, 0
    %586 = vmatpush.bf16.msra.mxu0 0
    %587 = vmatpush.bf16.msra.mxu0 0
    %588 = vmatpush.bf16.msra.mxu0 0
    %589 = vmatpush.bf16.msra.mxu0 0
    %590 = vmatpush.bf16.msra.mxu0 0
    %591 = vmatpush.bf16.msra.mxu0 0
    %592 = vmatpush.bf16.msra.mxu0 0
    %593 = vmatpush.bf16.msra.mxu0 %v584
    %594 = vmatmul.bf16.gmra.mxu0 %v581
    %v595 = vpop.f32.mrf.mxu0
    %v596 = vadd.f32 0.0, %v595
    %v597 = vpop.f32.mrf.mxu0
    %v598 = vadd.f32 0.0, %v597
    %599 = vdwg.mxu0
    %v601 = vsel %vm338, %v444, 0
    %v604 = vsel %vm408, %v243, 0
    %606 = vmatpush.bf16.msra.mxu0 0
    %607 = vmatpush.bf16.msra.mxu0 0
    %608 = vmatpush.bf16.msra.mxu0 0
    %609 = vmatpush.bf16.msra.mxu0 0
    %610 = vmatpush.bf16.msra.mxu0 0
    %611 = vmatpush.bf16.msra.mxu0 0
    %612 = vmatpush.bf16.msra.mxu0 0
    %613 = vmatpush.bf16.msra.mxu0 %v604
    %614 = vmatmul.bf16.gmra.mxu0 %v601
    %v615 = vpop.f32.mrf.mxu0
    %v616 = vadd.f32 %v596, %v615
    %v617 = vpop.f32.mrf.mxu0
    %v618 = vadd.f32 %v598, %v617
    %619 = vdwg.mxu0
    %620 = vrot.lane.b32.xlu0 %v447, 112
    %v621 = vpop.permute.xlu0 %620
    %622 = vrot.lane.b32.xlu0 %v452, 112
    %v623 = vpop.permute.xlu0 %622
    %v625 = vsel %vm338, %v621, 0
    %v628 = vsel %vm338, %v623, 0
    %630 = vmatpush.bf16.xpose.msra.mxu0 0
    %631 = vmatpush.bf16.xpose.msra.mxu0 0
    %632 = vmatpush.bf16.xpose.msra.mxu0 0
    %633 = vmatpush.bf16.xpose.msra.mxu0 0
    %634 = vmatpush.bf16.xpose.msra.mxu0 0
    %635 = vmatpush.bf16.xpose.msra.mxu0 0
    %636 = vmatpush.bf16.xpose.msra.mxu0 0
    %637 = vmatpush.bf16.xpose.msra.mxu0 %v628
    %638 = vmatmul.bf16.gmra.mxu0 %v625
    %v639 = vpop.f32.mrf.mxu0
    %v640 = vadd.f32 0.0, %v639
    %v641 = vpop.f32.mrf.mxu0
    %642 = vdwg.mxu0
    %643 = vrot.lane.b32.xlu0 %v476, 112
    %v644 = vpop.permute.xlu0 %643
    %645 = vrot.lane.b32.xlu0 %v481, 112
    %v646 = vpop.permute.xlu0 %645
    %v648 = vsel %vm338, %v644, 0
    %v651 = vsel %vm338, %v646, 0
    %653 = vmatpush.bf16.xpose.msra.mxu0 0
    %654 = vmatpush.bf16.xpose.msra.mxu0 0
    %655 = vmatpush.bf16.xpose.msra.mxu0 0
    %656 = vmatpush.bf16.xpose.msra.mxu0 0
    %657 = vmatpush.bf16.xpose.msra.mxu0 0
    %658 = vmatpush.bf16.xpose.msra.mxu0 0
    %659 = vmatpush.bf16.xpose.msra.mxu0 0
    %660 = vmatpush.bf16.xpose.msra.mxu0 %v651
    %661 = vmatmul.bf16.gmra.mxu0 %v648
    %v662 = vpop.f32.mrf.mxu0
    %v663 = vadd.f32 0.0, %v662
    %v664 = vpop.f32.mrf.mxu0
    %665 = vdwg.mxu0
    %v666 = vmul.f32 %v640, 0.35355338
    %v667 = vmul.f32 %v663, 0.35355338
    %v668 = vadd.f32 %v666, %v227
    %v669 = vadd.f32 %v667, %v228
    %v670 = vsel %vm338, %v668, -inf
    %671 = vmax.xlane.f32.xlu0 %v670
    %v672 = vpop.xlane.xlu0 %671
    %v673 = vsel %vm338, %v669, -inf
    %674 = vmax.xlane.f32.xlu0 %v673
    %v675 = vpop.xlane.xlu0 %674
    %v676 = vsub.f32 %v668, %v672
    %v677 = vsub.f32 %v669, %v675
    %v678 = vmul.f32 %v676, 1.442695
    %v679 = vpow.pop %v678
    %v680 = vmul.f32 %v677, 1.442695
    %v681 = vpow.pop %v680
    %v682 = vsel %vm338, %v679, 0.0
    %683 = vadd.xlane.f32.xlu0 %v682
    %v684 = vpop.xlane.xlu0 %683
    %v685 = vsel %vm338, %v681, 0.0
    %686 = vadd.xlane.f32.xlu0 %v685
    %v687 = vpop.xlane.xlu0 %686
    %v688 = vrcp.pop %v684
    %v689 = vrcp.pop %v687
    %v690 = vmul.f32 %v679, %v688
    %v691 = vmul.f32 %v681, %v689
    %v692 = vpack.c.bf16 %v690, %v690
    %v693 = vpack.c.bf16 %v691, %v691
    %694 = vrot.lane.b32.xlu0 %v533, 112
    %v695 = vpop.permute.xlu0 %694
    %v697 = vsel %vm338, %v692, 0
    %v700 = vsel %vm408, %v695, 0
    %702 = vmatpush.bf16.msra.mxu0 0
    %703 = vmatpush.bf16.msra.mxu0 0
    %704 = vmatpush.bf16.msra.mxu0 0
    %705 = vmatpush.bf16.msra.mxu0 0
    %706 = vmatpush.bf16.msra.mxu0 0
    %707 = vmatpush.bf16.msra.mxu0 0
    %708 = vmatpush.bf16.msra.mxu0 0
    %709 = vmatpush.bf16.msra.mxu0 %v700
    %710 = vmatmul.bf16.gmra.mxu0 %v697
    %v711 = vpop.f32.mrf.mxu0
    %v712 = vadd.f32 0.0, %v711
    %v713 = vpop.f32.mrf.mxu0
    %714 = vdwg.mxu0
    %715 = vrot.lane.b32.xlu0 %v557, 112
    %v716 = vpop.permute.xlu0 %715
    %v718 = vsel %vm338, %v693, 0
    %v721 = vsel %vm408, %v716, 0
    %723 = vmatpush.bf16.msra.mxu0 0
    %724 = vmatpush.bf16.msra.mxu0 0
    %725 = vmatpush.bf16.msra.mxu0 0
    %726 = vmatpush.bf16.msra.mxu0 0
    %727 = vmatpush.bf16.msra.mxu0 0
    %728 = vmatpush.bf16.msra.mxu0 0
    %729 = vmatpush.bf16.msra.mxu0 0
    %730 = vmatpush.bf16.msra.mxu0 %v721
    %731 = vmatmul.bf16.gmra.mxu0 %v718
    %v732 = vpop.f32.mrf.mxu0
    %v733 = vadd.f32 0.0, %v732
    %v734 = vpop.f32.mrf.mxu0
    %735 = vdwg.mxu0
    %v736 = vpack.c.bf16 %v733, %v712
    %v738 = vsel %vm338, %v736, 0
    %v741 = vsel %vm408, %v245, 0
    %743 = vmatpush.bf16.msra.mxu0 0
    %744 = vmatpush.bf16.msra.mxu0 0
    %745 = vmatpush.bf16.msra.mxu0 0
    %746 = vmatpush.bf16.msra.mxu0 0
    %747 = vmatpush.bf16.msra.mxu0 0
    %748 = vmatpush.bf16.msra.mxu0 0
    %749 = vmatpush.bf16.msra.mxu0 0
    %750 = vmatpush.bf16.msra.mxu0 %v741
    %751 = vmatmul.bf16.gmra.mxu0 %v738
    %v752 = vpop.f32.mrf.mxu0
    %v753 = vadd.f32 0.0, %v752
    %v754 = vpop.f32.mrf.mxu0
    %v755 = vadd.f32 0.0, %v754
    %756 = vdwg.mxu0
    %v757 = vadd.f32 %v616, %v753
    %v758 = vadd.f32 %v618, %v755
    %759 = vrot.lane.b32.xlu0 %v447, 104
    %v760 = vpop.permute.xlu0 %759
    %761 = vrot.lane.b32.xlu0 %v452, 104
    %v762 = vpop.permute.xlu0 %761
    %v764 = vsel %vm338, %v760, 0
    %v767 = vsel %vm338, %v762, 0
    %769 = vmatpush.bf16.xpose.msra.mxu0 0
    %770 = vmatpush.bf16.xpose.msra.mxu0 0
    %771 = vmatpush.bf16.xpose.msra.mxu0 0
    %772 = vmatpush.bf16.xpose.msra.mxu0 0
    %773 = vmatpush.bf16.xpose.msra.mxu0 0
    %774 = vmatpush.bf16.xpose.msra.mxu0 0
    %775 = vmatpush.bf16.xpose.msra.mxu0 0
    %776 = vmatpush.bf16.xpose.msra.mxu0 %v767
    %777 = vmatmul.bf16.gmra.mxu0 %v764
    %v778 = vpop.f32.mrf.mxu0
    %v779 = vadd.f32 0.0, %v778
    %v780 = vpop.f32.mrf.mxu0
    %781 = vdwg.mxu0
    %782 = vrot.lane.b32.xlu0 %v476, 104
    %v783 = vpop.permute.xlu0 %782
    %784 = vrot.lane.b32.xlu0 %v481, 104
    %v785 = vpop.permute.xlu0 %784
    %v787 = vsel %vm338, %v783, 0
    %v790 = vsel %vm338, %v785, 0
    %792 = vmatpush.bf16.xpose.msra.mxu0 0
    %793 = vmatpush.bf16.xpose.msra.mxu0 0
    %794 = vmatpush.bf16.xpose.msra.mxu0 0
    %795 = vmatpush.bf16.xpose.msra.mxu0 0
    %796 = vmatpush.bf16.xpose.msra.mxu0 0
    %797 = vmatpush.bf16.xpose.msra.mxu0 0
    %798 = vmatpush.bf16.xpose.msra.mxu0 0
    %799 = vmatpush.bf16.xpose.msra.mxu0 %v790
    %800 = vmatmul.bf16.gmra.mxu0 %v787
    %v801 = vpop.f32.mrf.mxu0
    %v802 = vadd.f32 0.0, %v801
    %v803 = vpop.f32.mrf.mxu0
    %804 = vdwg.mxu0
    %v805 = vmul.f32 %v779, 0.35355338
    %v806 = vmul.f32 %v802, 0.35355338
    %v807 = vadd.f32 %v805, %v227
    %v808 = vadd.f32 %v806, %v228
    %v809 = vsel %vm338, %v807, -inf
    %810 = vmax.xlane.f32.xlu0 %v809
    %v811 = vpop.xlane.xlu0 %810
    %v812 = vsel %vm338, %v808, -inf
    %813 = vmax.xlane.f32.xlu0 %v812
    %v814 = vpop.xlane.xlu0 %813
    %v815 = vsub.f32 %v807, %v811
    %v816 = vsub.f32 %v808, %v814
    %v817 = vmul.f32 %v815, 1.442695
    %v818 = vpow.pop %v817
    %v819 = vmul.f32 %v816, 1.442695
    %v820 = vpow.pop %v819
    %v821 = vsel %vm338, %v818, 0.0
    %822 = vadd.xlane.f32.xlu0 %v821
    %v823 = vpop.xlane.xlu0 %822
    %v824 = vsel %vm338, %v820, 0.0
    %825 = vadd.xlane.f32.xlu0 %v824
    %v826 = vpop.xlane.xlu0 %825
    %v827 = vrcp.pop %v823
    %v828 = vrcp.pop %v826
    %v829 = vmul.f32 %v818, %v827
    %v830 = vmul.f32 %v820, %v828
    %v831 = vpack.c.bf16 %v829, %v829
    %v832 = vpack.c.bf16 %v830, %v830
    %833 = vrot.lane.b32.xlu0 %v533, 104
    %v834 = vpop.permute.xlu0 %833
    %v836 = vsel %vm338, %v831, 0
    %v839 = vsel %vm408, %v834, 0
    %841 = vmatpush.bf16.msra.mxu0 0
    %842 = vmatpush.bf16.msra.mxu0 0
    %843 = vmatpush.bf16.msra.mxu0 0
    %844 = vmatpush.bf16.msra.mxu0 0
    %845 = vmatpush.bf16.msra.mxu0 0
    %846 = vmatpush.bf16.msra.mxu0 0
    %847 = vmatpush.bf16.msra.mxu0 0
    %848 = vmatpush.bf16.msra.mxu0 %v839
    %849 = vmatmul.bf16.gmra.mxu0 %v836
    %v850 = vpop.f32.mrf.mxu0
    %v851 = vadd.f32 0.0, %v850
    %v852 = vpop.f32.mrf.mxu0
    %853 = vdwg.mxu0
    %854 = vrot.lane.b32.xlu0 %v557, 104
    %v855 = vpop.permute.xlu0 %854
    %v857 = vsel %vm338, %v832, 0
    %v860 = vsel %vm408, %v855, 0
    %862 = vmatpush.bf16.msra.mxu0 0
    %863 = vmatpush.bf16.msra.mxu0 0
    %864 = vmatpush.bf16.msra.mxu0 0
    %865 = vmatpush.bf16.msra.mxu0 0
    %866 = vmatpush.bf16.msra.mxu0 0
    %867 = vmatpush.bf16.msra.mxu0 0
    %868 = vmatpush.bf16.msra.mxu0 0
    %869 = vmatpush.bf16.msra.mxu0 %v860
    %870 = vmatmul.bf16.gmra.mxu0 %v857
    %v871 = vpop.f32.mrf.mxu0
    %v872 = vadd.f32 0.0, %v871
    %v873 = vpop.f32.mrf.mxu0
    %874 = vdwg.mxu0
    %v875 = vpack.c.bf16 %v872, %v851
    %v877 = vsel %vm338, %v875, 0
    %v880 = vsel %vm408, %v246, 0
    %882 = vmatpush.bf16.msra.mxu0 0
    %883 = vmatpush.bf16.msra.mxu0 0
    %884 = vmatpush.bf16.msra.mxu0 0
    %885 = vmatpush.bf16.msra.mxu0 0
    %886 = vmatpush.bf16.msra.mxu0 0
    %887 = vmatpush.bf16.msra.mxu0 0
    %888 = vmatpush.bf16.msra.mxu0 0
    %889 = vmatpush.bf16.msra.mxu0 %v880
    %890 = vmatmul.bf16.gmra.mxu0 %v877
    %v891 = vpop.f32.mrf.mxu0
    %v892 = vadd.f32 0.0, %v891
    %v893 = vpop.f32.mrf.mxu0
    %v894 = vadd.f32 0.0, %v893
    %895 = vdwg.mxu0
    %v896 = vadd.f32 %v757, %v892
    %v897 = vadd.f32 %v758, %v894
    %v898 = vadd.f32 %v896, %v223
    %v899 = vadd.f32 %v897, %v224
    %v900 = vsel %vm262, %v898, 0.0
    %901 = vadd.xlane.f32.xlu0 %v900
    %v902 = vpop.xlane.xlu0 %901
    %v903 = vsel %vm262, %v899, 0.0
    %904 = vadd.xlane.f32.xlu0 %v903
    %v905 = vpop.xlane.xlu0 %904
    %v906 = vrcp.pop 32.0
    %v907 = vmul.f32 32.0, %v906
    %v908 = vsub.f32 1.0, %v907
    %v909 = vmul.f32 %v906, %v908
    %v910 = vadd.f32 %v906, %v909
    %vm911 = vweird.f32 %v906
    %v912 = vsel %vm911, %v906, %v910
    %v913 = vmul.f32 %v902, %v912
    %v914 = vmul.f32 %v905, %v912
    %v915 = vsub.f32 %v898, %v913
    %v916 = vsub.f32 %v899, %v914
    %v917 = vmul.f32 %v915, %v915
    %v918 = vmul.f32 %v916, %v916
    %v919 = vsel %vm262, %v917, 0.0
    %920 = vadd.xlane.f32.xlu0 %v919
    %v921 = vpop.xlane.xlu0 %920
    %v922 = vsel %vm262, %v918, 0.0
    %923 = vadd.xlane.f32.xlu0 %v922
    %v924 = vpop.xlane.xlu0 %923
    %v925 = vmul.f32 %v921, %v912
    %v926 = vmul.f32 %v924, %v912
    %v927 = vadd.f32 %v925, 1e-05
    %v928 = vadd.f32 %v926, 1e-05
    %v929 = vrsqrt.pop %v927
    %v930 = vmul.f32 %v929, %v927
    %v931 = vmul.f32 %v930, %v929
    %v932 = vmul.f32 0.5, %v931
    %v933 = vsub.f32 1.5, %v932
    %v934 = vmul.f32 %v929, %v933
    %vm935 = vweird.f32 %v927
    %vm936 = vweird.f32 %v929
    %vm937 = vmor %vm935, %vm936
    %v938 = vsel %vm937, %v929, %v934
    %v939 = vrsqrt.pop %v928
    %v940 = vmul.f32 %v939, %v928
    %v941 = vmul.f32 %v940, %v939
    %v942 = vmul.f32 0.5, %v941
    %v943 = vsub.f32 1.5, %v942
    %v944 = vmul.f32 %v939, %v943
    %vm945 = vweird.f32 %v928
    %vm946 = vweird.f32 %v939
    %vm947 = vmor %vm945, %vm946
    %v948 = vsel %vm947, %v939, %v944
    %v949 = vmul.f32 %v915, %v938
    %v950 = vmul.f32 %v916, %v948
    %v952 = vperm.slane %v247, 0
    %v954 = vmul.f32 %v949, %v952
    %v955 = vmul.f32 %v950, %v952
    %v957 = vperm.slane %v248, 0
    %v959 = vadd.f32 %v954, %v957
    %v960 = vadd.f32 %v955, %v957
    %v961 = vld [vmem:[#allocation11] sm:$0xf]
    %v962 = vld [vmem:[#allocation11 + $0x4] sm:$0xf]
    %v963 = vld [vmem:[#allocation11 + $0x8] sm:$0xf]
    %v964 = vld [vmem:[#allocation11 + $0xc] sm:$0xf]
    %v965 = vld [vmem:[#allocation13] sm:$0xf]
    %v966 = vld [vmem:[#allocation13 + $0x4] sm:$0xf]
    %v967 = vld [vmem:[#allocation13 + $0x8] sm:$0xf]
    %v968 = vld [vmem:[#allocation13 + $0xc] sm:$0xf]
    %v969 = vld [vmem:[#allocation14] sm:$0xf]
    %v970 = vld [vmem:[#allocation14 + $0x4] sm:$0xf]
    %v971 = vld [vmem:[#allocation14 + $0x8] sm:$0xf]
    %v972 = vld [vmem:[#allocation14 + $0xc] sm:$0xf]
    %v973 = vld [vmem:[#allocation16] sm:$0xf]
    %v974 = vld [vmem:[#allocation16 + $0x4] sm:$0xf]
    %v975 = vld [vmem:[#allocation16 + $0x8] sm:$0xf]
    %v976 = vld [vmem:[#allocation16 + $0xc] sm:$0xf]
    %v977 = vld [vmem:[%s14] sm:$0x1]
    %v978 = vld [vmem:[%s15] sm:$0x1]
    %v979 = vpack.c.bf16 %v960, %v959
    %v984 = vunpack.c.l.b16 %v961
    %v985 = vunpack.c.l.b16 %v962
    %v986 = vunpack.c.l.b16 %v963
    %v987 = vunpack.c.l.b16 %v964
    %v988 = vpack.c.b16 %v985, %v984
    %v989 = vpack.c.b16 %v987, %v986
    %v993 = vsel %vm262, %v979, 0
    %995 = vmatpush.bf16.msra.mxu0 0
    %996 = vmatpush.bf16.msra.mxu0 0
    %997 = vmatpush.bf16.msra.mxu0 0
    %998 = vmatpush.bf16.msra.mxu0 0
    %999 = vmatpush.bf16.msra.mxu0 0
    %1000 = vmatpush.bf16.msra.mxu0 0
    %1001 = vmatpush.bf16.msra.mxu0 %v989
    %1002 = vmatpush.bf16.msra.mxu0 %v988
    %1003 = vmatmul.bf16.gmra.mxu0 %v993
    %v1004 = vpop.f32.mrf.mxu0
    %v1005 = vadd.f32 0.0, %v1004
    %v1006 = vpop.f32.mrf.mxu0
    %v1007 = vadd.f32 0.0, %v1006
    %1008 = vdwg.mxu0
    %v1009 = vpack.c.bf16 %v226, %v225
    %v1014 = vunpack.c.l.b16 %v965
    %v1015 = vunpack.c.l.b16 %v966
    %v1016 = vunpack.c.l.b16 %v967
    %v1017 = vunpack.c.l.b16 %v968
    %v1018 = vpack.c.b16 %v1015, %v1014
    %v1019 = vpack.c.b16 %v1017, %v1016
    %v1023 = vsel %vm262, %v1009, 0
    %1025 = vmatpush.bf16.msra.mxu0 0
    %1026 = vmatpush.bf16.msra.mxu0 0
    %1027 = vmatpush.bf16.msra.mxu0 0
    %1028 = vmatpush.bf16.msra.mxu0 0
    %1029 = vmatpush.bf16.msra.mxu0 0
    %1030 = vmatpush.bf16.msra.mxu0 0
    %1031 = vmatpush.bf16.msra.mxu0 %v1019
    %1032 = vmatpush.bf16.msra.mxu0 %v1018
    %1033 = vmatmul.bf16.gmra.mxu0 %v1023
    %v1034 = vpop.f32.mrf.mxu0
    %v1035 = vadd.f32 0.0, %v1034
    %v1036 = vpop.f32.mrf.mxu0
    %v1037 = vadd.f32 0.0, %v1036
    %1038 = vdwg.mxu0
    %v1043 = vunpack.c.l.b16 %v969
    %v1044 = vunpack.c.l.b16 %v970
    %v1045 = vunpack.c.l.b16 %v971
    %v1046 = vunpack.c.l.b16 %v972
    %v1047 = vpack.c.b16 %v1044, %v1043
    %v1048 = vpack.c.b16 %v1046, %v1045
    %1051 = vmatpush.bf16.msra.mxu0 0
    %1052 = vmatpush.bf16.msra.mxu0 0
    %1053 = vmatpush.bf16.msra.mxu0 0
    %1054 = vmatpush.bf16.msra.mxu0 0
    %1055 = vmatpush.bf16.msra.mxu0 0
    %1056 = vmatpush.bf16.msra.mxu0 0
    %1057 = vmatpush.bf16.msra.mxu0 %v1048
    %1058 = vmatpush.bf16.msra.mxu0 %v1047
    %1059 = vmatmul.bf16.gmra.mxu0 %v1023
    %v1060 = vpop.f32.mrf.mxu0
    %v1061 = vadd.f32 0.0, %v1060
    %v1062 = vpop.f32.mrf.mxu0
    %v1063 = vadd.f32 0.0, %v1062
    %1064 = vdwg.mxu0
    %v1065 = vpack.c.bf16 %v1005, %v1005
    %v1066 = vpack.c.bf16 %v1007, %v1007
    %v1067 = vpack.c.bf16 %v1035, %v1035
    %v1068 = vpack.c.bf16 %v1037, %v1037
    %v1069 = vpack.c.bf16 %v1061, %v1061
    %v1070 = vpack.c.bf16 %v1063, %v1063
    %v1072 = vsel %vm338, %v1065, 0
    %v1075 = vsel %vm338, %v1067, 0
    %1077 = vmatpush.bf16.xpose.msra.mxu0 0
    %1078 = vmatpush.bf16.xpose.msra.mxu0 0
    %1079 = vmatpush.bf16.xpose.msra.mxu0 0
    %1080 = vmatpush.bf16.xpose.msra.mxu0 0
    %1081 = vmatpush.bf16.xpose.msra.mxu0 0
    %1082 = vmatpush.bf16.xpose.msra.mxu0 0
    %1083 = vmatpush.bf16.xpose.msra.mxu0 0
    %1084 = vmatpush.bf16.xpose.msra.mxu0 %v1075
    %1085 = vmatmul.bf16.gmra.mxu0 %v1072
    %v1086 = vpop.f32.mrf.mxu0
    %v1087 = vadd.f32 0.0, %v1086
    %v1088 = vpop.f32.mrf.mxu0
    %1089 = vdwg.mxu0
    %v1091 = vsel %vm338, %v1066, 0
    %v1094 = vsel %vm338, %v1068, 0
    %1096 = vmatpush.bf16.xpose.msra.mxu0 0
    %1097 = vmatpush.bf16.xpose.msra.mxu0 0
    %1098 = vmatpush.bf16.xpose.msra.mxu0 0
    %1099 = vmatpush.bf16.xpose.msra.mxu0 0
    %1100 = vmatpush.bf16.xpose.msra.mxu0 0
    %1101 = vmatpush.bf16.xpose.msra.mxu0 0
    %1102 = vmatpush.bf16.xpose.msra.mxu0 0
    %1103 = vmatpush.bf16.xpose.msra.mxu0 %v1094
    %1104 = vmatmul.bf16.gmra.mxu0 %v1091
    %v1105 = vpop.f32.mrf.mxu0
    %v1106 = vadd.f32 0.0, %v1105
    %v1107 = vpop.f32.mrf.mxu0
    %1108 = vdwg.mxu0
    %v1109 = vmul.f32 %v1087, 0.35355338
    %v1110 = vmul.f32 %v1106, 0.35355338
    %v1111 = vadd.f32 %v1109, %v229
    %v1112 = vadd.f32 %v1110, %v230
    %v1113 = vsel %vm338, %v1111, -inf
    %1114 = vmax.xlane.f32.xlu0 %v1113
    %v1115 = vpop.xlane.xlu0 %1114
    %v1116 = vsel %vm338, %v1112, -inf
    %1117 = vmax.xlane.f32.xlu0 %v1116
    %v1118 = vpop.xlane.xlu0 %1117
    %v1119 = vsub.f32 %v1111, %v1115
    %v1120 = vsub.f32 %v1112, %v1118
    %v1121 = vmul.f32 %v1119, 1.442695
    %v1122 = vpow.pop %v1121
    %v1123 = vmul.f32 %v1120, 1.442695
    %v1124 = vpow.pop %v1123
    %v1125 = vsel %vm338, %v1122, 0.0
    %1126 = vadd.xlane.f32.xlu0 %v1125
    %v1127 = vpop.xlane.xlu0 %1126
    %v1128 = vsel %vm338, %v1124, 0.0
    %1129 = vadd.xlane.f32.xlu0 %v1128
    %v1130 = vpop.xlane.xlu0 %1129
    %v1131 = vrcp.pop %v1127
    %v1132 = vrcp.pop %v1130
    %v1133 = vmul.f32 %v1122, %v1131
    %v1134 = vmul.f32 %v1124, %v1132
    %v1135 = vpack.c.bf16 %v1133, %v1133
    %v1136 = vpack.c.bf16 %v1134, %v1134
    %v1138 = vsel %vm338, %v1135, 0
    %v1141 = vsel %vm408, %v1069, 0
    %1143 = vmatpush.bf16.msra.mxu0 0
    %1144 = vmatpush.bf16.msra.mxu0 0
    %1145 = vmatpush.bf16.msra.mxu0 0
    %1146 = vmatpush.bf16.msra.mxu0 0
    %1147 = vmatpush.bf16.msra.mxu0 0
    %1148 = vmatpush.bf16.msra.mxu0 0
    %1149 = vmatpush.bf16.msra.mxu0 0
    %1150 = vmatpush.bf16.msra.mxu0 %v1141
    %1151 = vmatmul.bf16.gmra.mxu0 %v1138
    %v1152 = vpop.f32.mrf.mxu0
    %v1153 = vadd.f32 0.0, %v1152
    %v1154 = vpop.f32.mrf.mxu0
    %1155 = vdwg.mxu0
    %v1157 = vsel %vm338, %v1136, 0
    %v1160 = vsel %vm408, %v1070, 0
    %1162 = vmatpush.bf16.msra.mxu0 0
    %1163 = vmatpush.bf16.msra.mxu0 0
    %1164 = vmatpush.bf16.msra.mxu0 0
    %1165 = vmatpush.bf16.msra.mxu0 0
    %1166 = vmatpush.bf16.msra.mxu0 0
    %1167 = vmatpush.bf16.msra.mxu0 0
    %1168 = vmatpush.bf16.msra.mxu0 0
    %1169 = vmatpush.bf16.msra.mxu0 %v1160
    %1170 = vmatmul.bf16.gmra.mxu0 %v1157
    %v1171 = vpop.f32.mrf.mxu0
    %v1172 = vadd.f32 0.0, %v1171
    %v1173 = vpop.f32.mrf.mxu0
    %1174 = vdwg.mxu0
    %v1175 = vpack.c.bf16 %v1172, %v1153
    %v1177 = vunpack.c.l.b16 %v1065
    %v1178 = vpack.c.b16 %v1177, %v1177
    %1179 = vrot.lane.b32.xlu0 %v1178, 120
    %v1180 = vpop.permute.xlu0 %1179
    %v1182 = vunpack.c.l.b16 %v1067
    %v1183 = vpack.c.b16 %v1182, %v1182
    %1184 = vrot.lane.b32.xlu0 %v1183, 120
    %v1185 = vpop.permute.xlu0 %1184
    %v1187 = vsel %vm338, %v1180, 0
    %v1190 = vsel %vm338, %v1185, 0
    %1192 = vmatpush.bf16.xpose.msra.mxu0 0
    %1193 = vmatpush.bf16.xpose.msra.mxu0 0
    %1194 = vmatpush.bf16.xpose.msra.mxu0 0
    %1195 = vmatpush.bf16.xpose.msra.mxu0 0
    %1196 = vmatpush.bf16.xpose.msra.mxu0 0
    %1197 = vmatpush.bf16.xpose.msra.mxu0 0
    %1198 = vmatpush.bf16.xpose.msra.mxu0 0
    %1199 = vmatpush.bf16.xpose.msra.mxu0 %v1190
    %1200 = vmatmul.bf16.gmra.mxu0 %v1187
    %v1201 = vpop.f32.mrf.mxu0
    %v1202 = vadd.f32 0.0, %v1201
    %v1203 = vpop.f32.mrf.mxu0
    %1204 = vdwg.mxu0
    %v1206 = vunpack.c.l.b16 %v1066
    %v1207 = vpack.c.b16 %v1206, %v1206
    %1208 = vrot.lane.b32.xlu0 %v1207, 120
    %v1209 = vpop.permute.xlu0 %1208
    %v1211 = vunpack.c.l.b16 %v1068
    %v1212 = vpack.c.b16 %v1211, %v1211
    %1213 = vrot.lane.b32.xlu0 %v1212, 120
    %v1214 = vpop.permute.xlu0 %1213
    %v1216 = vsel %vm338, %v1209, 0
    %v1219 = vsel %vm338, %v1214, 0
    %1221 = vmatpush.bf16.xpose.msra.mxu0 0
    %1222 = vmatpush.bf16.xpose.msra.mxu0 0
    %1223 = vmatpush.bf16.xpose.msra.mxu0 0
    %1224 = vmatpush.bf16.xpose.msra.mxu0 0
    %1225 = vmatpush.bf16.xpose.msra.mxu0 0
    %1226 = vmatpush.bf16.xpose.msra.mxu0 0
    %1227 = vmatpush.bf16.xpose.msra.mxu0 0
    %1228 = vmatpush.bf16.xpose.msra.mxu0 %v1219
    %1229 = vmatmul.bf16.gmra.mxu0 %v1216
    %v1230 = vpop.f32.mrf.mxu0
    %v1231 = vadd.f32 0.0, %v1230
    %v1232 = vpop.f32.mrf.mxu0
    %1233 = vdwg.mxu0
    %v1234 = vmul.f32 %v1202, 0.35355338
    %v1235 = vmul.f32 %v1231, 0.35355338
    %v1236 = vadd.f32 %v1234, %v229
    %v1237 = vadd.f32 %v1235, %v230
    %v1238 = vsel %vm338, %v1236, -inf
    %1239 = vmax.xlane.f32.xlu0 %v1238
    %v1240 = vpop.xlane.xlu0 %1239
    %v1241 = vsel %vm338, %v1237, -inf
    %1242 = vmax.xlane.f32.xlu0 %v1241
    %v1243 = vpop.xlane.xlu0 %1242
    %v1244 = vsub.f32 %v1236, %v1240
    %v1245 = vsub.f32 %v1237, %v1243
    %v1246 = vmul.f32 %v1244, 1.442695
    %v1247 = vpow.pop %v1246
    %v1248 = vmul.f32 %v1245, 1.442695
    %v1249 = vpow.pop %v1248
    %v1250 = vsel %vm338, %v1247, 0.0
    %1251 = vadd.xlane.f32.xlu0 %v1250
    %v1252 = vpop.xlane.xlu0 %1251
    %v1253 = vsel %vm338, %v1249, 0.0
    %1254 = vadd.xlane.f32.xlu0 %v1253
    %v1255 = vpop.xlane.xlu0 %1254
    %v1256 = vrcp.pop %v1252
    %v1257 = vrcp.pop %v1255
    %v1258 = vmul.f32 %v1247, %v1256
    %v1259 = vmul.f32 %v1249, %v1257
    %v1260 = vpack.c.bf16 %v1258, %v1258
    %v1261 = vpack.c.bf16 %v1259, %v1259
    %v1263 = vunpack.c.l.b16 %v1069
    %v1264 = vpack.c.b16 %v1263, %v1263
    %1265 = vrot.lane.b32.xlu0 %v1264, 120
    %v1266 = vpop.permute.xlu0 %1265
    %v1268 = vsel %vm338, %v1260, 0
    %v1271 = vsel %vm408, %v1266, 0
    %1273 = vmatpush.bf16.msra.mxu0 0
    %1274 = vmatpush.bf16.msra.mxu0 0
    %1275 = vmatpush.bf16.msra.mxu0 0
    %1276 = vmatpush.bf16.msra.mxu0 0
    %1277 = vmatpush.bf16.msra.mxu0 0
    %1278 = vmatpush.bf16.msra.mxu0 0
    %1279 = vmatpush.bf16.msra.mxu0 0
    %1280 = vmatpush.bf16.msra.mxu0 %v1271
    %1281 = vmatmul.bf16.gmra.mxu0 %v1268
    %v1282 = vpop.f32.mrf.mxu0
    %v1283 = vadd.f32 0.0, %v1282
    %v1284 = vpop.f32.mrf.mxu0
    %1285 = vdwg.mxu0
    %v1287 = vunpack.c.l.b16 %v1070
    %v1288 = vpack.c.b16 %v1287, %v1287
    %1289 = vrot.lane.b32.xlu0 %v1288, 120
    %v1290 = vpop.permute.xlu0 %1289
    %v1292 = vsel %vm338, %v1261, 0
    %v1295 = vsel %vm408, %v1290, 0
    %1297 = vmatpush.bf16.msra.mxu0 0
    %1298 = vmatpush.bf16.msra.mxu0 0
    %1299 = vmatpush.bf16.msra.mxu0 0
    %1300 = vmatpush.bf16.msra.mxu0 0
    %1301 = vmatpush.bf16.msra.mxu0 0
    %1302 = vmatpush.bf16.msra.mxu0 0
    %1303 = vmatpush.bf16.msra.mxu0 0
    %1304 = vmatpush.bf16.msra.mxu0 %v1295
    %1305 = vmatmul.bf16.gmra.mxu0 %v1292
    %v1306 = vpop.f32.mrf.mxu0
    %v1307 = vadd.f32 0.0, %v1306
    %v1308 = vpop.f32.mrf.mxu0
    %1309 = vdwg.mxu0
    %v1310 = vpack.c.bf16 %v1307, %v1283
    %v1312 = vsel %vm338, %v1310, 0
    %v1315 = vsel %vm408, %v974, 0
    %1317 = vmatpush.bf16.msra.mxu0 0
    %1318 = vmatpush.bf16.msra.mxu0 0
    %1319 = vmatpush.bf16.msra.mxu0 0
    %1320 = vmatpush.bf16.msra.mxu0 0
    %1321 = vmatpush.bf16.msra.mxu0 0
    %1322 = vmatpush.bf16.msra.mxu0 0
    %1323 = vmatpush.bf16.msra.mxu0 0
    %1324 = vmatpush.bf16.msra.mxu0 %v1315
    %1325 = vmatmul.bf16.gmra.mxu0 %v1312
    %v1326 = vpop.f32.mrf.mxu0
    %v1327 = vadd.f32 0.0, %v1326
    %v1328 = vpop.f32.mrf.mxu0
    %v1329 = vadd.f32 0.0, %v1328
    %1330 = vdwg.mxu0
    %v1332 = vsel %vm338, %v1175, 0
    %v1335 = vsel %vm408, %v973, 0
    %1337 = vmatpush.bf16.msra.mxu0 0
    %1338 = vmatpush.bf16.msra.mxu0 0
    %1339 = vmatpush.bf16.msra.mxu0 0
    %1340 = vmatpush.bf16.msra.mxu0 0
    %1341 = vmatpush.bf16.msra.mxu0 0
    %1342 = vmatpush.bf16.msra.mxu0 0
    %1343 = vmatpush.bf16.msra.mxu0 0
    %1344 = vmatpush.bf16.msra.mxu0 %v1335
    %1345 = vmatmul.bf16.gmra.mxu0 %v1332
    %v1346 = vpop.f32.mrf.mxu0
    %v1347 = vadd.f32 %v1327, %v1346
    %v1348 = vpop.f32.mrf.mxu0
    %v1349 = vadd.f32 %v1329, %v1348
    %1350 = vdwg.mxu0
    %1351 = vrot.lane.b32.xlu0 %v1178, 112
    %v1352 = vpop.permute.xlu0 %1351
    %1353 = vrot.lane.b32.xlu0 %v1183, 112
    %v1354 = vpop.permute.xlu0 %1353
    %v1356 = vsel %vm338, %v1352, 0
    %v1359 = vsel %vm338, %v1354, 0
    %1361 = vmatpush.bf16.xpose.msra.mxu0 0
    %1362 = vmatpush.bf16.xpose.msra.mxu0 0
    %1363 = vmatpush.bf16.xpose.msra.mxu0 0
    %1364 = vmatpush.bf16.xpose.msra.mxu0 0
    %1365 = vmatpush.bf16.xpose.msra.mxu0 0
    %1366 = vmatpush.bf16.xpose.msra.mxu0 0
    %1367 = vmatpush.bf16.xpose.msra.mxu0 0
    %1368 = vmatpush.bf16.xpose.msra.mxu0 %v1359
    %1369 = vmatmul.bf16.gmra.mxu0 %v1356
    %v1370 = vpop.f32.mrf.mxu0
    %v1371 = vadd.f32 0.0, %v1370
    %v1372 = vpop.f32.mrf.mxu0
    %1373 = vdwg.mxu0
    %1374 = vrot.lane.b32.xlu0 %v1207, 112
    %v1375 = vpop.permute.xlu0 %1374
    %1376 = vrot.lane.b32.xlu0 %v1212, 112
    %v1377 = vpop.permute.xlu0 %1376
    %v1379 = vsel %vm338, %v1375, 0
    %v1382 = vsel %vm338, %v1377, 0
    %1384 = vmatpush.bf16.xpose.msra.mxu0 0
    %1385 = vmatpush.bf16.xpose.msra.mxu0 0
    %1386 = vmatpush.bf16.xpose.msra.mxu0 0
    %1387 = vmatpush.bf16.xpose.msra.mxu0 0
    %1388 = vmatpush.bf16.xpose.msra.mxu0 0
    %1389 = vmatpush.bf16.xpose.msra.mxu0 0
    %1390 = vmatpush.bf16.xpose.msra.mxu0 0
    %1391 = vmatpush.bf16.xpose.msra.mxu0 %v1382
    %1392 = vmatmul.bf16.gmra.mxu0 %v1379
    %v1393 = vpop.f32.mrf.mxu0
    %v1394 = vadd.f32 0.0, %v1393
    %v1395 = vpop.f32.mrf.mxu0
    %1396 = vdwg.mxu0
    %v1397 = vmul.f32 %v1371, 0.35355338
    %v1398 = vmul.f32 %v1394, 0.35355338
    %v1399 = vadd.f32 %v1397, %v229
    %v1400 = vadd.f32 %v1398, %v230
    %v1401 = vsel %vm338, %v1399, -inf
    %1402 = vmax.xlane.f32.xlu0 %v1401
    %v1403 = vpop.xlane.xlu0 %1402
    %v1404 = vsel %vm338, %v1400, -inf
    %1405 = vmax.xlane.f32.xlu0 %v1404
    %v1406 = vpop.xlane.xlu0 %1405
    %v1407 = vsub.f32 %v1399, %v1403
    %v1408 = vsub.f32 %v1400, %v1406
    %v1409 = vmul.f32 %v1407, 1.442695
    %v1410 = vpow.pop %v1409
    %v1411 = vmul.f32 %v1408, 1.442695
    %v1412 = vpow.pop %v1411
    %v1413 = vsel %vm338, %v1410, 0.0
    %1414 = vadd.xlane.f32.xlu0 %v1413
    %v1415 = vpop.xlane.xlu0 %1414
    %v1416 = vsel %vm338, %v1412, 0.0
    %1417 = vadd.xlane.f32.xlu0 %v1416
    %v1418 = vpop.xlane.xlu0 %1417
    %v1419 = vrcp.pop %v1415
    %v1420 = vrcp.pop %v1418
    %v1421 = vmul.f32 %v1410, %v1419
    %v1422 = vmul.f32 %v1412, %v1420
    %v1423 = vpack.c.bf16 %v1421, %v1421
    %v1424 = vpack.c.bf16 %v1422, %v1422
    %1425 = vrot.lane.b32.xlu0 %v1264, 112
    %v1426 = vpop.permute.xlu0 %1425
    %v1428 = vsel %vm338, %v1423, 0
    %v1431 = vsel %vm408, %v1426, 0
    %1433 = vmatpush.bf16.msra.mxu0 0
    %1434 = vmatpush.bf16.msra.mxu0 0
    %1435 = vmatpush.bf16.msra.mxu0 0
    %1436 = vmatpush.bf16.msra.mxu0 0
    %1437 = vmatpush.bf16.msra.mxu0 0
    %1438 = vmatpush.bf16.msra.mxu0 0
    %1439 = vmatpush.bf16.msra.mxu0 0
    %1440 = vmatpush.bf16.msra.mxu0 %v1431
    %1441 = vmatmul.bf16.gmra.mxu0 %v1428
    %v1442 = vpop.f32.mrf.mxu0
    %v1443 = vadd.f32 0.0, %v1442
    %v1444 = vpop.f32.mrf.mxu0
    %1445 = vdwg.mxu0
    %1446 = vrot.lane.b32.xlu0 %v1288, 112
    %v1447 = vpop.permute.xlu0 %1446
    %v1449 = vsel %vm338, %v1424, 0
    %v1452 = vsel %vm408, %v1447, 0
    %1454 = vmatpush.bf16.msra.mxu0 0
    %1455 = vmatpush.bf16.msra.mxu0 0
    %1456 = vmatpush.bf16.msra.mxu0 0
    %1457 = vmatpush.bf16.msra.mxu0 0
    %1458 = vmatpush.bf16.msra.mxu0 0
    %1459 = vmatpush.bf16.msra.mxu0 0
    %1460 = vmatpush.bf16.msra.mxu0 0
    %1461 = vmatpush.bf16.msra.mxu0 %v1452
    %1462 = vmatmul.bf16.gmra.mxu0 %v1449
    %v1463 = vpop.f32.mrf.mxu0
    %v1464 = vadd.f32 0.0, %v1463
    %v1465 = vpop.f32.mrf.mxu0
    %1466 = vdwg.mxu0
    %v1467 = vpack.c.bf16 %v1464, %v1443
    %v1469 = vsel %vm338, %v1467, 0
    %v1472 = vsel %vm408, %v975, 0
    %1474 = vmatpush.bf16.msra.mxu0 0
    %1475 = vmatpush.bf16.msra.mxu0 0
    %1476 = vmatpush.bf16.msra.mxu0 0
    %1477 = vmatpush.bf16.msra.mxu0 0
    %1478 = vmatpush.bf16.msra.mxu0 0
    %1479 = vmatpush.bf16.msra.mxu0 0
    %1480 = vmatpush.bf16.msra.mxu0 0
    %1481 = vmatpush.bf16.msra.mxu0 %v1472
    %1482 = vmatmul.bf16.gmra.mxu0 %v1469
    %v1483 = vpop.f32.mrf.mxu0
    %v1484 = vadd.f32 0.0, %v1483
    %v1485 = vpop.f32.mrf.mxu0
    %v1486 = vadd.f32 0.0, %v1485
    %1487 = vdwg.mxu0
    %v1488 = vadd.f32 %v1347, %v1484
    %v1489 = vadd.f32 %v1349, %v1486
    %1490 = vrot.lane.b32.xlu0 %v1178, 104
    %v1491 = vpop.permute.xlu0 %1490
    %1492 = vrot.lane.b32.xlu0 %v1183, 104
    %v1493 = vpop.permute.xlu0 %1492
    %v1495 = vsel %vm338, %v1491, 0
    %v1498 = vsel %vm338, %v1493, 0
    %1500 = vmatpush.bf16.xpose.msra.mxu0 0
    %1501 = vmatpush.bf16.xpose.msra.mxu0 0
    %1502 = vmatpush.bf16.xpose.msra.mxu0 0
    %1503 = vmatpush.bf16.xpose.msra.mxu0 0
    %1504 = vmatpush.bf16.xpose.msra.mxu0 0
    %1505 = vmatpush.bf16.xpose.msra.mxu0 0
    %1506 = vmatpush.bf16.xpose.msra.mxu0 0
    %1507 = vmatpush.bf16.xpose.msra.mxu0 %v1498
    %1508 = vmatmul.bf16.gmra.mxu0 %v1495
    %v1509 = vpop.f32.mrf.mxu0
    %v1510 = vadd.f32 0.0, %v1509
    %v1511 = vpop.f32.mrf.mxu0
    %1512 = vdwg.mxu0
    %1513 = vrot.lane.b32.xlu0 %v1207, 104
    %v1514 = vpop.permute.xlu0 %1513
    %1515 = vrot.lane.b32.xlu0 %v1212, 104
    %v1516 = vpop.permute.xlu0 %1515
    %v1518 = vsel %vm338, %v1514, 0
    %v1521 = vsel %vm338, %v1516, 0
    %1523 = vmatpush.bf16.xpose.msra.mxu0 0
    %1524 = vmatpush.bf16.xpose.msra.mxu0 0
    %1525 = vmatpush.bf16.xpose.msra.mxu0 0
    %1526 = vmatpush.bf16.xpose.msra.mxu0 0
    %1527 = vmatpush.bf16.xpose.msra.mxu0 0
    %1528 = vmatpush.bf16.xpose.msra.mxu0 0
    %1529 = vmatpush.bf16.xpose.msra.mxu0 0
    %1530 = vmatpush.bf16.xpose.msra.mxu0 %v1521
    %1531 = vmatmul.bf16.gmra.mxu0 %v1518
    %v1532 = vpop.f32.mrf.mxu0
    %v1533 = vadd.f32 0.0, %v1532
    %v1534 = vpop.f32.mrf.mxu0
    %1535 = vdwg.mxu0
    %v1536 = vmul.f32 %v1510, 0.35355338
    %v1537 = vmul.f32 %v1533, 0.35355338
    %v1538 = vadd.f32 %v1536, %v229
    %v1539 = vadd.f32 %v1537, %v230
    %v1540 = vsel %vm338, %v1538, -inf
    %1541 = vmax.xlane.f32.xlu0 %v1540
    %v1542 = vpop.xlane.xlu0 %1541
    %v1543 = vsel %vm338, %v1539, -inf
    %1544 = vmax.xlane.f32.xlu0 %v1543
    %v1545 = vpop.xlane.xlu0 %1544
    %v1546 = vsub.f32 %v1538, %v1542
    %v1547 = vsub.f32 %v1539, %v1545
    %v1548 = vmul.f32 %v1546, 1.442695
    %v1549 = vpow.pop %v1548
    %v1550 = vmul.f32 %v1547, 1.442695
    %v1551 = vpow.pop %v1550
    %v1552 = vsel %vm338, %v1549, 0.0
    %1553 = vadd.xlane.f32.xlu0 %v1552
    %v1554 = vpop.xlane.xlu0 %1553
    %v1555 = vsel %vm338, %v1551, 0.0
    %1556 = vadd.xlane.f32.xlu0 %v1555
    %v1557 = vpop.xlane.xlu0 %1556
    %v1558 = vrcp.pop %v1554
    %v1559 = vrcp.pop %v1557
    %v1560 = vmul.f32 %v1549, %v1558
    %v1561 = vmul.f32 %v1551, %v1559
    %v1562 = vpack.c.bf16 %v1560, %v1560
    %v1563 = vpack.c.bf16 %v1561, %v1561
    %1564 = vrot.lane.b32.xlu0 %v1264, 104
    %v1565 = vpop.permute.xlu0 %1564
    %v1567 = vsel %vm338, %v1562, 0
    %v1570 = vsel %vm408, %v1565, 0
    %1572 = vmatpush.bf16.msra.mxu0 0
    %1573 = vmatpush.bf16.msra.mxu0 0
    %1574 = vmatpush.bf16.msra.mxu0 0
    %1575 = vmatpush.bf16.msra.mxu0 0
    %1576 = vmatpush.bf16.msra.mxu0 0
    %1577 = vmatpush.bf16.msra.mxu0 0
    %1578 = vmatpush.bf16.msra.mxu0 0
    %1579 = vmatpush.bf16.msra.mxu0 %v1570
    %1580 = vmatmul.bf16.gmra.mxu0 %v1567
    %v1581 = vpop.f32.mrf.mxu0
    %v1582 = vadd.f32 0.0, %v1581
    %v1583 = vpop.f32.mrf.mxu0
    %1584 = vdwg.mxu0
    %1585 = vrot.lane.b32.xlu0 %v1288, 104
    %v1586 = vpop.permute.xlu0 %1585
    %v1588 = vsel %vm338, %v1563, 0
    %v1591 = vsel %vm408, %v1586, 0
    %1593 = vmatpush.bf16.msra.mxu0 0
    %1594 = vmatpush.bf16.msra.mxu0 0
    %1595 = vmatpush.bf16.msra.mxu0 0
    %1596 = vmatpush.bf16.msra.mxu0 0
    %1597 = vmatpush.bf16.msra.mxu0 0
    %1598 = vmatpush.bf16.msra.mxu0 0
    %1599 = vmatpush.bf16.msra.mxu0 0
    %1600 = vmatpush.bf16.msra.mxu0 %v1591
    %1601 = vmatmul.bf16.gmra.mxu0 %v1588
    %v1602 = vpop.f32.mrf.mxu0
    %v1603 = vadd.f32 0.0, %v1602
    %v1604 = vpop.f32.mrf.mxu0
    %1605 = vdwg.mxu0
    %v1606 = vpack.c.bf16 %v1603, %v1582
    %v1608 = vsel %vm338, %v1606, 0
    %v1611 = vsel %vm408, %v976, 0
    %1613 = vmatpush.bf16.msra.mxu0 0
    %1614 = vmatpush.bf16.msra.mxu0 0
    %1615 = vmatpush.bf16.msra.mxu0 0
    %1616 = vmatpush.bf16.msra.mxu0 0
    %1617 = vmatpush.bf16.msra.mxu0 0
    %1618 = vmatpush.bf16.msra.mxu0 0
    %1619 = vmatpush.bf16.msra.mxu0 0
    %1620 = vmatpush.bf16.msra.mxu0 %v1611
    %1621 = vmatmul.bf16.gmra.mxu0 %v1608
    %v1622 = vpop.f32.mrf.mxu0
    %v1623 = vadd.f32 0.0, %v1622
    %v1624 = vpop.f32.mrf.mxu0
    %v1625 = vadd.f32 0.0, %v1624
    %1626 = vdwg.mxu0
    %v1627 = vadd.f32 %v1488, %v1623
    %v1628 = vadd.f32 %v1489, %v1625
    %v1629 = vadd.f32 %v1627, %v959
    %v1630 = vadd.f32 %v1628, %v960
    %v1631 = vsel %vm262, %v1629, 0.0
    %1632 = vadd.xlane.f32.xlu0 %v1631
    %v1633 = vpop.xlane.xlu0 %1632
    %v1634 = vsel %vm262, %v1630, 0.0
    %1635 = vadd.xlane.f32.xlu0 %v1634
    %v1636 = vpop.xlane.xlu0 %1635
    %v1637 = vmul.f32 %v1633, %v912
    %v1638 = vmul.f32 %v1636, %v912
    %v1639 = vsub.f32 %v1629, %v1637
    %v1640 = vsub.f32 %v1630, %v1638
    %v1641 = vmul.f32 %v1639, %v1639
    %v1642 = vmul.f32 %v1640, %v1640
    %v1643 = vsel %vm262, %v1641, 0.0
    %1644 = vadd.xlane.f32.xlu0 %v1643
    %v1645 = vpop.xlane.xlu0 %1644
    %v1646 = vsel %vm262, %v1642, 0.0
    %1647 = vadd.xlane.f32.xlu0 %v1646
    %v1648 = vpop.xlane.xlu0 %1647
    %v1649 = vmul.f32 %v1645, %v912
    %v1650 = vmul.f32 %v1648, %v912
    %v1651 = vadd.f32 %v1649, 1e-05
    %v1652 = vadd.f32 %v1650, 1e-05
    %v1653 = vrsqrt.pop %v1651
    %v1654 = vmul.f32 %v1653, %v1651
    %v1655 = vmul.f32 %v1654, %v1653
    %v1656 = vmul.f32 0.5, %v1655
    %v1657 = vsub.f32 1.5, %v1656
    %v1658 = vmul.f32 %v1653, %v1657
    %vm1659 = vweird.f32 %v1651
    %vm1660 = vweird.f32 %v1653
    %vm1661 = vmor %vm1659, %vm1660
    %v1662 = vsel %vm1661, %v1653, %v1658
    %v1663 = vrsqrt.pop %v1652
    %v1664 = vmul.f32 %v1663, %v1652
    %v1665 = vmul.f32 %v1664, %v1663
    %v1666 = vmul.f32 0.5, %v1665
    %v1667 = vsub.f32 1.5, %v1666
    %v1668 = vmul.f32 %v1663, %v1667
    %vm1669 = vweird.f32 %v1652
    %vm1670 = vweird.f32 %v1663
    %vm1671 = vmor %vm1669, %vm1670
    %v1672 = vsel %vm1671, %v1663, %v1668
    %v1673 = vmul.f32 %v1639, %v1662
    %v1674 = vmul.f32 %v1640, %v1672
    %v1676 = vperm.slane %v977, 0
    %v1678 = vmul.f32 %v1673, %v1676
    %v1679 = vmul.f32 %v1674, %v1676
    %v1681 = vperm.slane %v978, 0
    %v1683 = vadd.f32 %v1678, %v1681
    %v1684 = vadd.f32 %v1679, %v1681
    %v1685 = vpack.c.bf16 %v1684, %v1683
    %v1686 = vld [vmem:[#allocation17] sm:$0xf]
    %v1687 = vld [vmem:[#allocation17 + $0x4] sm:$0xf]
    %v1688 = vld [vmem:[#allocation17 + $0x8] sm:$0xf]
    %v1689 = vld [vmem:[#allocation17 + $0xc] sm:$0xf]
    %v1694 = vunpack.c.l.b16 %v1686
    %v1695 = vunpack.c.l.b16 %v1687
    %v1696 = vunpack.c.l.b16 %v1688
    %v1697 = vunpack.c.l.b16 %v1689
    %v1698 = vpack.c.b16 %v1695, %v1694
    %v1699 = vpack.c.b16 %v1697, %v1696
    %v1703 = vsel %vm262, %v1685, 0
    %1705 = vmatpush.bf16.msra.mxu0 0
    %1706 = vmatpush.bf16.msra.mxu0 0
    %1707 = vmatpush.bf16.msra.mxu0 0
    %1708 = vmatpush.bf16.msra.mxu0 0
    %1709 = vmatpush.bf16.msra.mxu0 0
    %1710 = vmatpush.bf16.msra.mxu0 0
    %1711 = vmatpush.bf16.msra.mxu0 %v1699
    %1712 = vmatpush.bf16.msra.mxu0 %v1698
    %1713 = vmatmul.bf16.gmra.mxu0 %v1703
    %v1714 = vpop.f32.mrf.mxu0
    %v1715 = vadd.f32 0.0, %v1714
    %v1716 = vpop.f32.mrf.mxu0
    %v1717 = vadd.f32 0.0, %v1716
    %1718 = vdwg.mxu0
    %v1719 = vmax.f32 %v1715, 0.0
    %v1720 = vmax.f32 %v1717, 0.0
    %v1721 = vpack.c.bf16 %v1720, %v1719
    %v1722 = vld [vmem:[%s17] sm:$0xf]
    %v1723 = vld [vmem:[%s17 + $0x4] sm:$0xf]
    %v1724 = vld [vmem:[%s17 + $0x8] sm:$0xf]
    %v1725 = vld [vmem:[%s17 + $0xc] sm:$0xf]
    %v1726 = vld [vmem:[%s17 + $0x10] sm:$0xf]
    %v1727 = vld [vmem:[%s17 + $0x14] sm:$0xf]
    %v1728 = vld [vmem:[%s17 + $0x18] sm:$0xf]
    %v1729 = vld [vmem:[%s17 + $0x1c] sm:$0xf]
    %v1738 = vunpack.c.l.b16 %v1722
    %v1739 = vunpack.c.l.b16 %v1723
    %v1740 = vunpack.c.l.b16 %v1724
    %v1741 = vunpack.c.l.b16 %v1725
    %v1742 = vunpack.c.l.b16 %v1726
    %v1743 = vunpack.c.l.b16 %v1727
    %v1744 = vunpack.c.l.b16 %v1728
    %v1745 = vunpack.c.l.b16 %v1729
    %v1746 = vpack.c.b16 %v1739, %v1738
    %v1747 = vpack.c.b16 %v1741, %v1740
    %v1748 = vpack.c.b16 %v1743, %v1742
    %v1749 = vpack.c.b16 %v1745, %v1744
    %vm1754 = vcmask 523264
    %v1756 = vsel %vm1754, %v1721, 0
    %1758 = vmatpush.bf16.msra.mxu0 0
    %1759 = vmatpush.bf16.msra.mxu0 0
    %1760 = vmatpush.bf16.msra.mxu0 0
    %1761 = vmatpush.bf16.msra.mxu0 0
    %1762 = vmatpush.bf16.msra.mxu0 %v1749
    %1763 = vmatpush.bf16.msra.mxu0 %v1748
    %1764 = vmatpush.bf16.msra.mxu0 %v1747
    %1765 = vmatpush.bf16.msra.mxu0 %v1746
    %1766 = vmatmul.bf16.gmra.mxu0 %v1756
    %v1767 = vpop.f32.mrf.mxu0
    %v1768 = vadd.f32 %v1683, %v1767
    %v1769 = vpop.f32.mrf.mxu0
    %v1770 = vadd.f32 %v1684, %v1769
    %1771 = vdwg.mxu0
    %v1772 = vld [vmem:[%s18] sm:$0x1]
    %v1773 = vld [vmem:[%s19] sm:$0x1]
    %v1774 = vsel %vm262, %v1768, 0.0
    %1775 = vadd.xlane.f32.xlu0 %v1774
    %v1776 = vpop.xlane.xlu0 %1775
    %v1777 = vsel %vm262, %v1770, 0.0
    %1778 = vadd.xlane.f32.xlu0 %v1777
    %v1779 = vpop.xlane.xlu0 %1778
    %v1780 = vmul.f32 %v1776, %v912
    %v1781 = vmul.f32 %v1779, %v912
    %v1782 = vsub.f32 %v1768, %v1780
    %v1783 = vsub.f32 %v1770, %v1781
    %v1784 = vmul.f32 %v1782, %v1782
    %v1785 = vmul.f32 %v1783, %v1783
    %v1786 = vsel %vm262, %v1784, 0.0
    %1787 = vadd.xlane.f32.xlu0 %v1786
    %v1788 = vpop.xlane.xlu0 %1787
    %v1789 = vsel %vm262, %v1785, 0.0
    %1790 = vadd.xlane.f32.xlu0 %v1789
    %v1791 = vpop.xlane.xlu0 %1790
    %v1792 = vmul.f32 %v1788, %v912
    %v1793 = vmul.f32 %v1791, %v912
    %v1794 = vadd.f32 %v1792, 1e-05
    %v1795 = vadd.f32 %v1793, 1e-05
    %v1796 = vrsqrt.pop %v1794
    %v1797 = vmul.f32 %v1796, %v1794
    %v1798 = vmul.f32 %v1797, %v1796
    %v1799 = vmul.f32 0.5, %v1798
    %v1800 = vsub.f32 1.5, %v1799
    %v1801 = vmul.f32 %v1796, %v1800
    %vm1802 = vweird.f32 %v1794
    %vm1803 = vweird.f32 %v1796
    %vm1804 = vmor %vm1802, %vm1803
    %v1805 = vsel %vm1804, %v1796, %v1801
    %v1806 = vrsqrt.pop %v1795
    %v1807 = vmul.f32 %v1806, %v1795
    %v1808 = vmul.f32 %v1807, %v1806
    %v1809 = vmul.f32 0.5, %v1808
    %v1810 = vsub.f32 1.5, %v1809
    %v1811 = vmul.f32 %v1806, %v1810
    %vm1812 = vweird.f32 %v1795
    %vm1813 = vweird.f32 %v1806
    %vm1814 = vmor %vm1812, %vm1813
    %v1815 = vsel %vm1814, %v1806, %v1811
    %v1816 = vmul.f32 %v1782, %v1805
    %v1817 = vmul.f32 %v1783, %v1815
    %v1819 = vperm.slane %v1772, 0
    %v1821 = vmul.f32 %v1816, %v1819
    %v1822 = vmul.f32 %v1817, %v1819
    %v1824 = vperm.slane %v1773, 0
    %v1826 = vadd.f32 %v1821, %v1824
    %v1827 = vadd.f32 %v1822, %v1824
    %s1828 = scalar_lea.vmem %s4, 16
    %v1829 = vld [vmem:[%s1828] sm:$0xf]
    %v1830 = vld [vmem:[%s1828 + $0x4] sm:$0xf]
    %v1831 = vld [vmem:[%s1828 + $0x8] sm:$0xf]
    %v1832 = vld [vmem:[%s1828 + $0xc] sm:$0xf]
    %s1833 = scalar_lea.vmem %s5, 16
    %v1834 = vld [vmem:[%s1833] sm:$0xf]
    %v1835 = vld [vmem:[%s1833 + $0x4] sm:$0xf]
    %v1836 = vld [vmem:[%s1833 + $0x8] sm:$0xf]
    %v1837 = vld [vmem:[%s1833 + $0xc] sm:$0xf]
    %s1838 = scalar_lea.vmem %s6, 16
    %v1839 = vld [vmem:[%s1838] sm:$0xf]
    %v1840 = vld [vmem:[%s1838 + $0x4] sm:$0xf]
    %v1841 = vld [vmem:[%s1838 + $0x8] sm:$0xf]
    %v1842 = vld [vmem:[%s1838 + $0xc] sm:$0xf]
    %s1843 = scalar_lea.vmem [#allocation10], 16
    %v1844 = vld [vmem:[%s1843] sm:$0xf]
    %v1845 = vld [vmem:[%s1843 + $0x4] sm:$0xf]
    %v1846 = vld [vmem:[%s1843 + $0x8] sm:$0xf]
    %v1847 = vld [vmem:[%s1843 + $0xc] sm:$0xf]
    %s1848 = scalar_lea.vmem %s8, 1
    %v1849 = vld [vmem:[%s1848] sm:$0x1]
    %s1850 = scalar_lea.vmem %s9, 1
    %v1851 = vld [vmem:[%s1850] sm:$0x1]
    %v1852 = vpack.c.bf16 %v1827, %v1826
    %v1857 = vunpack.c.l.b16 %v1829
    %v1858 = vunpack.c.l.b16 %v1830
    %v1859 = vunpack.c.l.b16 %v1831
    %v1860 = vunpack.c.l.b16 %v1832
    %v1861 = vpack.c.b16 %v1858, %v1857
    %v1862 = vpack.c.b16 %v1860, %v1859
    %v1866 = vsel %vm262, %v1852, 0
    %1868 = vmatpush.bf16.msra.mxu0 0
    %1869 = vmatpush.bf16.msra.mxu0 0
    %1870 = vmatpush.bf16.msra.mxu0 0
    %1871 = vmatpush.bf16.msra.mxu0 0
    %1872 = vmatpush.bf16.msra.mxu0 0
    %1873 = vmatpush.bf16.msra.mxu0 0
    %1874 = vmatpush.bf16.msra.mxu0 %v1862
    %1875 = vmatpush.bf16.msra.mxu0 %v1861
    %1876 = vmatmul.bf16.gmra.mxu0 %v1866
    %v1877 = vpop.f32.mrf.mxu0
    %v1878 = vadd.f32 0.0, %v1877
    %v1879 = vpop.f32.mrf.mxu0
    %v1880 = vadd.f32 0.0, %v1879
    %1881 = vdwg.mxu0
    %v1886 = vunpack.c.l.b16 %v1834
    %v1887 = vunpack.c.l.b16 %v1835
    %v1888 = vunpack.c.l.b16 %v1836
    %v1889 = vunpack.c.l.b16 %v1837
    %v1890 = vpack.c.b16 %v1887, %v1886
    %v1891 = vpack.c.b16 %v1889, %v1888
    %1894 = vmatpush.bf16.msra.mxu0 0
    %1895 = vmatpush.bf16.msra.mxu0 0
    %1896 = vmatpush.bf16.msra.mxu0 0
    %1897 = vmatpush.bf16.msra.mxu0 0
    %1898 = vmatpush.bf16.msra.mxu0 0
    %1899 = vmatpush.bf16.msra.mxu0 0
    %1900 = vmatpush.bf16.msra.mxu0 %v1891
    %1901 = vmatpush.bf16.msra.mxu0 %v1890
    %1902 = vmatmul.bf16.gmra.mxu0 %v1866
    %v1903 = vpop.f32.mrf.mxu0
    %v1904 = vadd.f32 0.0, %v1903
    %v1905 = vpop.f32.mrf.mxu0
    %v1906 = vadd.f32 0.0, %v1905
    %1907 = vdwg.mxu0
    %v1912 = vunpack.c.l.b16 %v1839
    %v1913 = vunpack.c.l.b16 %v1840
    %v1914 = vunpack.c.l.b16 %v1841
    %v1915 = vunpack.c.l.b16 %v1842
    %v1916 = vpack.c.b16 %v1913, %v1912
    %v1917 = vpack.c.b16 %v1915, %v1914
    %1920 = vmatpush.bf16.msra.mxu0 0
    %1921 = vmatpush.bf16.msra.mxu0 0
    %1922 = vmatpush.bf16.msra.mxu0 0
    %1923 = vmatpush.bf16.msra.mxu0 0
    %1924 = vmatpush.bf16.msra.mxu0 0
    %1925 = vmatpush.bf16.msra.mxu0 0
    %1926 = vmatpush.bf16.msra.mxu0 %v1917
    %1927 = vmatpush.bf16.msra.mxu0 %v1916
    %1928 = vmatmul.bf16.gmra.mxu0 %v1866
    %v1929 = vpop.f32.mrf.mxu0
    %v1930 = vadd.f32 0.0, %v1929
    %v1931 = vpop.f32.mrf.mxu0
    %v1932 = vadd.f32 0.0, %v1931
    %1933 = vdwg.mxu0
    %v1934 = vpack.c.bf16 %v1878, %v1878
    %v1935 = vpack.c.bf16 %v1880, %v1880
    %v1936 = vpack.c.bf16 %v1904, %v1904
    %v1937 = vpack.c.bf16 %v1906, %v1906
    %v1938 = vpack.c.bf16 %v1930, %v1930
    %v1939 = vpack.c.bf16 %v1932, %v1932
    %v1941 = vsel %vm338, %v1934, 0
    %v1944 = vsel %vm338, %v1936, 0
    %1946 = vmatpush.bf16.xpose.msra.mxu0 0
    %1947 = vmatpush.bf16.xpose.msra.mxu0 0
    %1948 = vmatpush.bf16.xpose.msra.mxu0 0
    %1949 = vmatpush.bf16.xpose.msra.mxu0 0
    %1950 = vmatpush.bf16.xpose.msra.mxu0 0
    %1951 = vmatpush.bf16.xpose.msra.mxu0 0
    %1952 = vmatpush.bf16.xpose.msra.mxu0 0
    %1953 = vmatpush.bf16.xpose.msra.mxu0 %v1944
    %1954 = vmatmul.bf16.gmra.mxu0 %v1941
    %v1955 = vpop.f32.mrf.mxu0
    %v1956 = vadd.f32 0.0, %v1955
    %v1957 = vpop.f32.mrf.mxu0
    %1958 = vdwg.mxu0
    %v1960 = vsel %vm338, %v1935, 0
    %v1963 = vsel %vm338, %v1937, 0
    %1965 = vmatpush.bf16.xpose.msra.mxu0 0
    %1966 = vmatpush.bf16.xpose.msra.mxu0 0
    %1967 = vmatpush.bf16.xpose.msra.mxu0 0
    %1968 = vmatpush.bf16.xpose.msra.mxu0 0
    %1969 = vmatpush.bf16.xpose.msra.mxu0 0
    %1970 = vmatpush.bf16.xpose.msra.mxu0 0
    %1971 = vmatpush.bf16.xpose.msra.mxu0 0
    %1972 = vmatpush.bf16.xpose.msra.mxu0 %v1963
    %1973 = vmatmul.bf16.gmra.mxu0 %v1960
    %v1974 = vpop.f32.mrf.mxu0
    %v1975 = vadd.f32 0.0, %v1974
    %v1976 = vpop.f32.mrf.mxu0
    %1977 = vdwg.mxu0
    %v1978 = vmul.f32 %v1956, 0.35355338
    %v1979 = vmul.f32 %v1975, 0.35355338
    %v1980 = vadd.f32 %v1978, %v227
    %v1981 = vadd.f32 %v1979, %v228
    %v1982 = vsel %vm338, %v1980, -inf
    %1983 = vmax.xlane.f32.xlu0 %v1982
    %v1984 = vpop.xlane.xlu0 %1983
    %v1985 = vsel %vm338, %v1981, -inf
    %1986 = vmax.xlane.f32.xlu0 %v1985
    %v1987 = vpop.xlane.xlu0 %1986
    %v1988 = vsub.f32 %v1980, %v1984
    %v1989 = vsub.f32 %v1981, %v1987
    %v1990 = vmul.f32 %v1988, 1.442695
    %v1991 = vpow.pop %v1990
    %v1992 = vmul.f32 %v1989, 1.442695
    %v1993 = vpow.pop %v1992
    %v1994 = vsel %vm338, %v1991, 0.0
    %1995 = vadd.xlane.f32.xlu0 %v1994
    %v1996 = vpop.xlane.xlu0 %1995
    %v1997 = vsel %vm338, %v1993, 0.0
    %1998 = vadd.xlane.f32.xlu0 %v1997
    %v1999 = vpop.xlane.xlu0 %1998
    %v2000 = vrcp.pop %v1996
    %v2001 = vrcp.pop %v1999
    %v2002 = vmul.f32 %v1991, %v2000
    %v2003 = vmul.f32 %v1993, %v2001
    %v2004 = vpack.c.bf16 %v2002, %v2002
    %v2005 = vpack.c.bf16 %v2003, %v2003
    %v2007 = vsel %vm338, %v2004, 0
    %v2010 = vsel %vm408, %v1938, 0
    %2012 = vmatpush.bf16.msra.mxu0 0
    %2013 = vmatpush.bf16.msra.mxu0 0
    %2014 = vmatpush.bf16.msra.mxu0 0
    %2015 = vmatpush.bf16.msra.mxu0 0
    %2016 = vmatpush.bf16.msra.mxu0 0
    %2017 = vmatpush.bf16.msra.mxu0 0
    %2018 = vmatpush.bf16.msra.mxu0 0
    %2019 = vmatpush.bf16.msra.mxu0 %v2010
    %2020 = vmatmul.bf16.gmra.mxu0 %v2007
    %v2021 = vpop.f32.mrf.mxu0
    %v2022 = vadd.f32 0.0, %v2021
    %v2023 = vpop.f32.mrf.mxu0
    %2024 = vdwg.mxu0
    %v2026 = vsel %vm338, %v2005, 0
    %v2029 = vsel %vm408, %v1939, 0
    %2031 = vmatpush.bf16.msra.mxu0 0
    %2032 = vmatpush.bf16.msra.mxu0 0
    %2033 = vmatpush.bf16.msra.mxu0 0
    %2034 = vmatpush.bf16.msra.mxu0 0
    %2035 = vmatpush.bf16.msra.mxu0 0
    %2036 = vmatpush.bf16.msra.mxu0 0
    %2037 = vmatpush.bf16.msra.mxu0 0
    %2038 = vmatpush.bf16.msra.mxu0 %v2029
    %2039 = vmatmul.bf16.gmra.mxu0 %v2026
    %v2040 = vpop.f32.mrf.mxu0
    %v2041 = vadd.f32 0.0, %v2040
    %v2042 = vpop.f32.mrf.mxu0
    %2043 = vdwg.mxu0
    %v2044 = vpack.c.bf16 %v2041, %v2022
    %v2046 = vunpack.c.l.b16 %v1934
    %v2047 = vpack.c.b16 %v2046, %v2046
    %2048 = vrot.lane.b32.xlu0 %v2047, 120
    %v2049 = vpop.permute.xlu0 %2048
    %v2051 = vunpack.c.l.b16 %v1936
    %v2052 = vpack.c.b16 %v2051, %v2051
    %2053 = vrot.lane.b32.xlu0 %v2052, 120
    %v2054 = vpop.permute.xlu0 %2053
    %v2056 = vsel %vm338, %v2049, 0
    %v2059 = vsel %vm338, %v2054, 0
    %2061 = vmatpush.bf16.xpose.msra.mxu0 0
    %2062 = vmatpush.bf16.xpose.msra.mxu0 0
    %2063 = vmatpush.bf16.xpose.msra.mxu0 0
    %2064 = vmatpush.bf16.xpose.msra.mxu0 0
    %2065 = vmatpush.bf16.xpose.msra.mxu0 0
    %2066 = vmatpush.bf16.xpose.msra.mxu0 0
    %2067 = vmatpush.bf16.xpose.msra.mxu0 0
    %2068 = vmatpush.bf16.xpose.msra.mxu0 %v2059
    %2069 = vmatmul.bf16.gmra.mxu0 %v2056
    %v2070 = vpop.f32.mrf.mxu0
    %v2071 = vadd.f32 0.0, %v2070
    %v2072 = vpop.f32.mrf.mxu0
    %2073 = vdwg.mxu0
    %v2075 = vunpack.c.l.b16 %v1935
    %v2076 = vpack.c.b16 %v2075, %v2075
    %2077 = vrot.lane.b32.xlu0 %v2076, 120
    %v2078 = vpop.permute.xlu0 %2077
    %v2080 = vunpack.c.l.b16 %v1937
    %v2081 = vpack.c.b16 %v2080, %v2080
    %2082 = vrot.lane.b32.xlu0 %v2081, 120
    %v2083 = vpop.permute.xlu0 %2082
    %v2085 = vsel %vm338, %v2078, 0
    %v2088 = vsel %vm338, %v2083, 0
    %2090 = vmatpush.bf16.xpose.msra.mxu0 0
    %2091 = vmatpush.bf16.xpose.msra.mxu0 0
    %2092 = vmatpush.bf16.xpose.msra.mxu0 0
    %2093 = vmatpush.bf16.xpose.msra.mxu0 0
    %2094 = vmatpush.bf16.xpose.msra.mxu0 0
    %2095 = vmatpush.bf16.xpose.msra.mxu0 0
    %2096 = vmatpush.bf16.xpose.msra.mxu0 0
    %2097 = vmatpush.bf16.xpose.msra.mxu0 %v2088
    %2098 = vmatmul.bf16.gmra.mxu0 %v2085
    %v2099 = vpop.f32.mrf.mxu0
    %v2100 = vadd.f32 0.0, %v2099
    %v2101 = vpop.f32.mrf.mxu0
    %2102 = vdwg.mxu0
    %v2103 = vmul.f32 %v2071, 0.35355338
    %v2104 = vmul.f32 %v2100, 0.35355338
    %v2105 = vadd.f32 %v2103, %v227
    %v2106 = vadd.f32 %v2104, %v228
    %v2107 = vsel %vm338, %v2105, -inf
    %2108 = vmax.xlane.f32.xlu0 %v2107
    %v2109 = vpop.xlane.xlu0 %2108
    %v2110 = vsel %vm338, %v2106, -inf
    %2111 = vmax.xlane.f32.xlu0 %v2110
    %v2112 = vpop.xlane.xlu0 %2111
    %v2113 = vsub.f32 %v2105, %v2109
    %v2114 = vsub.f32 %v2106, %v2112
    %v2115 = vmul.f32 %v2113, 1.442695
    %v2116 = vpow.pop %v2115
    %v2117 = vmul.f32 %v2114, 1.442695
    %v2118 = vpow.pop %v2117
    %v2119 = vsel %vm338, %v2116, 0.0
    %2120 = vadd.xlane.f32.xlu0 %v2119
    %v2121 = vpop.xlane.xlu0 %2120
    %v2122 = vsel %vm338, %v2118, 0.0
    %2123 = vadd.xlane.f32.xlu0 %v2122
    %v2124 = vpop.xlane.xlu0 %2123
    %v2125 = vrcp.pop %v2121
    %v2126 = vrcp.pop %v2124
    %v2127 = vmul.f32 %v2116, %v2125
    %v2128 = vmul.f32 %v2118, %v2126
    %v2129 = vpack.c.bf16 %v2127, %v2127
    %v2130 = vpack.c.bf16 %v2128, %v2128
    %v2132 = vunpack.c.l.b16 %v1938
    %v2133 = vpack.c.b16 %v2132, %v2132
    %2134 = vrot.lane.b32.xlu0 %v2133, 120
    %v2135 = vpop.permute.xlu0 %2134
    %v2137 = vsel %vm338, %v2129, 0
    %v2140 = vsel %vm408, %v2135, 0
    %2142 = vmatpush.bf16.msra.mxu0 0
    %2143 = vmatpush.bf16.msra.mxu0 0
    %2144 = vmatpush.bf16.msra.mxu0 0
    %2145 = vmatpush.bf16.msra.mxu0 0
    %2146 = vmatpush.bf16.msra.mxu0 0
    %2147 = vmatpush.bf16.msra.mxu0 0
    %2148 = vmatpush.bf16.msra.mxu0 0
    %2149 = vmatpush.bf16.msra.mxu0 %v2140
    %2150 = vmatmul.bf16.gmra.mxu0 %v2137
    %v2151 = vpop.f32.mrf.mxu0
    %v2152 = vadd.f32 0.0, %v2151
    %v2153 = vpop.f32.mrf.mxu0
    %2154 = vdwg.mxu0
    %v2156 = vunpack.c.l.b16 %v1939
    %v2157 = vpack.c.b16 %v2156, %v2156
    %2158 = vrot.lane.b32.xlu0 %v2157, 120
    %v2159 = vpop.permute.xlu0 %2158
    %v2161 = vsel %vm338, %v2130, 0
    %v2164 = vsel %vm408, %v2159, 0
    %2166 = vmatpush.bf16.msra.mxu0 0
    %2167 = vmatpush.bf16.msra.mxu0 0
    %2168 = vmatpush.bf16.msra.mxu0 0
    %2169 = vmatpush.bf16.msra.mxu0 0
    %2170 = vmatpush.bf16.msra.mxu0 0
    %2171 = vmatpush.bf16.msra.mxu0 0
    %2172 = vmatpush.bf16.msra.mxu0 0
    %2173 = vmatpush.bf16.msra.mxu0 %v2164
    %2174 = vmatmul.bf16.gmra.mxu0 %v2161
    %v2175 = vpop.f32.mrf.mxu0
    %v2176 = vadd.f32 0.0, %v2175
    %v2177 = vpop.f32.mrf.mxu0
    %2178 = vdwg.mxu0
    %v2179 = vpack.c.bf16 %v2176, %v2152
    %v2181 = vsel %vm338, %v2179, 0
    %v2184 = vsel %vm408, %v1845, 0
    %2186 = vmatpush.bf16.msra.mxu0 0
    %2187 = vmatpush.bf16.msra.mxu0 0
    %2188 = vmatpush.bf16.msra.mxu0 0
    %2189 = vmatpush.bf16.msra.mxu0 0
    %2190 = vmatpush.bf16.msra.mxu0 0
    %2191 = vmatpush.bf16.msra.mxu0 0
    %2192 = vmatpush.bf16.msra.mxu0 0
    %2193 = vmatpush.bf16.msra.mxu0 %v2184
    %2194 = vmatmul.bf16.gmra.mxu0 %v2181
    %v2195 = vpop.f32.mrf.mxu0
    %v2196 = vadd.f32 0.0, %v2195
    %v2197 = vpop.f32.mrf.mxu0
    %v2198 = vadd.f32 0.0, %v2197
    %2199 = vdwg.mxu0
    %v2201 = vsel %vm338, %v2044, 0
    %v2204 = vsel %vm408, %v1844, 0
    %2206 = vmatpush.bf16.msra.mxu0 0
    %2207 = vmatpush.bf16.msra.mxu0 0
    %2208 = vmatpush.bf16.msra.mxu0 0
    %2209 = vmatpush.bf16.msra.mxu0 0
    %2210 = vmatpush.bf16.msra.mxu0 0
    %2211 = vmatpush.bf16.msra.mxu0 0
    %2212 = vmatpush.bf16.msra.mxu0 0
    %2213 = vmatpush.bf16.msra.mxu0 %v2204
    %2214 = vmatmul.bf16.gmra.mxu0 %v2201
    %v2215 = vpop.f32.mrf.mxu0
    %v2216 = vadd.f32 %v2196, %v2215
    %v2217 = vpop.f32.mrf.mxu0
    %v2218 = vadd.f32 %v2198, %v2217
    %2219 = vdwg.mxu0
    %2220 = vrot.lane.b32.xlu0 %v2047, 112
    %v2221 = vpop.permute.xlu0 %2220
    %2222 = vrot.lane.b32.xlu0 %v2052, 112
    %v2223 = vpop.permute.xlu0 %2222
    %v2225 = vsel %vm338, %v2221, 0
    %v2228 = vsel %vm338, %v2223, 0
    %2230 = vmatpush.bf16.xpose.msra.mxu0 0
    %2231 = vmatpush.bf16.xpose.msra.mxu0 0
    %2232 = vmatpush.bf16.xpose.msra.mxu0 0
    %2233 = vmatpush.bf16.xpose.msra.mxu0 0
    %2234 = vmatpush.bf16.xpose.msra.mxu0 0
    %2235 = vmatpush.bf16.xpose.msra.mxu0 0
    %2236 = vmatpush.bf16.xpose.msra.mxu0 0
    %2237 = vmatpush.bf16.xpose.msra.mxu0 %v2228
    %2238 = vmatmul.bf16.gmra.mxu0 %v2225
    %v2239 = vpop.f32.mrf.mxu0
    %v2240 = vadd.f32 0.0, %v2239
    %v2241 = vpop.f32.mrf.mxu0
    %2242 = vdwg.mxu0
    %2243 = vrot.lane.b32.xlu0 %v2076, 112
    %v2244 = vpop.permute.xlu0 %2243
    %2245 = vrot.lane.b32.xlu0 %v2081, 112
    %v2246 = vpop.permute.xlu0 %2245
    %v2248 = vsel %vm338, %v2244, 0
    %v2251 = vsel %vm338, %v2246, 0
    %2253 = vmatpush.bf16.xpose.msra.mxu0 0
    %2254 = vmatpush.bf16.xpose.msra.mxu0 0
    %2255 = vmatpush.bf16.xpose.msra.mxu0 0
    %2256 = vmatpush.bf16.xpose.msra.mxu0 0
    %2257 = vmatpush.bf16.xpose.msra.mxu0 0
    %2258 = vmatpush.bf16.xpose.msra.mxu0 0
    %2259 = vmatpush.bf16.xpose.msra.mxu0 0
    %2260 = vmatpush.bf16.xpose.msra.mxu0 %v2251
    %2261 = vmatmul.bf16.gmra.mxu0 %v2248
    %v2262 = vpop.f32.mrf.mxu0
    %v2263 = vadd.f32 0.0, %v2262
    %v2264 = vpop.f32.mrf.mxu0
    %2265 = vdwg.mxu0
    %v2266 = vmul.f32 %v2240, 0.35355338
    %v2267 = vmul.f32 %v2263, 0.35355338
    %v2268 = vadd.f32 %v2266, %v227
    %v2269 = vadd.f32 %v2267, %v228
    %v2270 = vsel %vm338, %v2268, -inf
    %2271 = vmax.xlane.f32.xlu0 %v2270
    %v2272 = vpop.xlane.xlu0 %2271
    %v2273 = vsel %vm338, %v2269, -inf
    %2274 = vmax.xlane.f32.xlu0 %v2273
    %v2275 = vpop.xlane.xlu0 %2274
    %v2276 = vsub.f32 %v2268, %v2272
    %v2277 = vsub.f32 %v2269, %v2275
    %v2278 = vmul.f32 %v2276, 1.442695
    %v2279 = vpow.pop %v2278
    %v2280 = vmul.f32 %v2277, 1.442695
    %v2281 = vpow.pop %v2280
    %v2282 = vsel %vm338, %v2279, 0.0
    %2283 = vadd.xlane.f32.xlu0 %v2282
    %v2284 = vpop.xlane.xlu0 %2283
    %v2285 = vsel %vm338, %v2281, 0.0
    %2286 = vadd.xlane.f32.xlu0 %v2285
    %v2287 = vpop.xlane.xlu0 %2286
    %v2288 = vrcp.pop %v2284
    %v2289 = vrcp.pop %v2287
    %v2290 = vmul.f32 %v2279, %v2288
    %v2291 = vmul.f32 %v2281, %v2289
    %v2292 = vpack.c.bf16 %v2290, %v2290
    %v2293 = vpack.c.bf16 %v2291, %v2291
    %2294 = vrot.lane.b32.xlu0 %v2133, 112
    %v2295 = vpop.permute.xlu0 %2294
    %v2297 = vsel %vm338, %v2292, 0
    %v2300 = vsel %vm408, %v2295, 0
    %2302 = vmatpush.bf16.msra.mxu0 0
    %2303 = vmatpush.bf16.msra.mxu0 0
    %2304 = vmatpush.bf16.msra.mxu0 0
    %2305 = vmatpush.bf16.msra.mxu0 0
    %2306 = vmatpush.bf16.msra.mxu0 0
    %2307 = vmatpush.bf16.msra.mxu0 0
    %2308 = vmatpush.bf16.msra.mxu0 0
    %2309 = vmatpush.bf16.msra.mxu0 %v2300
    %2310 = vmatmul.bf16.gmra.mxu0 %v2297
    %v2311 = vpop.f32.mrf.mxu0
    %v2312 = vadd.f32 0.0, %v2311
    %v2313 = vpop.f32.mrf.mxu0
    %2314 = vdwg.mxu0
    %2315 = vrot.lane.b32.xlu0 %v2157, 112
    %v2316 = vpop.permute.xlu0 %2315
    %v2318 = vsel %vm338, %v2293, 0
    %v2321 = vsel %vm408, %v2316, 0
    %2323 = vmatpush.bf16.msra.mxu0 0
    %2324 = vmatpush.bf16.msra.mxu0 0
    %2325 = vmatpush.bf16.msra.mxu0 0
    %2326 = vmatpush.bf16.msra.mxu0 0
    %2327 = vmatpush.bf16.msra.mxu0 0
    %2328 = vmatpush.bf16.msra.mxu0 0
    %2329 = vmatpush.bf16.msra.mxu0 0
    %2330 = vmatpush.bf16.msra.mxu0 %v2321
    %2331 = vmatmul.bf16.gmra.mxu0 %v2318
    %v2332 = vpop.f32.mrf.mxu0
    %v2333 = vadd.f32 0.0, %v2332
    %v2334 = vpop.f32.mrf.mxu0
    %2335 = vdwg.mxu0
    %v2336 = vpack.c.bf16 %v2333, %v2312
    %v2338 = vsel %vm338, %v2336, 0
    %v2341 = vsel %vm408, %v1846, 0
    %2343 = vmatpush.bf16.msra.mxu0 0
    %2344 = vmatpush.bf16.msra.mxu0 0
    %2345 = vmatpush.bf16.msra.mxu0 0
    %2346 = vmatpush.bf16.msra.mxu0 0
    %2347 = vmatpush.bf16.msra.mxu0 0
    %2348 = vmatpush.bf16.msra.mxu0 0
    %2349 = vmatpush.bf16.msra.mxu0 0
    %2350 = vmatpush.bf16.msra.mxu0 %v2341
    %2351 = vmatmul.bf16.gmra.mxu0 %v2338
    %v2352 = vpop.f32.mrf.mxu0
    %v2353 = vadd.f32 0.0, %v2352
    %v2354 = vpop.f32.mrf.mxu0
    %v2355 = vadd.f32 0.0, %v2354
    %2356 = vdwg.mxu0
    %v2357 = vadd.f32 %v2216, %v2353
    %v2358 = vadd.f32 %v2218, %v2355
    %2359 = vrot.lane.b32.xlu0 %v2047, 104
    %v2360 = vpop.permute.xlu0 %2359
    %2361 = vrot.lane.b32.xlu0 %v2052, 104
    %v2362 = vpop.permute.xlu0 %2361
    %v2364 = vsel %vm338, %v2360, 0
    %v2367 = vsel %vm338, %v2362, 0
    %2369 = vmatpush.bf16.xpose.msra.mxu0 0
    %2370 = vmatpush.bf16.xpose.msra.mxu0 0
    %2371 = vmatpush.bf16.xpose.msra.mxu0 0
    %2372 = vmatpush.bf16.xpose.msra.mxu0 0
    %2373 = vmatpush.bf16.xpose.msra.mxu0 0
    %2374 = vmatpush.bf16.xpose.msra.mxu0 0
    %2375 = vmatpush.bf16.xpose.msra.mxu0 0
    %2376 = vmatpush.bf16.xpose.msra.mxu0 %v2367
    %2377 = vmatmul.bf16.gmra.mxu0 %v2364
    %v2378 = vpop.f32.mrf.mxu0
    %v2379 = vadd.f32 0.0, %v2378
    %v2380 = vpop.f32.mrf.mxu0
    %2381 = vdwg.mxu0
    %2382 = vrot.lane.b32.xlu0 %v2076, 104
    %v2383 = vpop.permute.xlu0 %2382
    %2384 = vrot.lane.b32.xlu0 %v2081, 104
    %v2385 = vpop.permute.xlu0 %2384
    %v2387 = vsel %vm338, %v2383, 0
    %v2390 = vsel %vm338, %v2385, 0
    %2392 = vmatpush.bf16.xpose.msra.mxu0 0
    %2393 = vmatpush.bf16.xpose.msra.mxu0 0
    %2394 = vmatpush.bf16.xpose.msra.mxu0 0
    %2395 = vmatpush.bf16.xpose.msra.mxu0 0
    %2396 = vmatpush.bf16.xpose.msra.mxu0 0
    %2397 = vmatpush.bf16.xpose.msra.mxu0 0
    %2398 = vmatpush.bf16.xpose.msra.mxu0 0
    %2399 = vmatpush.bf16.xpose.msra.mxu0 %v2390
    %2400 = vmatmul.bf16.gmra.mxu0 %v2387
    %v2401 = vpop.f32.mrf.mxu0
    %v2402 = vadd.f32 0.0, %v2401
    %v2403 = vpop.f32.mrf.mxu0
    %2404 = vdwg.mxu0
    %v2405 = vmul.f32 %v2379, 0.35355338
    %v2406 = vmul.f32 %v2402, 0.35355338
    %v2407 = vadd.f32 %v2405, %v227
    %v2408 = vadd.f32 %v2406, %v228
    %v2409 = vsel %vm338, %v2407, -inf
    %2410 = vmax.xlane.f32.xlu0 %v2409
    %v2411 = vpop.xlane.xlu0 %2410
    %v2412 = vsel %vm338, %v2408, -inf
    %2413 = vmax.xlane.f32.xlu0 %v2412
    %v2414 = vpop.xlane.xlu0 %2413
    %v2415 = vsub.f32 %v2407, %v2411
    %v2416 = vsub.f32 %v2408, %v2414
    %v2417 = vmul.f32 %v2415, 1.442695
    %v2418 = vpow.pop %v2417
    %v2419 = vmul.f32 %v2416, 1.442695
    %v2420 = vpow.pop %v2419
    %v2421 = vsel %vm338, %v2418, 0.0
    %2422 = vadd.xlane.f32.xlu0 %v2421
    %v2423 = vpop.xlane.xlu0 %2422
    %v2424 = vsel %vm338, %v2420, 0.0
    %2425 = vadd.xlane.f32.xlu0 %v2424
    %v2426 = vpop.xlane.xlu0 %2425
    %v2427 = vrcp.pop %v2423
    %v2428 = vrcp.pop %v2426
    %v2429 = vmul.f32 %v2418, %v2427
    %v2430 = vmul.f32 %v2420, %v2428
    %v2431 = vpack.c.bf16 %v2429, %v2429
    %v2432 = vpack.c.bf16 %v2430, %v2430
    %2433 = vrot.lane.b32.xlu0 %v2133, 104
    %v2434 = vpop.permute.xlu0 %2433
    %v2436 = vsel %vm338, %v2431, 0
    %v2439 = vsel %vm408, %v2434, 0
    %2441 = vmatpush.bf16.msra.mxu0 0
    %2442 = vmatpush.bf16.msra.mxu0 0
    %2443 = vmatpush.bf16.msra.mxu0 0
    %2444 = vmatpush.bf16.msra.mxu0 0
    %2445 = vmatpush.bf16.msra.mxu0 0
    %2446 = vmatpush.bf16.msra.mxu0 0
    %2447 = vmatpush.bf16.msra.mxu0 0
    %2448 = vmatpush.bf16.msra.mxu0 %v2439
    %2449 = vmatmul.bf16.gmra.mxu0 %v2436
    %v2450 = vpop.f32.mrf.mxu0
    %v2451 = vadd.f32 0.0, %v2450
    %v2452 = vpop.f32.mrf.mxu0
    %2453 = vdwg.mxu0
    %2454 = vrot.lane.b32.xlu0 %v2157, 104
    %v2455 = vpop.permute.xlu0 %2454
    %v2457 = vsel %vm338, %v2432, 0
    %v2460 = vsel %vm408, %v2455, 0
    %2462 = vmatpush.bf16.msra.mxu0 0
    %2463 = vmatpush.bf16.msra.mxu0 0
    %2464 = vmatpush.bf16.msra.mxu0 0
    %2465 = vmatpush.bf16.msra.mxu0 0
    %2466 = vmatpush.bf16.msra.mxu0 0
    %2467 = vmatpush.bf16.msra.mxu0 0
    %2468 = vmatpush.bf16.msra.mxu0 0
    %2469 = vmatpush.bf16.msra.mxu0 %v2460
    %2470 = vmatmul.bf16.gmra.mxu0 %v2457
    %v2471 = vpop.f32.mrf.mxu0
    %v2472 = vadd.f32 0.0, %v2471
    %v2473 = vpop.f32.mrf.mxu0
    %2474 = vdwg.mxu0
    %v2475 = vpack.c.bf16 %v2472, %v2451
    %v2477 = vsel %vm338, %v2475, 0
    %v2480 = vsel %vm408, %v1847, 0
    %2482 = vmatpush.bf16.msra.mxu0 0
    %2483 = vmatpush.bf16.msra.mxu0 0
    %2484 = vmatpush.bf16.msra.mxu0 0
    %2485 = vmatpush.bf16.msra.mxu0 0
    %2486 = vmatpush.bf16.msra.mxu0 0
    %2487 = vmatpush.bf16.msra.mxu0 0
    %2488 = vmatpush.bf16.msra.mxu0 0
    %2489 = vmatpush.bf16.msra.mxu0 %v2480
    %2490 = vmatmul.bf16.gmra.mxu0 %v2477
    %v2491 = vpop.f32.mrf.mxu0
    %v2492 = vadd.f32 0.0, %v2491
    %v2493 = vpop.f32.mrf.mxu0
    %v2494 = vadd.f32 0.0, %v2493
    %2495 = vdwg.mxu0
    %v2496 = vadd.f32 %v2357, %v2492
    %v2497 = vadd.f32 %v2358, %v2494
    %v2498 = vadd.f32 %v2496, %v1826
    %v2499 = vadd.f32 %v2497, %v1827
    %v2500 = vsel %vm262, %v2498, 0.0
    %2501 = vadd.xlane.f32.xlu0 %v2500
    %v2502 = vpop.xlane.xlu0 %2501
    %v2503 = vsel %vm262, %v2499, 0.0
    %2504 = vadd.xlane.f32.xlu0 %v2503
    %v2505 = vpop.xlane.xlu0 %2504
    %v2506 = vmul.f32 %v2502, %v912
    %v2507 = vmul.f32 %v2505, %v912
    %v2508 = vsub.f32 %v2498, %v2506
    %v2509 = vsub.f32 %v2499, %v2507
    %v2510 = vmul.f32 %v2508, %v2508
    %v2511 = vmul.f32 %v2509, %v2509
    %v2512 = vsel %vm262, %v2510, 0.0
    %2513 = vadd.xlane.f32.xlu0 %v2512
    %v2514 = vpop.xlane.xlu0 %2513
    %v2515 = vsel %vm262, %v2511, 0.0
    %2516 = vadd.xlane.f32.xlu0 %v2515
    %v2517 = vpop.xlane.xlu0 %2516
    %v2518 = vmul.f32 %v2514, %v912
    %v2519 = vmul.f32 %v2517, %v912
    %v2520 = vadd.f32 %v2518, 1e-05
    %v2521 = vadd.f32 %v2519, 1e-05
    %v2522 = vrsqrt.pop %v2520
    %v2523 = vmul.f32 %v2522, %v2520
    %v2524 = vmul.f32 %v2523, %v2522
    %v2525 = vmul.f32 0.5, %v2524
    %v2526 = vsub.f32 1.5, %v2525
    %v2527 = vmul.f32 %v2522, %v2526
    %vm2528 = vweird.f32 %v2520
    %vm2529 = vweird.f32 %v2522
    %vm2530 = vmor %vm2528, %vm2529
    %v2531 = vsel %vm2530, %v2522, %v2527
    %v2532 = vrsqrt.pop %v2521
    %v2533 = vmul.f32 %v2532, %v2521
    %v2534 = vmul.f32 %v2533, %v2532
    %v2535 = vmul.f32 0.5, %v2534
    %v2536 = vsub.f32 1.5, %v2535
    %v2537 = vmul.f32 %v2532, %v2536
    %vm2538 = vweird.f32 %v2521
    %vm2539 = vweird.f32 %v2532
    %vm2540 = vmor %vm2538, %vm2539
    %v2541 = vsel %vm2540, %v2532, %v2537
    %v2542 = vmul.f32 %v2508, %v2531
    %v2543 = vmul.f32 %v2509, %v2541
    %v2545 = vperm.slane %v1849, 0
    %v2547 = vmul.f32 %v2542, %v2545
    %v2548 = vmul.f32 %v2543, %v2545
    %v2550 = vperm.slane %v1851, 0
    %v2552 = vadd.f32 %v2547, %v2550
    %v2553 = vadd.f32 %v2548, %v2550
    %s2554 = scalar_lea.vmem [#allocation11], 16
    %v2555 = vld [vmem:[%s2554] sm:$0xf]
    %v2556 = vld [vmem:[%s2554 + $0x4] sm:$0xf]
    %v2557 = vld [vmem:[%s2554 + $0x8] sm:$0xf]
    %v2558 = vld [vmem:[%s2554 + $0xc] sm:$0xf]
    %s2559 = scalar_lea.vmem [#allocation13], 16
    %v2560 = vld [vmem:[%s2559] sm:$0xf]
    %v2561 = vld [vmem:[%s2559 + $0x4] sm:$0xf]
    %v2562 = vld [vmem:[%s2559 + $0x8] sm:$0xf]
    %v2563 = vld [vmem:[%s2559 + $0xc] sm:$0xf]
    %s2564 = scalar_lea.vmem [#allocation14], 16
    %v2565 = vld [vmem:[%s2564] sm:$0xf]
    %v2566 = vld [vmem:[%s2564 + $0x4] sm:$0xf]
    %v2567 = vld [vmem:[%s2564 + $0x8] sm:$0xf]
    %v2568 = vld [vmem:[%s2564 + $0xc] sm:$0xf]
    %s2569 = scalar_lea.vmem [#allocation16], 16
    %v2570 = vld [vmem:[%s2569] sm:$0xf]
    %v2571 = vld [vmem:[%s2569 + $0x4] sm:$0xf]
    %v2572 = vld [vmem:[%s2569 + $0x8] sm:$0xf]
    %v2573 = vld [vmem:[%s2569 + $0xc] sm:$0xf]
    %s2574 = scalar_lea.vmem %s14, 1
    %v2575 = vld [vmem:[%s2574] sm:$0x1]
    %s2576 = scalar_lea.vmem %s15, 1
    %v2577 = vld [vmem:[%s2576] sm:$0x1]
    %v2578 = vpack.c.bf16 %v2553, %v2552
    %v2583 = vunpack.c.l.b16 %v2555
    %v2584 = vunpack.c.l.b16 %v2556
    %v2585 = vunpack.c.l.b16 %v2557
    %v2586 = vunpack.c.l.b16 %v2558
    %v2587 = vpack.c.b16 %v2584, %v2583
    %v2588 = vpack.c.b16 %v2586, %v2585
    %v2592 = vsel %vm262, %v2578, 0
    %2594 = vmatpush.bf16.msra.mxu0 0
    %2595 = vmatpush.bf16.msra.mxu0 0
    %2596 = vmatpush.bf16.msra.mxu0 0
    %2597 = vmatpush.bf16.msra.mxu0 0
    %2598 = vmatpush.bf16.msra.mxu0 0
    %2599 = vmatpush.bf16.msra.mxu0 0
    %2600 = vmatpush.bf16.msra.mxu0 %v2588
    %2601 = vmatpush.bf16.msra.mxu0 %v2587
    %2602 = vmatmul.bf16.gmra.mxu0 %v2592
    %v2603 = vpop.f32.mrf.mxu0
    %v2604 = vadd.f32 0.0, %v2603
    %v2605 = vpop.f32.mrf.mxu0
    %v2606 = vadd.f32 0.0, %v2605
    %2607 = vdwg.mxu0
    %v2612 = vunpack.c.l.b16 %v2560
    %v2613 = vunpack.c.l.b16 %v2561
    %v2614 = vunpack.c.l.b16 %v2562
    %v2615 = vunpack.c.l.b16 %v2563
    %v2616 = vpack.c.b16 %v2613, %v2612
    %v2617 = vpack.c.b16 %v2615, %v2614
    %2620 = vmatpush.bf16.msra.mxu0 0
    %2621 = vmatpush.bf16.msra.mxu0 0
    %2622 = vmatpush.bf16.msra.mxu0 0
    %2623 = vmatpush.bf16.msra.mxu0 0
    %2624 = vmatpush.bf16.msra.mxu0 0
    %2625 = vmatpush.bf16.msra.mxu0 0
    %2626 = vmatpush.bf16.msra.mxu0 %v2617
    %2627 = vmatpush.bf16.msra.mxu0 %v2616
    %2628 = vmatmul.bf16.gmra.mxu0 %v1023
    %v2629 = vpop.f32.mrf.mxu0
    %v2630 = vadd.f32 0.0, %v2629
    %v2631 = vpop.f32.mrf.mxu0
    %v2632 = vadd.f32 0.0, %v2631
    %2633 = vdwg.mxu0
    %v2638 = vunpack.c.l.b16 %v2565
    %v2639 = vunpack.c.l.b16 %v2566
    %v2640 = vunpack.c.l.b16 %v2567
    %v2641 = vunpack.c.l.b16 %v2568
    %v2642 = vpack.c.b16 %v2639, %v2638
    %v2643 = vpack.c.b16 %v2641, %v2640
    %2646 = vmatpush.bf16.msra.mxu0 0
    %2647 = vmatpush.bf16.msra.mxu0 0
    %2648 = vmatpush.bf16.msra.mxu0 0
    %2649 = vmatpush.bf16.msra.mxu0 0
    %2650 = vmatpush.bf16.msra.mxu0 0
    %2651 = vmatpush.bf16.msra.mxu0 0
    %2652 = vmatpush.bf16.msra.mxu0 %v2643
    %2653 = vmatpush.bf16.msra.mxu0 %v2642
    %2654 = vmatmul.bf16.gmra.mxu0 %v1023
    %v2655 = vpop.f32.mrf.mxu0
    %v2656 = vadd.f32 0.0, %v2655
    %v2657 = vpop.f32.mrf.mxu0
    %v2658 = vadd.f32 0.0, %v2657
    %2659 = vdwg.mxu0
    %v2660 = vpack.c.bf16 %v2604, %v2604
    %v2661 = vpack.c.bf16 %v2606, %v2606
    %v2662 = vpack.c.bf16 %v2630, %v2630
    %v2663 = vpack.c.bf16 %v2632, %v2632
    %v2664 = vpack.c.bf16 %v2656, %v2656
    %v2665 = vpack.c.bf16 %v2658, %v2658
    %v2667 = vsel %vm338, %v2660, 0
    %v2670 = vsel %vm338, %v2662, 0
    %2672 = vmatpush.bf16.xpose.msra.mxu0 0
    %2673 = vmatpush.bf16.xpose.msra.mxu0 0
    %2674 = vmatpush.bf16.xpose.msra.mxu0 0
    %2675 = vmatpush.bf16.xpose.msra.mxu0 0
    %2676 = vmatpush.bf16.xpose.msra.mxu0 0
    %2677 = vmatpush.bf16.xpose.msra.mxu0 0
    %2678 = vmatpush.bf16.xpose.msra.mxu0 0
    %2679 = vmatpush.bf16.xpose.msra.mxu0 %v2670
    %2680 = vmatmul.bf16.gmra.mxu0 %v2667
    %v2681 = vpop.f32.mrf.mxu0
    %v2682 = vadd.f32 0.0, %v2681
    %v2683 = vpop.f32.mrf.mxu0
    %2684 = vdwg.mxu0
    %v2686 = vsel %vm338, %v2661, 0
    %v2689 = vsel %vm338, %v2663, 0
    %2691 = vmatpush.bf16.xpose.msra.mxu0 0
    %2692 = vmatpush.bf16.xpose.msra.mxu0 0
    %2693 = vmatpush.bf16.xpose.msra.mxu0 0
    %2694 = vmatpush.bf16.xpose.msra.mxu0 0
    %2695 = vmatpush.bf16.xpose.msra.mxu0 0
    %2696 = vmatpush.bf16.xpose.msra.mxu0 0
    %2697 = vmatpush.bf16.xpose.msra.mxu0 0
    %2698 = vmatpush.bf16.xpose.msra.mxu0 %v2689
    %2699 = vmatmul.bf16.gmra.mxu0 %v2686
    %v2700 = vpop.f32.mrf.mxu0
    %v2701 = vadd.f32 0.0, %v2700
    %v2702 = vpop.f32.mrf.mxu0
    %2703 = vdwg.mxu0
    %v2704 = vmul.f32 %v2682, 0.35355338
    %v2705 = vmul.f32 %v2701, 0.35355338
    %v2706 = vadd.f32 %v2704, %v229
    %v2707 = vadd.f32 %v2705, %v230
    %v2708 = vsel %vm338, %v2706, -inf
    %2709 = vmax.xlane.f32.xlu0 %v2708
    %v2710 = vpop.xlane.xlu0 %2709
    %v2711 = vsel %vm338, %v2707, -inf
    %2712 = vmax.xlane.f32.xlu0 %v2711
    %v2713 = vpop.xlane.xlu0 %2712
    %v2714 = vsub.f32 %v2706, %v2710
    %v2715 = vsub.f32 %v2707, %v2713
    %v2716 = vmul.f32 %v2714, 1.442695
    %v2717 = vpow.pop %v2716
    %v2718 = vmul.f32 %v2715, 1.442695
    %v2719 = vpow.pop %v2718
    %v2720 = vsel %vm338, %v2717, 0.0
    %2721 = vadd.xlane.f32.xlu0 %v2720
    %v2722 = vpop.xlane.xlu0 %2721
    %v2723 = vsel %vm338, %v2719, 0.0
    %2724 = vadd.xlane.f32.xlu0 %v2723
    %v2725 = vpop.xlane.xlu0 %2724
    %v2726 = vrcp.pop %v2722
    %v2727 = vrcp.pop %v2725
    %v2728 = vmul.f32 %v2717, %v2726
    %v2729 = vmul.f32 %v2719, %v2727
    %v2730 = vpack.c.bf16 %v2728, %v2728
    %v2731 = vpack.c.bf16 %v2729, %v2729
    %v2733 = vsel %vm338, %v2730, 0
    %v2736 = vsel %vm408, %v2664, 0
    %2738 = vmatpush.bf16.msra.mxu0 0
    %2739 = vmatpush.bf16.msra.mxu0 0
    %2740 = vmatpush.bf16.msra.mxu0 0
    %2741 = vmatpush.bf16.msra.mxu0 0
    %2742 = vmatpush.bf16.msra.mxu0 0
    %2743 = vmatpush.bf16.msra.mxu0 0
    %2744 = vmatpush.bf16.msra.mxu0 0
    %2745 = vmatpush.bf16.msra.mxu0 %v2736
    %2746 = vmatmul.bf16.gmra.mxu0 %v2733
    %v2747 = vpop.f32.mrf.mxu0
    %v2748 = vadd.f32 0.0, %v2747
    %v2749 = vpop.f32.mrf.mxu0
    %2750 = vdwg.mxu0
    %v2752 = vsel %vm338, %v2731, 0
    %v2755 = vsel %vm408, %v2665, 0
    %2757 = vmatpush.bf16.msra.mxu0 0
    %2758 = vmatpush.bf16.msra.mxu0 0
    %2759 = vmatpush.bf16.msra.mxu0 0
    %2760 = vmatpush.bf16.msra.mxu0 0
    %2761 = vmatpush.bf16.msra.mxu0 0
    %2762 = vmatpush.bf16.msra.mxu0 0
    %2763 = vmatpush.bf16.msra.mxu0 0
    %2764 = vmatpush.bf16.msra.mxu0 %v2755
    %2765 = vmatmul.bf16.gmra.mxu0 %v2752
    %v2766 = vpop.f32.mrf.mxu0
    %v2767 = vadd.f32 0.0, %v2766
    %v2768 = vpop.f32.mrf.mxu0
    %2769 = vdwg.mxu0
    %v2770 = vpack.c.bf16 %v2767, %v2748
    %v2772 = vunpack.c.l.b16 %v2660
    %v2773 = vpack.c.b16 %v2772, %v2772
    %2774 = vrot.lane.b32.xlu0 %v2773, 120
    %v2775 = vpop.permute.xlu0 %2774
    %v2777 = vunpack.c.l.b16 %v2662
    %v2778 = vpack.c.b16 %v2777, %v2777
    %2779 = vrot.lane.b32.xlu0 %v2778, 120
    %v2780 = vpop.permute.xlu0 %2779
    %v2782 = vsel %vm338, %v2775, 0
    %v2785 = vsel %vm338, %v2780, 0
    %2787 = vmatpush.bf16.xpose.msra.mxu0 0
    %2788 = vmatpush.bf16.xpose.msra.mxu0 0
    %2789 = vmatpush.bf16.xpose.msra.mxu0 0
    %2790 = vmatpush.bf16.xpose.msra.mxu0 0
    %2791 = vmatpush.bf16.xpose.msra.mxu0 0
    %2792 = vmatpush.bf16.xpose.msra.mxu0 0
    %2793 = vmatpush.bf16.xpose.msra.mxu0 0
    %2794 = vmatpush.bf16.xpose.msra.mxu0 %v2785
    %2795 = vmatmul.bf16.gmra.mxu0 %v2782
    %v2796 = vpop.f32.mrf.mxu0
    %v2797 = vadd.f32 0.0, %v2796
    %v2798 = vpop.f32.mrf.mxu0
    %2799 = vdwg.mxu0
    %v2801 = vunpack.c.l.b16 %v2661
    %v2802 = vpack.c.b16 %v2801, %v2801
    %2803 = vrot.lane.b32.xlu0 %v2802, 120
    %v2804 = vpop.permute.xlu0 %2803
    %v2806 = vunpack.c.l.b16 %v2663
    %v2807 = vpack.c.b16 %v2806, %v2806
    %2808 = vrot.lane.b32.xlu0 %v2807, 120
    %v2809 = vpop.permute.xlu0 %2808
    %v2811 = vsel %vm338, %v2804, 0
    %v2814 = vsel %vm338, %v2809, 0
    %2816 = vmatpush.bf16.xpose.msra.mxu0 0
    %2817 = vmatpush.bf16.xpose.msra.mxu0 0
    %2818 = vmatpush.bf16.xpose.msra.mxu0 0
    %2819 = vmatpush.bf16.xpose.msra.mxu0 0
    %2820 = vmatpush.bf16.xpose.msra.mxu0 0
    %2821 = vmatpush.bf16.xpose.msra.mxu0 0
    %2822 = vmatpush.bf16.xpose.msra.mxu0 0
    %2823 = vmatpush.bf16.xpose.msra.mxu0 %v2814
    %2824 = vmatmul.bf16.gmra.mxu0 %v2811
    %v2825 = vpop.f32.mrf.mxu0
    %v2826 = vadd.f32 0.0, %v2825
    %v2827 = vpop.f32.mrf.mxu0
    %2828 = vdwg.mxu0
    %v2829 = vmul.f32 %v2797, 0.35355338
    %v2830 = vmul.f32 %v2826, 0.35355338
    %v2831 = vadd.f32 %v2829, %v229
    %v2832 = vadd.f32 %v2830, %v230
    %v2833 = vsel %vm338, %v2831, -inf
    %2834 = vmax.xlane.f32.xlu0 %v2833
    %v2835 = vpop.xlane.xlu0 %2834
    %v2836 = vsel %vm338, %v2832, -inf
    %2837 = vmax.xlane.f32.xlu0 %v2836
    %v2838 = vpop.xlane.xlu0 %2837
    %v2839 = vsub.f32 %v2831, %v2835
    %v2840 = vsub.f32 %v2832, %v2838
    %v2841 = vmul.f32 %v2839, 1.442695
    %v2842 = vpow.pop %v2841
    %v2843 = vmul.f32 %v2840, 1.442695
    %v2844 = vpow.pop %v2843
    %v2845 = vsel %vm338, %v2842, 0.0
    %2846 = vadd.xlane.f32.xlu0 %v2845
    %v2847 = vpop.xlane.xlu0 %2846
    %v2848 = vsel %vm338, %v2844, 0.0
    %2849 = vadd.xlane.f32.xlu0 %v2848
    %v2850 = vpop.xlane.xlu0 %2849
    %v2851 = vrcp.pop %v2847
    %v2852 = vrcp.pop %v2850
    %v2853 = vmul.f32 %v2842, %v2851
    %v2854 = vmul.f32 %v2844, %v2852
    %v2855 = vpack.c.bf16 %v2853, %v2853
    %v2856 = vpack.c.bf16 %v2854, %v2854
    %v2858 = vunpack.c.l.b16 %v2664
    %v2859 = vpack.c.b16 %v2858, %v2858
    %2860 = vrot.lane.b32.xlu0 %v2859, 120
    %v2861 = vpop.permute.xlu0 %2860
    %v2863 = vsel %vm338, %v2855, 0
    %v2866 = vsel %vm408, %v2861, 0
    %2868 = vmatpush.bf16.msra.mxu0 0
    %2869 = vmatpush.bf16.msra.mxu0 0
    %2870 = vmatpush.bf16.msra.mxu0 0
    %2871 = vmatpush.bf16.msra.mxu0 0
    %2872 = vmatpush.bf16.msra.mxu0 0
    %2873 = vmatpush.bf16.msra.mxu0 0
    %2874 = vmatpush.bf16.msra.mxu0 0
    %2875 = vmatpush.bf16.msra.mxu0 %v2866
    %2876 = vmatmul.bf16.gmra.mxu0 %v2863
    %v2877 = vpop.f32.mrf.mxu0
    %v2878 = vadd.f32 0.0, %v2877
    %v2879 = vpop.f32.mrf.mxu0
    %2880 = vdwg.mxu0
    %v2882 = vunpack.c.l.b16 %v2665
    %v2883 = vpack.c.b16 %v2882, %v2882
    %2884 = vrot.lane.b32.xlu0 %v2883, 120
    %v2885 = vpop.permute.xlu0 %2884
    %v2887 = vsel %vm338, %v2856, 0
    %v2890 = vsel %vm408, %v2885, 0
    %2892 = vmatpush.bf16.msra.mxu0 0
    %2893 = vmatpush.bf16.msra.mxu0 0
    %2894 = vmatpush.bf16.msra.mxu0 0
    %2895 = vmatpush.bf16.msra.mxu0 0
    %2896 = vmatpush.bf16.msra.mxu0 0
    %2897 = vmatpush.bf16.msra.mxu0 0
    %2898 = vmatpush.bf16.msra.mxu0 0
    %2899 = vmatpush.bf16.msra.mxu0 %v2890
    %2900 = vmatmul.bf16.gmra.mxu0 %v2887
    %v2901 = vpop.f32.mrf.mxu0
    %v2902 = vadd.f32 0.0, %v2901
    %v2903 = vpop.f32.mrf.mxu0
    %2904 = vdwg.mxu0
    %v2905 = vpack.c.bf16 %v2902, %v2878
    %v2907 = vsel %vm338, %v2905, 0
    %v2910 = vsel %vm408, %v2571, 0
    %2912 = vmatpush.bf16.msra.mxu0 0
    %2913 = vmatpush.bf16.msra.mxu0 0
    %2914 = vmatpush.bf16.msra.mxu0 0
    %2915 = vmatpush.bf16.msra.mxu0 0
    %2916 = vmatpush.bf16.msra.mxu0 0
    %2917 = vmatpush.bf16.msra.mxu0 0
    %2918 = vmatpush.bf16.msra.mxu0 0
    %2919 = vmatpush.bf16.msra.mxu0 %v2910
    %2920 = vmatmul.bf16.gmra.mxu0 %v2907
    %v2921 = vpop.f32.mrf.mxu0
    %v2922 = vadd.f32 0.0, %v2921
    %v2923 = vpop.f32.mrf.mxu0
    %v2924 = vadd.f32 0.0, %v2923
    %2925 = vdwg.mxu0
    %v2927 = vsel %vm338, %v2770, 0
    %v2930 = vsel %vm408, %v2570, 0
    %2932 = vmatpush.bf16.msra.mxu0 0
    %2933 = vmatpush.bf16.msra.mxu0 0
    %2934 = vmatpush.bf16.msra.mxu0 0
    %2935 = vmatpush.bf16.msra.mxu0 0
    %2936 = vmatpush.bf16.msra.mxu0 0
    %2937 = vmatpush.bf16.msra.mxu0 0
    %2938 = vmatpush.bf16.msra.mxu0 0
    %2939 = vmatpush.bf16.msra.mxu0 %v2930
    %2940 = vmatmul.bf16.gmra.mxu0 %v2927
    %v2941 = vpop.f32.mrf.mxu0
    %v2942 = vadd.f32 %v2922, %v2941
    %v2943 = vpop.f32.mrf.mxu0
    %v2944 = vadd.f32 %v2924, %v2943
    %2945 = vdwg.mxu0
    %2946 = vrot.lane.b32.xlu0 %v2773, 112
    %v2947 = vpop.permute.xlu0 %2946
    %2948 = vrot.lane.b32.xlu0 %v2778, 112
    %v2949 = vpop.permute.xlu0 %2948
    %v2951 = vsel %vm338, %v2947, 0
    %v2954 = vsel %vm338, %v2949, 0
    %2956 = vmatpush.bf16.xpose.msra.mxu0 0
    %2957 = vmatpush.bf16.xpose.msra.mxu0 0
    %2958 = vmatpush.bf16.xpose.msra.mxu0 0
    %2959 = vmatpush.bf16.xpose.msra.mxu0 0
    %2960 = vmatpush.bf16.xpose.msra.mxu0 0
    %2961 = vmatpush.bf16.xpose.msra.mxu0 0
    %2962 = vmatpush.bf16.xpose.msra.mxu0 0
    %2963 = vmatpush.bf16.xpose.msra.mxu0 %v2954
    %2964 = vmatmul.bf16.gmra.mxu0 %v2951
    %v2965 = vpop.f32.mrf.mxu0
    %v2966 = vadd.f32 0.0, %v2965
    %v2967 = vpop.f32.mrf.mxu0
    %2968 = vdwg.mxu0
    %2969 = vrot.lane.b32.xlu0 %v2802, 112
    %v2970 = vpop.permute.xlu0 %2969
    %2971 = vrot.lane.b32.xlu0 %v2807, 112
    %v2972 = vpop.permute.xlu0 %2971
    %v2974 = vsel %vm338, %v2970, 0
    %v2977 = vsel %vm338, %v2972, 0
    %2979 = vmatpush.bf16.xpose.msra.mxu0 0
    %2980 = vmatpush.bf16.xpose.msra.mxu0 0
    %2981 = vmatpush.bf16.xpose.msra.mxu0 0
    %2982 = vmatpush.bf16.xpose.msra.mxu0 0
    %2983 = vmatpush.bf16.xpose.msra.mxu0 0
    %2984 = vmatpush.bf16.xpose.msra.mxu0 0
    %2985 = vmatpush.bf16.xpose.msra.mxu0 0
    %2986 = vmatpush.bf16.xpose.msra.mxu0 %v2977
    %2987 = vmatmul.bf16.gmra.mxu0 %v2974
    %v2988 = vpop.f32.mrf.mxu0
    %v2989 = vadd.f32 0.0, %v2988
    %v2990 = vpop.f32.mrf.mxu0
    %2991 = vdwg.mxu0
    %v2992 = vmul.f32 %v2966, 0.35355338
    %v2993 = vmul.f32 %v2989, 0.35355338
    %v2994 = vadd.f32 %v2992, %v229
    %v2995 = vadd.f32 %v2993, %v230
    %v2996 = vsel %vm338, %v2994, -inf
    %2997 = vmax.xlane.f32.xlu0 %v2996
    %v2998 = vpop.xlane.xlu0 %2997
    %v2999 = vsel %vm338, %v2995, -inf
    %3000 = vmax.xlane.f32.xlu0 %v2999
    %v3001 = vpop.xlane.xlu0 %3000
    %v3002 = vsub.f32 %v2994, %v2998
    %v3003 = vsub.f32 %v2995, %v3001
    %v3004 = vmul.f32 %v3002, 1.442695
    %v3005 = vpow.pop %v3004
    %v3006 = vmul.f32 %v3003, 1.442695
    %v3007 = vpow.pop %v3006
    %v3008 = vsel %vm338, %v3005, 0.0
    %3009 = vadd.xlane.f32.xlu0 %v3008
    %v3010 = vpop.xlane.xlu0 %3009
    %v3011 = vsel %vm338, %v3007, 0.0
    %3012 = vadd.xlane.f32.xlu0 %v3011
    %v3013 = vpop.xlane.xlu0 %3012
    %v3014 = vrcp.pop %v3010
    %v3015 = vrcp.pop %v3013
    %v3016 = vmul.f32 %v3005, %v3014
    %v3017 = vmul.f32 %v3007, %v3015
    %v3018 = vpack.c.bf16 %v3016, %v3016
    %v3019 = vpack.c.bf16 %v3017, %v3017
    %3020 = vrot.lane.b32.xlu0 %v2859, 112
    %v3021 = vpop.permute.xlu0 %3020
    %v3023 = vsel %vm338, %v3018, 0
    %v3026 = vsel %vm408, %v3021, 0
    %3028 = vmatpush.bf16.msra.mxu0 0
    %3029 = vmatpush.bf16.msra.mxu0 0
    %3030 = vmatpush.bf16.msra.mxu0 0
    %3031 = vmatpush.bf16.msra.mxu0 0
    %3032 = vmatpush.bf16.msra.mxu0 0
    %3033 = vmatpush.bf16.msra.mxu0 0
    %3034 = vmatpush.bf16.msra.mxu0 0
    %3035 = vmatpush.bf16.msra.mxu0 %v3026
    %3036 = vmatmul.bf16.gmra.mxu0 %v3023
    %v3037 = vpop.f32.mrf.mxu0
    %v3038 = vadd.f32 0.0, %v3037
    %v3039 = vpop.f32.mrf.mxu0
    %3040 = vdwg.mxu0
    %3041 = vrot.lane.b32.xlu0 %v2883, 112
    %v3042 = vpop.permute.xlu0 %3041
    %v3044 = vsel %vm338, %v3019, 0
    %v3047 = vsel %vm408, %v3042, 0
    %3049 = vmatpush.bf16.msra.mxu0 0
    %3050 = vmatpush.bf16.msra.mxu0 0
    %3051 = vmatpush.bf16.msra.mxu0 0
    %3052 = vmatpush.bf16.msra.mxu0 0
    %3053 = vmatpush.bf16.msra.mxu0 0
    %3054 = vmatpush.bf16.msra.mxu0 0
    %3055 = vmatpush.bf16.msra.mxu0 0
    %3056 = vmatpush.bf16.msra.mxu0 %v3047
    %3057 = vmatmul.bf16.gmra.mxu0 %v3044
    %v3058 = vpop.f32.mrf.mxu0
    %v3059 = vadd.f32 0.0, %v3058
    %v3060 = vpop.f32.mrf.mxu0
    %3061 = vdwg.mxu0
    %v3062 = vpack.c.bf16 %v3059, %v3038
    %v3064 = vsel %vm338, %v3062, 0
    %v3067 = vsel %vm408, %v2572, 0
    %3069 = vmatpush.bf16.msra.mxu0 0
    %3070 = vmatpush.bf16.msra.mxu0 0
    %3071 = vmatpush.bf16.msra.mxu0 0
    %3072 = vmatpush.bf16.msra.mxu0 0
    %3073 = vmatpush.bf16.msra.mxu0 0
    %3074 = vmatpush.bf16.msra.mxu0 0
    %3075 = vmatpush.bf16.msra.mxu0 0
    %3076 = vmatpush.bf16.msra.mxu0 %v3067
    %3077 = vmatmul.bf16.gmra.mxu0 %v3064
    %v3078 = vpop.f32.mrf.mxu0
    %v3079 = vadd.f32 0.0, %v3078
    %v3080 = vpop.f32.mrf.mxu0
    %v3081 = vadd.f32 0.0, %v3080
    %3082 = vdwg.mxu0
    %v3083 = vadd.f32 %v2942, %v3079
    %v3084 = vadd.f32 %v2944, %v3081
    %3085 = vrot.lane.b32.xlu0 %v2773, 104
    %v3086 = vpop.permute.xlu0 %3085
    %3087 = vrot.lane.b32.xlu0 %v2778, 104
    %v3088 = vpop.permute.xlu0 %3087
    %v3090 = vsel %vm338, %v3086, 0
    %v3093 = vsel %vm338, %v3088, 0
    %3095 = vmatpush.bf16.xpose.msra.mxu0 0
    %3096 = vmatpush.bf16.xpose.msra.mxu0 0
    %3097 = vmatpush.bf16.xpose.msra.mxu0 0
    %3098 = vmatpush.bf16.xpose.msra.mxu0 0
    %3099 = vmatpush.bf16.xpose.msra.mxu0 0
    %3100 = vmatpush.bf16.xpose.msra.mxu0 0
    %3101 = vmatpush.bf16.xpose.msra.mxu0 0
    %3102 = vmatpush.bf16.xpose.msra.mxu0 %v3093
    %3103 = vmatmul.bf16.gmra.mxu0 %v3090
    %v3104 = vpop.f32.mrf.mxu0
    %v3105 = vadd.f32 0.0, %v3104
    %v3106 = vpop.f32.mrf.mxu0
    %3107 = vdwg.mxu0
    %3108 = vrot.lane.b32.xlu0 %v2802, 104
    %v3109 = vpop.permute.xlu0 %3108
    %3110 = vrot.lane.b32.xlu0 %v2807, 104
    %v3111 = vpop.permute.xlu0 %3110
    %v3113 = vsel %vm338, %v3109, 0
    %v3116 = vsel %vm338, %v3111, 0
    %3118 = vmatpush.bf16.xpose.msra.mxu0 0
    %3119 = vmatpush.bf16.xpose.msra.mxu0 0
    %3120 = vmatpush.bf16.xpose.msra.mxu0 0
    %3121 = vmatpush.bf16.xpose.msra.mxu0 0
    %3122 = vmatpush.bf16.xpose.msra.mxu0 0
    %3123 = vmatpush.bf16.xpose.msra.mxu0 0
    %3124 = vmatpush.bf16.xpose.msra.mxu0 0
    %3125 = vmatpush.bf16.xpose.msra.mxu0 %v3116
    %3126 = vmatmul.bf16.gmra.mxu0 %v3113
    %v3127 = vpop.f32.mrf.mxu0
    %v3128 = vadd.f32 0.0, %v3127
    %v3129 = vpop.f32.mrf.mxu0
    %3130 = vdwg.mxu0
    %v3131 = vmul.f32 %v3105, 0.35355338
    %v3132 = vmul.f32 %v3128, 0.35355338
    %v3133 = vadd.f32 %v3131, %v229
    %v3134 = vadd.f32 %v3132, %v230
    %v3135 = vsel %vm338, %v3133, -inf
    %3136 = vmax.xlane.f32.xlu0 %v3135
    %v3137 = vpop.xlane.xlu0 %3136
    %v3138 = vsel %vm338, %v3134, -inf
    %3139 = vmax.xlane.f32.xlu0 %v3138
    %v3140 = vpop.xlane.xlu0 %3139
    %v3141 = vsub.f32 %v3133, %v3137
    %v3142 = vsub.f32 %v3134, %v3140
    %v3143 = vmul.f32 %v3141, 1.442695
    %v3144 = vpow.pop %v3143
    %v3145 = vmul.f32 %v3142, 1.442695
    %v3146 = vpow.pop %v3145
    %v3147 = vsel %vm338, %v3144, 0.0
    %3148 = vadd.xlane.f32.xlu0 %v3147
    %v3149 = vpop.xlane.xlu0 %3148
    %v3150 = vsel %vm338, %v3146, 0.0
    %3151 = vadd.xlane.f32.xlu0 %v3150
    %v3152 = vpop.xlane.xlu0 %3151
    %v3153 = vrcp.pop %v3149
    %v3154 = vrcp.pop %v3152
    %v3155 = vmul.f32 %v3144, %v3153
    %v3156 = vmul.f32 %v3146, %v3154
    %v3157 = vpack.c.bf16 %v3155, %v3155
    %v3158 = vpack.c.bf16 %v3156, %v3156
    %3159 = vrot.lane.b32.xlu0 %v2859, 104
    %v3160 = vpop.permute.xlu0 %3159
    %v3162 = vsel %vm338, %v3157, 0
    %v3165 = vsel %vm408, %v3160, 0
    %3167 = vmatpush.bf16.msra.mxu0 0
    %3168 = vmatpush.bf16.msra.mxu0 0
    %3169 = vmatpush.bf16.msra.mxu0 0
    %3170 = vmatpush.bf16.msra.mxu0 0
    %3171 = vmatpush.bf16.msra.mxu0 0
    %3172 = vmatpush.bf16.msra.mxu0 0
    %3173 = vmatpush.bf16.msra.mxu0 0
    %3174 = vmatpush.bf16.msra.mxu0 %v3165
    %3175 = vmatmul.bf16.gmra.mxu0 %v3162
    %v3176 = vpop.f32.mrf.mxu0
    %v3177 = vadd.f32 0.0, %v3176
    %v3178 = vpop.f32.mrf.mxu0
    %3179 = vdwg.mxu0
    %3180 = vrot.lane.b32.xlu0 %v2883, 104
    %v3181 = vpop.permute.xlu0 %3180
    %v3183 = vsel %vm338, %v3158, 0
    %v3186 = vsel %vm408, %v3181, 0
    %3188 = vmatpush.bf16.msra.mxu0 0
    %3189 = vmatpush.bf16.msra.mxu0 0
    %3190 = vmatpush.bf16.msra.mxu0 0
    %3191 = vmatpush.bf16.msra.mxu0 0
    %3192 = vmatpush.bf16.msra.mxu0 0
    %3193 = vmatpush.bf16.msra.mxu0 0
    %3194 = vmatpush.bf16.msra.mxu0 0
    %3195 = vmatpush.bf16.msra.mxu0 %v3186
    %3196 = vmatmul.bf16.gmra.mxu0 %v3183
    %v3197 = vpop.f32.mrf.mxu0
    %v3198 = vadd.f32 0.0, %v3197
    %v3199 = vpop.f32.mrf.mxu0
    %3200 = vdwg.mxu0
    %v3201 = vpack.c.bf16 %v3198, %v3177
    %v3203 = vsel %vm338, %v3201, 0
    %v3206 = vsel %vm408, %v2573, 0
    %3208 = vmatpush.bf16.msra.mxu0 0
    %3209 = vmatpush.bf16.msra.mxu0 0
    %3210 = vmatpush.bf16.msra.mxu0 0
    %3211 = vmatpush.bf16.msra.mxu0 0
    %3212 = vmatpush.bf16.msra.mxu0 0
    %3213 = vmatpush.bf16.msra.mxu0 0
    %3214 = vmatpush.bf16.msra.mxu0 0
    %3215 = vmatpush.bf16.msra.mxu0 %v3206
    %3216 = vmatmul.bf16.gmra.mxu0 %v3203
    %v3217 = vpop.f32.mrf.mxu0
    %v3218 = vadd.f32 0.0, %v3217
    %v3219 = vpop.f32.mrf.mxu0
    %v3220 = vadd.f32 0.0, %v3219
    %3221 = vdwg.mxu0
    %v3222 = vadd.f32 %v3083, %v3218
    %v3223 = vadd.f32 %v3084, %v3220
    %v3224 = vadd.f32 %v3222, %v2552
    %v3225 = vadd.f32 %v3223, %v2553
    %v3226 = vsel %vm262, %v3224, 0.0
    %3227 = vadd.xlane.f32.xlu0 %v3226
    %v3228 = vpop.xlane.xlu0 %3227
    %v3229 = vsel %vm262, %v3225, 0.0
    %3230 = vadd.xlane.f32.xlu0 %v3229
    %v3231 = vpop.xlane.xlu0 %3230
    %v3232 = vmul.f32 %v3228, %v912
    %v3233 = vmul.f32 %v3231, %v912
    %v3234 = vsub.f32 %v3224, %v3232
    %v3235 = vsub.f32 %v3225, %v3233
    %v3236 = vmul.f32 %v3234, %v3234
    %v3237 = vmul.f32 %v3235, %v3235
    %v3238 = vsel %vm262, %v3236, 0.0
    %3239 = vadd.xlane.f32.xlu0 %v3238
    %v3240 = vpop.xlane.xlu0 %3239
    %v3241 = vsel %vm262, %v3237, 0.0
    %3242 = vadd.xlane.f32.xlu0 %v3241
    %v3243 = vpop.xlane.xlu0 %3242
    %v3244 = vmul.f32 %v3240, %v912
    %v3245 = vmul.f32 %v3243, %v912
    %v3246 = vadd.f32 %v3244, 1e-05
    %v3247 = vadd.f32 %v3245, 1e-05
    %v3248 = vrsqrt.pop %v3246
    %v3249 = vmul.f32 %v3248, %v3246
    %v3250 = vmul.f32 %v3249, %v3248
    %v3251 = vmul.f32 0.5, %v3250
    %v3252 = vsub.f32 1.5, %v3251
    %v3253 = vmul.f32 %v3248, %v3252
    %vm3254 = vweird.f32 %v3246
    %vm3255 = vweird.f32 %v3248
    %vm3256 = vmor %vm3254, %vm3255
    %v3257 = vsel %vm3256, %v3248, %v3253
    %v3258 = vrsqrt.pop %v3247
    %v3259 = vmul.f32 %v3258, %v3247
    %v3260 = vmul.f32 %v3259, %v3258
    %v3261 = vmul.f32 0.5, %v3260
    %v3262 = vsub.f32 1.5, %v3261
    %v3263 = vmul.f32 %v3258, %v3262
    %vm3264 = vweird.f32 %v3247
    %vm3265 = vweird.f32 %v3258
    %vm3266 = vmor %vm3264, %vm3265
    %v3267 = vsel %vm3266, %v3258, %v3263
    %v3268 = vmul.f32 %v3234, %v3257
    %v3269 = vmul.f32 %v3235, %v3267
    %v3271 = vperm.slane %v2575, 0
    %v3273 = vmul.f32 %v3268, %v3271
    %v3274 = vmul.f32 %v3269, %v3271
    %v3276 = vperm.slane %v2577, 0
    %v3278 = vadd.f32 %v3273, %v3276
    %v3279 = vadd.f32 %v3274, %v3276
    %v3280 = vpack.c.bf16 %v3279, %v3278
    %s3281 = scalar_lea.vmem [#allocation17], 16
    %v3282 = vld [vmem:[%s3281] sm:$0xf]
    %v3283 = vld [vmem:[%s3281 + $0x4] sm:$0xf]
    %v3284 = vld [vmem:[%s3281 + $0x8] sm:$0xf]
    %v3285 = vld [vmem:[%s3281 + $0xc] sm:$0xf]
    %v3290 = vunpack.c.l.b16 %v3282
    %v3291 = vunpack.c.l.b16 %v3283
    %v3292 = vunpack.c.l.b16 %v3284
    %v3293 = vunpack.c.l.b16 %v3285
    %v3294 = vpack.c.b16 %v3291, %v3290
    %v3295 = vpack.c.b16 %v3293, %v3292
    %v3299 = vsel %vm262, %v3280, 0
    %3301 = vmatpush.bf16.msra.mxu0 0
    %3302 = vmatpush.bf16.msra.mxu0 0
    %3303 = vmatpush.bf16.msra.mxu0 0
    %3304 = vmatpush.bf16.msra.mxu0 0
    %3305 = vmatpush.bf16.msra.mxu0 0
    %3306 = vmatpush.bf16.msra.mxu0 0
    %3307 = vmatpush.bf16.msra.mxu0 %v3295
    %3308 = vmatpush.bf16.msra.mxu0 %v3294
    %3309 = vmatmul.bf16.gmra.mxu0 %v3299
    %v3310 = vpop.f32.mrf.mxu0
    %v3311 = vadd.f32 0.0, %v3310
    %v3312 = vpop.f32.mrf.mxu0
    %v3313 = vadd.f32 0.0, %v3312
    %3314 = vdwg.mxu0
    %v3315 = vmax.f32 %v3311, 0.0
    %v3316 = vmax.f32 %v3313, 0.0
    %v3317 = vpack.c.bf16 %v3316, %v3315
    %s3318 = scalar_lea.vmem %s17, 32
    %v3319 = vld [vmem:[%s3318] sm:$0xf]
    %v3320 = vld [vmem:[%s3318 + $0x4] sm:$0xf]
    %v3321 = vld [vmem:[%s3318 + $0x8] sm:$0xf]
    %v3322 = vld [vmem:[%s3318 + $0xc] sm:$0xf]
    %v3323 = vld [vmem:[%s3318 + $0x10] sm:$0xf]
    %v3324 = vld [vmem:[%s3318 + $0x14] sm:$0xf]
    %v3325 = vld [vmem:[%s3318 + $0x18] sm:$0xf]
    %v3326 = vld [vmem:[%s3318 + $0x1c] sm:$0xf]
    %v3335 = vunpack.c.l.b16 %v3319
    %v3336 = vunpack.c.l.b16 %v3320
    %v3337 = vunpack.c.l.b16 %v3321
    %v3338 = vunpack.c.l.b16 %v3322
    %v3339 = vunpack.c.l.b16 %v3323
    %v3340 = vunpack.c.l.b16 %v3324
    %v3341 = vunpack.c.l.b16 %v3325
    %v3342 = vunpack.c.l.b16 %v3326
    %v3343 = vpack.c.b16 %v3336, %v3335
    %v3344 = vpack.c.b16 %v3338, %v3337
    %v3345 = vpack.c.b16 %v3340, %v3339
    %v3346 = vpack.c.b16 %v3342, %v3341
    %v3352 = vsel %vm1754, %v3317, 0
    %3354 = vmatpush.bf16.msra.mxu0 0
    %3355 = vmatpush.bf16.msra.mxu0 0
    %3356 = vmatpush.bf16.msra.mxu0 0
    %3357 = vmatpush.bf16.msra.mxu0 0
    %3358 = vmatpush.bf16.msra.mxu0 %v3346
    %3359 = vmatpush.bf16.msra.mxu0 %v3345
    %3360 = vmatpush.bf16.msra.mxu0 %v3344
    %3361 = vmatpush.bf16.msra.mxu0 %v3343
    %3362 = vmatmul.bf16.gmra.mxu0 %v3352
    %v3363 = vpop.f32.mrf.mxu0
    %v3364 = vadd.f32 %v3278, %v3363
    %v3365 = vpop.f32.mrf.mxu0
    %v3366 = vadd.f32 %v3279, %v3365
    %3367 = vdwg.mxu0
    %s3368 = scalar_lea.vmem %s18, 1
    %v3369 = vld [vmem:[%s3368] sm:$0x1]
    %s3370 = scalar_lea.vmem %s19, 1
    %v3371 = vld [vmem:[%s3370] sm:$0x1]
    %v3372 = vsel %vm262, %v3364, 0.0
    %3373 = vadd.xlane.f32.xlu0 %v3372
    %v3374 = vpop.xlane.xlu0 %3373
    %v3375 = vsel %vm262, %v3366, 0.0
    %3376 = vadd.xlane.f32.xlu0 %v3375
    %v3377 = vpop.xlane.xlu0 %3376
    %v3378 = vmul.f32 %v3374, %v912
    %v3379 = vmul.f32 %v3377, %v912
    %v3380 = vsub.f32 %v3364, %v3378
    %v3381 = vsub.f32 %v3366, %v3379
    %v3382 = vmul.f32 %v3380, %v3380
    %v3383 = vmul.f32 %v3381, %v3381
    %v3384 = vsel %vm262, %v3382, 0.0
    %3385 = vadd.xlane.f32.xlu0 %v3384
    %v3386 = vpop.xlane.xlu0 %3385
    %v3387 = vsel %vm262, %v3383, 0.0
    %3388 = vadd.xlane.f32.xlu0 %v3387
    %v3389 = vpop.xlane.xlu0 %3388
    %v3390 = vmul.f32 %v3386, %v912
    %v3391 = vmul.f32 %v3389, %v912
    %v3392 = vadd.f32 %v3390, 1e-05
    %v3393 = vadd.f32 %v3391, 1e-05
    %v3394 = vrsqrt.pop %v3392
    %v3395 = vmul.f32 %v3394, %v3392
    %v3396 = vmul.f32 %v3395, %v3394
    %v3397 = vmul.f32 0.5, %v3396
    %v3398 = vsub.f32 1.5, %v3397
    %v3399 = vmul.f32 %v3394, %v3398
    %vm3400 = vweird.f32 %v3392
    %vm3401 = vweird.f32 %v3394
    %vm3402 = vmor %vm3400, %vm3401
    %v3403 = vsel %vm3402, %v3394, %v3399
    %v3404 = vrsqrt.pop %v3393
    %v3405 = vmul.f32 %v3404, %v3393
    %v3406 = vmul.f32 %v3405, %v3404
    %v3407 = vmul.f32 0.5, %v3406
    %v3408 = vsub.f32 1.5, %v3407
    %v3409 = vmul.f32 %v3404, %v3408
    %vm3410 = vweird.f32 %v3393
    %vm3411 = vweird.f32 %v3404
    %vm3412 = vmor %vm3410, %vm3411
    %v3413 = vsel %vm3412, %v3404, %v3409
    %v3414 = vmul.f32 %v3380, %v3403
    %v3415 = vmul.f32 %v3381, %v3413
    %v3417 = vperm.slane %v3369, 0
    %v3419 = vmul.f32 %v3414, %v3417
    %v3420 = vmul.f32 %v3415, %v3417
    %v3422 = vperm.slane %v3371, 0
    %v3424 = vadd.f32 %v3419, %v3422
    %v3425 = vadd.f32 %v3420, %v3422
    %3426 = vst.msk [vmem:[#allocation19] sm:$0xff] %vm262, %v3424
    %3427 = vst.msk [vmem:[#allocation19 + $0x8] sm:$0xff] %vm262, %v3425
    // Predicated region
    $region122: #{tpu_custom_call.1} parent=1 // pred_check
      _
    $region123: #{tpu_custom_call.1} parent=1 // pred_check_branch
      %3429 = sbr.rel (0) target = $region125
    $region124: #{tpu_custom_call.1} parent=1 // pred_region
      %3431 = vsyncadd [#allocation4], 0
      %s3432 = sshll.u32 [#allocation19], 4
      %s3433 = int_to_ptr.vmem [resolvable:$true] %s3432
      %s3434 = sshll.u32 %s20, 4
      %s3435 = int_to_ptr.hbm [resolvable:$true] %s3434
      %3440 = dma.vmem_to_hbm [thread:$0]  %s3433, 256, %s3435, [#allocation4], 128, 128, 8
    $region125: #{tpu_custom_call.1} parent=1 // pred_fallthru
      _
    // Predicated region
    $region126: #{tpu_custom_call.1} parent=1 // pred_check
      _
    $region127: #{tpu_custom_call.1} parent=1 // pred_check_branch
      %3442 = sbr.rel (0) target = $region129
    $region128: #{tpu_custom_call.1} parent=1 // pred_region
      %3444 = dma.done [#allocation4], 256
    $region129: #{tpu_custom_call.1} parent=1 // pred_fallthru
      _
    %3445 = vsyncpa [#allocation3], 1
    %3446 = vsyncpa [#allocation6], 1
    %3447 = vsyncpa [#allocation9], 1
    %3448 = vsyncpa [#allocation12], 1
    %3449 = vsyncpa [#allocation15], 1
    %3450 = vsyncpa [#allocation18], 1
    %3451 = vsyncpa [#allocation4], 1

</llo_original>
